<compile_context>
chip_gen: v7x
topology: tpu7x:2x2x1
jax: 0.10.0
libtpu: 0.0.40
codegen_flags: <defaults>
</compile_context>

<pallas_src>
import functools

import jax
import jax.numpy as jnp
from jax import lax
from jax.experimental import pallas as pl
from jax.experimental.pallas import tpu as pltpu


# ----------------------------------------------------------------------------
# In-kernel helpers
# ----------------------------------------------------------------------------
def _activation(y, act):
    if act == 'relu':
        return jnp.maximum(y, 0.0)
    if act == 'leakyRelu':
        return jnp.where(y > 0, y, 0.01 * y)
    if act == 'mish':
        sp = jnp.maximum(y, 0.0) + jnp.log1p(jnp.exp(-jnp.abs(y)))  # stable softplus
        return y * jnp.tanh(sp)
    return y


def _gn_act(y, gam, bet, *, use_gn, act, groups, eps):
    """GroupNorm(groups) + activation on a (C, N) per-sample slab."""
    if use_gn:
        C = y.shape[0]
        Cg = C // groups
        parts = []
        for g in range(groups):
            sub = y[g * Cg:(g + 1) * Cg, :]
            m = jnp.mean(sub)                              # stats over (Cg, all spatial)
            var = jnp.mean((sub - m) * (sub - m))
            inv = lax.rsqrt(var + eps)
            sub = (sub - m) * inv
            sub = sub * gam[g * Cg:(g + 1) * Cg, :] + bet[g * Cg:(g + 1) * Cg, :]
            parts.append(sub)
        y = jnp.concatenate(parts, axis=0)
    return _activation(y, act)


def _taps_from_slab(v, Ho, Wo):
    """v: (C, Hp, Wp) zero-padded slab -> (9*C, Ho*Wo) stacked 3x3 tap matrix.

    Row order matches the (O, KH, KW, I)-flattened weight layout:
    row index = (dy*3 + dx)*C + c."""
    C = v.shape[0]
    rows = []
    for dy in range(3):
        for dx in range(3):
            rows.append(v[:, dy:dy + Ho, dx:dx + Wo].reshape(C, Ho * Wo))
    return jnp.concatenate(rows, axis=0)


# ----------------------------------------------------------------------------
# Fully fused block kernel (stride == 1): conv1+GN+act+conv2+GN+act, ONE call
# ----------------------------------------------------------------------------
def fused_double_conv3x3_gn_act(x_nchw, p1, p2, *, padding=1, use_gn=True,
                                act='relu', groups=2, eps=1e-5):
    """x_nchw: (B, Cin, H, W) f32 -> (B, Cout, Ho2, Wo2) f32."""
    B, Cin, H, W = x_nchw.shape
    Cmid, KC1 = p1['w'].shape
    Cout, KC2 = p2['w'].shape
    assert KC1 == 9 * Cin and KC2 == 9 * Cmid
    p = padding
    Hp, Wp = H + 2 * p, W + 2 * p
    Ho1, Wo1 = Hp - 2, Wp - 2              # conv1 output (stride 1)
    N1 = Ho1 * Wo1
    H1p, W1p = Ho1 + 2 * p, Wo1 + 2 * p    # conv1 output re-padded for conv2
    Ho2, Wo2 = H1p - 2, W1p - 2
    N2 = Ho2 * Wo2

    xp = jnp.pad(x_nchw, ((0, 0), (0, 0), (p, p), (p, p)))

    def kernel(x_ref, w1_ref, b1_ref, g1_ref, t1_ref,
               w2_ref, b2_ref, g2_ref, t2_ref, o_ref, mid_ref):
        # ---- conv1 + bias + GN + act ------------------------------------
        taps1 = _taps_from_slab(x_ref[0], Ho1, Wo1)                 # (9*Cin, N1)
        y1 = jnp.dot(w1_ref[...], taps1,
                     preferred_element_type=jnp.float32) + b1_ref[...]
        y1 = _gn_act(y1, g1_ref[...], t1_ref[...],
                     use_gn=use_gn, act=act, groups=groups, eps=eps)
        # ---- re-pad the intermediate in VMEM (never touches HBM) --------
        mid_ref[...] = jnp.zeros_like(mid_ref)      # zero borders every step
        mid_ref[:, p:p + Ho1, p:p + Wo1] = y1.reshape(Cmid, Ho1, Wo1)
        # ---- conv2 + bias + GN + act -------------------------------------
        taps2 = _taps_from_slab(mid_ref[...], Ho2, Wo2)             # (9*Cmid, N2)
        y2 = jnp.dot(w2_ref[...], taps2,
                     preferred_element_type=jnp.float32) + b2_ref[...]
        y2 = _gn_act(y2, g2_ref[...], t2_ref[...],
                     use_gn=use_gn, act=act, groups=groups, eps=eps)
        o_ref[...] = y2.reshape(1, Cout, N2)

    const = lambda b: (0, 0)
    out = pl.pallas_call(
        kernel,
        out_shape=jax.ShapeDtypeStruct((B, Cout, N2), jnp.float32),
        grid_spec=pltpu.PrefetchScalarGridSpec(
            num_scalar_prefetch=0,
            grid=(B,),
            in_specs=[
                pl.BlockSpec((1, Cin, Hp, Wp), lambda b: (b, 0, 0, 0)),
                pl.BlockSpec((Cmid, KC1), const),
                pl.BlockSpec((Cmid, 1), const),
                pl.BlockSpec((Cmid, 1), const),
                pl.BlockSpec((Cmid, 1), const),
                pl.BlockSpec((Cout, KC2), const),
                pl.BlockSpec((Cout, 1), const),
                pl.BlockSpec((Cout, 1), const),
                pl.BlockSpec((Cout, 1), const),
            ],
            out_specs=pl.BlockSpec((1, Cout, N2), lambda b: (b, 0, 0)),
            scratch_shapes=[pltpu.VMEM((Cmid, H1p, W1p), jnp.float32)],
        ),
        compiler_params=pltpu.CompilerParams(
            dimension_semantics=("parallel",)),
    )(xp, p1['w'], p1['b'], p1['gamma'], p1['beta'],
      p2['w'], p2['b'], p2['gamma'], p2['beta'])
    return out.reshape(B, Cout, Ho2, Wo2)


# ----------------------------------------------------------------------------
# Single fused conv kernel (used only by the stride > 1 fallback path)
# ----------------------------------------------------------------------------
def fused_conv3x3_gn_act(x_nchw, w_flat, bias, gamma, beta, *,
                         padding=1, stride=1, use_gn=True, act='relu',
                         groups=2, eps=1e-5):
    """3x3 conv (single folded GEMM) + bias + GroupNorm + activation."""
    B, Cin, H, W = x_nchw.shape
    Cout, KC = w_flat.shape
    assert KC == 9 * Cin
    Ho = (H + 2 * padding - 3) // stride + 1
    Wo = (W + 2 * padding - 3) // stride + 1
    N = Ho * Wo
    Hp, Wp = H + 2 * padding, W + 2 * padding

    xp = jnp.pad(x_nchw, ((0, 0), (0, 0), (padding, padding), (padding, padding)))

    if stride == 1:
        mode = 'halo'
        conv_in = xp                                            # (B, Cin, Hp, Wp)
        x_spec = pl.BlockSpec((1, Cin, Hp, Wp), lambda b: (b, 0, 0, 0))
    else:
        # TODO(synk): strided taps are extracted JAX-side (small 9x blow-up);
        # an in-kernel strided-lane gather is not attempted here.
        mode = 'taps'
        taps = []
        for dy in range(3):
            for dx in range(3):
                t = xp[:, :, dy:dy + stride * (Ho - 1) + 1:stride,
                             dx:dx + stride * (Wo - 1) + 1:stride]
                taps.append(t.reshape(B, Cin, N))
        conv_in = jnp.concatenate(taps, axis=1)                 # (B, 9*Cin, N)
        x_spec = pl.BlockSpec((1, KC, N), lambda b: (b, 0, 0))

    def kernel(x_ref, w_ref, b_ref, g_ref, bt_ref, o_ref):
        if mode == 'halo':
            taps_m = _taps_from_slab(x_ref[0], Ho, Wo)          # (9*Cin, N)
        else:
            taps_m = x_ref[0]                                   # (9*Cin, N)
        y = jnp.dot(w_ref[...], taps_m, preferred_element_type=jnp.float32)
        y = y + b_ref[...]                                      # (Cout,1) bcast on lanes
        y = _gn_act(y, g_ref[...], bt_ref[...],
                    use_gn=use_gn, act=act, groups=groups, eps=eps)
        o_ref[...] = y.reshape(1, Cout, N)

    const = lambda b: (0, 0)
    out = pl.pallas_call(
        kernel,
        out_shape=jax.ShapeDtypeStruct((B, Cout, N), jnp.float32),
        grid_spec=pltpu.PrefetchScalarGridSpec(
            num_scalar_prefetch=0,
            grid=(B,),
            in_specs=[
                x_spec,
                pl.BlockSpec((Cout, KC), const),
                pl.BlockSpec((Cout, 1), const),
                pl.BlockSpec((Cout, 1), const),
                pl.BlockSpec((Cout, 1), const),
            ],
            out_specs=pl.BlockSpec((1, Cout, N), lambda b: (b, 0, 0)),
        ),
        compiler_params=pltpu.CompilerParams(
            dimension_semantics=("parallel",)),
    )(conv_in, w_flat, bias, gamma, beta)
    return out.reshape(B, Cout, Ho, Wo)


# ----------------------------------------------------------------------------
# DoubleConvBlock2d forward (conv1 -> GN -> act -> conv2 -> GN -> act)
# ----------------------------------------------------------------------------
def double_conv_block_2d(params, x, *, padding=1, stride=1,
                         use_norm='group_norm', activation_func='relu'):
    """x: (B, Cin, H, W) f32 -> (B, Cout, Ho, Wo) f32 (matches the PyTorch module)."""
    use_gn = (use_norm == 'group_norm')
    act = activation_func if activation_func in ('relu', 'leakyRelu') else 'mish'
    p1, p2 = params['conv1'], params['conv2']
    if stride == 1:
        # Whole block in ONE kernel; intermediate activation never leaves VMEM.
        return fused_double_conv3x3_gn_act(x, p1, p2, padding=padding,
                                           use_gn=use_gn, act=act)
    # Non-default stride: conv2 uses the proven JAX-side strided-taps path.
    x = fused_conv3x3_gn_act(x, p1['w'], p1['b'], p1['gamma'], p1['beta'],
                             padding=padding, stride=1, use_gn=use_gn, act=act)
    x = fused_conv3x3_gn_act(x, p2['w'], p2['b'], p2['gamma'], p2['beta'],
                             padding=padding, stride=stride, use_gn=use_gn, act=act)
    return x


# ----------------------------------------------------------------------------
# Parameters (deterministic synthetic init, PyTorch Conv2d-like fan-in scaling)
# ----------------------------------------------------------------------------
def init_double_conv_params(key, cin, cout):
    def conv_p(k, ci, co):
        kw, kb = jax.random.split(k)
        fan_in = ci * 9
        bound = float(1.0 / (fan_in ** 0.5))
        w = jax.random.uniform(kw, (co, ci, 3, 3), jnp.float32, -bound, bound)
        b = jax.random.uniform(kb, (co,), jnp.float32, -bound, bound)
        # kernel layout: columns ordered (dy*3+dx)*Cin + c
        w_flat = jnp.transpose(w, (0, 2, 3, 1)).reshape(co, 9 * ci)
        return dict(w=w_flat, w_oihw=w, b=b.reshape(co, 1),
                    gamma=jnp.ones((co, 1), jnp.float32),     # GroupNorm default affine
                    beta=jnp.zeros((co, 1), jnp.float32))
    k1, k2 = jax.random.split(key)
    return dict(conv1=conv_p(k1, cin, cin), conv2=conv_p(k2, cin, cout))


# ----------------------------------------------------------------------------
# Pure-JAX reference (for correctness check only)
# ----------------------------------------------------------------------------
def _ref_conv3x3(x, w_oihw, b, padding, stride):
    y = lax.conv_general_dilated(
        x, w_oihw, window_strides=(stride, stride),
        padding=((padding, padding), (padding, padding)),
        dimension_numbers=('NCHW', 'OIHW', 'NCHW'),
        precision=lax.Precision.HIGHEST)
    return y + b.reshape(1, -1, 1, 1)


def _ref_group_norm(x, gamma, beta, groups=2, eps=1e-5):
    B, C, H, W = x.shape
    xg = x.reshape(B, groups, C // groups, H, W)
    m = xg.mean(axis=(2, 3, 4), keepdims=True)
    v = ((xg - m) ** 2).mean(axis=(2, 3, 4), keepdims=True)
    x = ((xg - m) * lax.rsqrt(v + eps)).reshape(B, C, H, W)
    return x * gamma.reshape(1, C, 1, 1) + beta.reshape(1, C, 1, 1)


def ref_double_conv_block_2d(params, x, *, padding=1, stride=1):
    p1, p2 = params['conv1'], params['conv2']
    x = _ref_conv3x3(x, p1['w_oihw'], p1['b'], padding, 1)
    x = jnp.maximum(_ref_group_norm(x, p1['gamma'], p1['beta']), 0.0)
    x = _ref_conv3x3(x, p2['w_oihw'], p2['b'], padding, stride)
    x = jnp.maximum(_ref_group_norm(x, p2['gamma'], p2['beta']), 0.0)
    return x


if __name__ == "__main__":
    key = jax.random.PRNGKey(0)
    kp, kx = jax.random.split(key)

    B, Cin, Cout, H, W = 2, 4, 8, 16, 16
    x = jax.random.normal(kx, (B, Cin, H, W), jnp.float32)
    params = init_double_conv_params(kp, Cin, Cout)

    # Default module config: padding=1, stride=1, GroupNorm(2), ReLU  ->  single
    # fully-fused pallas_call.
    fwd = jax.jit(functools.partial(double_conv_block_2d, padding=1, stride=1,
                                    use_norm='group_norm', activation_func='relu'))
    y = fwd(params, x)
    jax.block_until_ready(y)
    assert y.shape == (B, Cout, H, W), y.shape
    assert bool(jnp.all(jnp.isfinite(y)))

    # stride=2 variant (exercises the strided-taps fallback path for conv_2).
    fwd_s2 = jax.jit(functools.partial(double_conv_block_2d, padding=1, stride=2,
                                       use_norm='group_norm', activation_func='relu'))
    y2 = fwd_s2(params, x)
    jax.block_until_ready(y2)
    assert y2.shape == (B, Cout, H // 2, W // 2), y2.shape
    assert bool(jnp.all(jnp.isfinite(y2)))

    # Semantics check against the pure-JAX/XLA reference of the same module.
    y_ref = ref_double_conv_block_2d(params, x, padding=1, stride=1)
    y2_ref = ref_double_conv_block_2d(params, x, padding=1, stride=2)
    assert float(jnp.max(jnp.abs(y - y_ref))) < 5e-2
    assert float(jnp.max(jnp.abs(y2 - y2_ref))) < 5e-2

    print("KERNEL_OK")
</pallas_src>

<mosaic_0001>
module attributes {stable_mosaic.version = 11 : i64} {
  func.func @kernel(%arg0: i32, %arg1: memref<1x4x18x18xf32, #tpu.memory_space<vmem>>, %arg2: memref<4x36xf32, #tpu.memory_space<vmem>>, %arg3: memref<4x1xf32, #tpu.memory_space<vmem>>, %arg4: memref<4x1xf32, #tpu.memory_space<vmem>>, %arg5: memref<4x1xf32, #tpu.memory_space<vmem>>, %arg6: memref<8x36xf32, #tpu.memory_space<vmem>>, %arg7: memref<8x1xf32, #tpu.memory_space<vmem>>, %arg8: memref<8x1xf32, #tpu.memory_space<vmem>>, %arg9: memref<8x1xf32, #tpu.memory_space<vmem>>, %arg10: memref<1x8x256xf32, #tpu.memory_space<vmem>>, %arg11: memref<4x18x18xf32, #tpu.memory_space<vmem>>) attributes {dimension_semantics = [#tpu.dimension_semantics<parallel>], iteration_bounds = array<i64: 2>, scalar_prefetch = 0 : i64, scratch_operands = 1 : i64, tpu.core_type = #tpu.core_type<tc>, window_params = [{transform_indices = @transform_0, window_bounds = array<i64: 1, 4, 18, 18>}, {pipeline_mode = #tpu.pipeline_mode<synchronous>, transform_indices = @transform_1, window_bounds = array<i64: 4, 36>}, {pipeline_mode = #tpu.pipeline_mode<synchronous>, transform_indices = @transform_2, window_bounds = array<i64: 4, 1>}, {pipeline_mode = #tpu.pipeline_mode<synchronous>, transform_indices = @transform_3, window_bounds = array<i64: 4, 1>}, {pipeline_mode = #tpu.pipeline_mode<synchronous>, transform_indices = @transform_4, window_bounds = array<i64: 4, 1>}, {pipeline_mode = #tpu.pipeline_mode<synchronous>, transform_indices = @transform_5, window_bounds = array<i64: 8, 36>}, {pipeline_mode = #tpu.pipeline_mode<synchronous>, transform_indices = @transform_6, window_bounds = array<i64: 8, 1>}, {pipeline_mode = #tpu.pipeline_mode<synchronous>, transform_indices = @transform_7, window_bounds = array<i64: 8, 1>}, {pipeline_mode = #tpu.pipeline_mode<synchronous>, transform_indices = @transform_8, window_bounds = array<i64: 8, 1>}, {transform_indices = @transform_9, window_bounds = array<i64: 1, 8, 256>}]} {
    %c0 = arith.constant 0 : index
    %c0_0 = arith.constant 0 : index
    %c0_1 = arith.constant 0 : index
    %c0_2 = arith.constant 0 : index
    %0 = vector.load %arg1[%c0, %c0_0, %c0_1, %c0_2] : memref<1x4x18x18xf32, #tpu.memory_space<vmem>>, vector<1x4x18x18xf32>
    %1 = vector.shape_cast %0 : vector<1x4x18x18xf32> to vector<4x18x18xf32>
    %2 = vector.extract_strided_slice %1 {offsets = [0, 0, 0], sizes = [4, 16, 16], strides = [1, 1, 1]} : vector<4x18x18xf32> to vector<4x16x16xf32>
    %3 = vector.shape_cast %2 : vector<4x16x16xf32> to vector<4x256xf32>
    %4 = vector.extract_strided_slice %1 {offsets = [0, 0, 1], sizes = [4, 16, 16], strides = [1, 1, 1]} : vector<4x18x18xf32> to vector<4x16x16xf32>
    %5 = vector.shape_cast %4 : vector<4x16x16xf32> to vector<4x256xf32>
    %6 = vector.extract_strided_slice %1 {offsets = [0, 0, 2], sizes = [4, 16, 16], strides = [1, 1, 1]} : vector<4x18x18xf32> to vector<4x16x16xf32>
    %7 = vector.shape_cast %6 : vector<4x16x16xf32> to vector<4x256xf32>
    %8 = vector.extract_strided_slice %1 {offsets = [0, 1, 0], sizes = [4, 16, 16], strides = [1, 1, 1]} : vector<4x18x18xf32> to vector<4x16x16xf32>
    %9 = vector.shape_cast %8 : vector<4x16x16xf32> to vector<4x256xf32>
    %10 = vector.extract_strided_slice %1 {offsets = [0, 1, 1], sizes = [4, 16, 16], strides = [1, 1, 1]} : vector<4x18x18xf32> to vector<4x16x16xf32>
    %11 = vector.shape_cast %10 : vector<4x16x16xf32> to vector<4x256xf32>
    %12 = vector.extract_strided_slice %1 {offsets = [0, 1, 2], sizes = [4, 16, 16], strides = [1, 1, 1]} : vector<4x18x18xf32> to vector<4x16x16xf32>
    %13 = vector.shape_cast %12 : vector<4x16x16xf32> to vector<4x256xf32>
    %14 = vector.extract_strided_slice %1 {offsets = [0, 2, 0], sizes = [4, 16, 16], strides = [1, 1, 1]} : vector<4x18x18xf32> to vector<4x16x16xf32>
    %15 = vector.shape_cast %14 : vector<4x16x16xf32> to vector<4x256xf32>
    %16 = vector.extract_strided_slice %1 {offsets = [0, 2, 1], sizes = [4, 16, 16], strides = [1, 1, 1]} : vector<4x18x18xf32> to vector<4x16x16xf32>
    %17 = vector.shape_cast %16 : vector<4x16x16xf32> to vector<4x256xf32>
    %18 = vector.extract_strided_slice %1 {offsets = [0, 2, 2], sizes = [4, 16, 16], strides = [1, 1, 1]} : vector<4x18x18xf32> to vector<4x16x16xf32>
    %19 = vector.shape_cast %18 : vector<4x16x16xf32> to vector<4x256xf32>
    %20 = tpu.concatenate %3, %5, %7, %9, %11, %13, %15, %17, %19 in 0 : vector<4x256xf32>, vector<4x256xf32>, vector<4x256xf32>, vector<4x256xf32>, vector<4x256xf32>, vector<4x256xf32>, vector<4x256xf32>, vector<4x256xf32>, vector<4x256xf32> -> vector<36x256xf32>
    %c0_3 = arith.constant 0 : index
    %c0_4 = arith.constant 0 : index
    %21 = vector.load %arg2[%c0_3, %c0_4] : memref<4x36xf32, #tpu.memory_space<vmem>>, vector<4x36xf32>
    %cst = arith.constant dense<0.000000e+00> : vector<4x256xf32>
    %22 = tpu.matmul %21, %20, %cst {dimension_numbers = #tpu.dot_dimension_numbers<[1], [0], [0], [1], [0, 0, 1, 1], [], []>} : vector<4x36xf32>, vector<36x256xf32>, vector<4x256xf32> -> vector<4x256xf32>
    %c0_5 = arith.constant 0 : index
    %c0_6 = arith.constant 0 : index
    %23 = vector.load %arg3[%c0_5, %c0_6] : memref<4x1xf32, #tpu.memory_space<vmem>>, vector<4x1xf32>
    %24 = vector.broadcast %23 : vector<4x1xf32> to vector<4x256xf32>
    %25 = arith.addf %22, %24 : vector<4x256xf32>
    %c0_7 = arith.constant 0 : index
    %c0_8 = arith.constant 0 : index
    %26 = vector.load %arg4[%c0_7, %c0_8] : memref<4x1xf32, #tpu.memory_space<vmem>>, vector<4x1xf32>
    %c0_9 = arith.constant 0 : index
    %c0_10 = arith.constant 0 : index
    %27 = vector.load %arg5[%c0_9, %c0_10] : memref<4x1xf32, #tpu.memory_space<vmem>>, vector<4x1xf32>
    %28 = vector.extract_strided_slice %25 {offsets = [0, 0], sizes = [2, 256], strides = [1, 1]} : vector<4x256xf32> to vector<2x256xf32>
    %29 = vector.shape_cast %28 : vector<2x256xf32> to vector<1x2x256xf32>
    %cst_11 = arith.constant dense<0.000000e+00> : vector<1xf32>
    %30 = vector.multi_reduction <add>, %29, %cst_11 [1, 2] : vector<1x2x256xf32> to vector<1xf32>
    %31 = vector.shape_cast %30 : vector<1xf32> to vector<1x1x1xf32>
    %32 = vector.extract %31[0, 0, 0] : f32 from vector<1x1x1xf32>
    %cst_12 = arith.constant 5.120000e+02 : f32
    %33 = arith.divf %32, %cst_12 : f32
    %34 = vector.broadcast %33 : f32 to vector<2x256xf32>
    %35 = arith.subf %28, %34 : vector<2x256xf32>
    %36 = vector.broadcast %33 : f32 to vector<2x256xf32>
    %37 = arith.subf %28, %36 : vector<2x256xf32>
    %38 = arith.mulf %35, %37 : vector<2x256xf32>
    %39 = vector.shape_cast %38 : vector<2x256xf32> to vector<1x2x256xf32>
    %cst_13 = arith.constant dense<0.000000e+00> : vector<1xf32>
    %40 = vector.multi_reduction <add>, %39, %cst_13 [1, 2] : vector<1x2x256xf32> to vector<1xf32>
    %41 = vector.shape_cast %40 : vector<1xf32> to vector<1x1x1xf32>
    %42 = vector.extract %41[0, 0, 0] : f32 from vector<1x1x1xf32>
    %cst_14 = arith.constant 5.120000e+02 : f32
    %43 = arith.divf %42, %cst_14 : f32
    %cst_15 = arith.constant 9.99999974E-6 : f32
    %44 = arith.addf %43, %cst_15 : f32
    %45 = math.rsqrt %44 : f32
    %46 = vector.broadcast %33 : f32 to vector<2x256xf32>
    %47 = arith.subf %28, %46 : vector<2x256xf32>
    %48 = vector.broadcast %45 : f32 to vector<2x256xf32>
    %49 = arith.mulf %47, %48 : vector<2x256xf32>
    %50 = vector.extract_strided_slice %26 {offsets = [0, 0], sizes = [2, 1], strides = [1, 1]} : vector<4x1xf32> to vector<2x1xf32>
    %51 = vector.broadcast %50 : vector<2x1xf32> to vector<2x256xf32>
    %52 = arith.mulf %49, %51 : vector<2x256xf32>
    %53 = vector.extract_strided_slice %27 {offsets = [0, 0], sizes = [2, 1], strides = [1, 1]} : vector<4x1xf32> to vector<2x1xf32>
    %54 = vector.broadcast %53 : vector<2x1xf32> to vector<2x256xf32>
    %55 = arith.addf %52, %54 : vector<2x256xf32>
    %56 = vector.extract_strided_slice %25 {offsets = [2, 0], sizes = [2, 256], strides = [1, 1]} : vector<4x256xf32> to vector<2x256xf32>
    %57 = vector.shape_cast %56 : vector<2x256xf32> to vector<1x2x256xf32>
    %cst_16 = arith.constant dense<0.000000e+00> : vector<1xf32>
    %58 = vector.multi_reduction <add>, %57, %cst_16 [1, 2] : vector<1x2x256xf32> to vector<1xf32>
    %59 = vector.shape_cast %58 : vector<1xf32> to vector<1x1x1xf32>
    %60 = vector.extract %59[0, 0, 0] : f32 from vector<1x1x1xf32>
    %cst_17 = arith.constant 5.120000e+02 : f32
    %61 = arith.divf %60, %cst_17 : f32
    %62 = vector.broadcast %61 : f32 to vector<2x256xf32>
    %63 = arith.subf %56, %62 : vector<2x256xf32>
    %64 = vector.broadcast %61 : f32 to vector<2x256xf32>
    %65 = arith.subf %56, %64 : vector<2x256xf32>
    %66 = arith.mulf %63, %65 : vector<2x256xf32>
    %67 = vector.shape_cast %66 : vector<2x256xf32> to vector<1x2x256xf32>
    %cst_18 = arith.constant dense<0.000000e+00> : vector<1xf32>
    %68 = vector.multi_reduction <add>, %67, %cst_18 [1, 2] : vector<1x2x256xf32> to vector<1xf32>
    %69 = vector.shape_cast %68 : vector<1xf32> to vector<1x1x1xf32>
    %70 = vector.extract %69[0, 0, 0] : f32 from vector<1x1x1xf32>
    %cst_19 = arith.constant 5.120000e+02 : f32
    %71 = arith.divf %70, %cst_19 : f32
    %cst_20 = arith.constant 9.99999974E-6 : f32
    %72 = arith.addf %71, %cst_20 : f32
    %73 = math.rsqrt %72 : f32
    %74 = vector.broadcast %61 : f32 to vector<2x256xf32>
    %75 = arith.subf %56, %74 : vector<2x256xf32>
    %76 = vector.broadcast %73 : f32 to vector<2x256xf32>
    %77 = arith.mulf %75, %76 : vector<2x256xf32>
    %78 = vector.extract_strided_slice %26 {offsets = [2, 0], sizes = [2, 1], strides = [1, 1]} : vector<4x1xf32> to vector<2x1xf32>
    %79 = vector.broadcast %78 : vector<2x1xf32> to vector<2x256xf32>
    %80 = arith.mulf %77, %79 : vector<2x256xf32>
    %81 = vector.extract_strided_slice %27 {offsets = [2, 0], sizes = [2, 1], strides = [1, 1]} : vector<4x1xf32> to vector<2x1xf32>
    %82 = vector.broadcast %81 : vector<2x1xf32> to vector<2x256xf32>
    %83 = arith.addf %80, %82 : vector<2x256xf32>
    %84 = tpu.concatenate %55, %83 in 0 : vector<2x256xf32>, vector<2x256xf32> -> vector<4x256xf32>
    %cst_21 = arith.constant 0.000000e+00 : f32
    %85 = vector.broadcast %cst_21 : f32 to vector<4x256xf32>
    %86 = arith.maximumf %84, %85 : vector<4x256xf32>
    %cst_22 = arith.constant 0.000000e+00 : f32
    %87 = vector.broadcast %cst_22 : f32 to vector<4x18x18xf32>
    %c0_23 = arith.constant 0 : index
    %c0_24 = arith.constant 0 : index
    %c0_25 = arith.constant 0 : index
    %88 = vector.load %arg11[%c0_23, %c0_24, %c0_25] : memref<4x18x18xf32, #tpu.memory_space<vmem>>, vector<4x18x18xf32>
    tpu.vector_store %arg11[%c0_23, %c0_24, %c0_25], %87 {strides = array<i32>} : memref<4x18x18xf32, #tpu.memory_space<vmem>>, vector<4x18x18xf32>,
    %89 = vector.shape_cast %86 : vector<4x256xf32> to vector<4x16x16xf32>
    %c0_26 = arith.constant 0 : index
    %c1 = arith.constant 1 : index
    %c1_27 = arith.constant 1 : index
    %90 = vector.load %arg11[%c0_26, %c1, %c1_27] : memref<4x18x18xf32, #tpu.memory_space<vmem>>, vector<4x16x16xf32>
    tpu.vector_store %arg11[%c0_26, %c1, %c1_27], %89 {strides = array<i32>} : memref<4x18x18xf32, #tpu.memory_space<vmem>>, vector<4x16x16xf32>,
    %c0_28 = arith.constant 0 : index
    %c0_29 = arith.constant 0 : index
    %c0_30 = arith.constant 0 : index
    %91 = vector.load %arg11[%c0_28, %c0_29, %c0_30] : memref<4x18x18xf32, #tpu.memory_space<vmem>>, vector<4x18x18xf32>
    %92 = vector.extract_strided_slice %91 {offsets = [0, 0, 0], sizes = [4, 16, 16], strides = [1, 1, 1]} : vector<4x18x18xf32> to vector<4x16x16xf32>
    %93 = vector.shape_cast %92 : vector<4x16x16xf32> to vector<4x256xf32>
    %94 = vector.extract_strided_slice %91 {offsets = [0, 0, 1], sizes = [4, 16, 16], strides = [1, 1, 1]} : vector<4x18x18xf32> to vector<4x16x16xf32>
    %95 = vector.shape_cast %94 : vector<4x16x16xf32> to vector<4x256xf32>
    %96 = vector.extract_strided_slice %91 {offsets = [0, 0, 2], sizes = [4, 16, 16], strides = [1, 1, 1]} : vector<4x18x18xf32> to vector<4x16x16xf32>
    %97 = vector.shape_cast %96 : vector<4x16x16xf32> to vector<4x256xf32>
    %98 = vector.extract_strided_slice %91 {offsets = [0, 1, 0], sizes = [4, 16, 16], strides = [1, 1, 1]} : vector<4x18x18xf32> to vector<4x16x16xf32>
    %99 = vector.shape_cast %98 : vector<4x16x16xf32> to vector<4x256xf32>
    %100 = vector.extract_strided_slice %91 {offsets = [0, 1, 1], sizes = [4, 16, 16], strides = [1, 1, 1]} : vector<4x18x18xf32> to vector<4x16x16xf32>
    %101 = vector.shape_cast %100 : vector<4x16x16xf32> to vector<4x256xf32>
    %102 = vector.extract_strided_slice %91 {offsets = [0, 1, 2], sizes = [4, 16, 16], strides = [1, 1, 1]} : vector<4x18x18xf32> to vector<4x16x16xf32>
    %103 = vector.shape_cast %102 : vector<4x16x16xf32> to vector<4x256xf32>
    %104 = vector.extract_strided_slice %91 {offsets = [0, 2, 0], sizes = [4, 16, 16], strides = [1, 1, 1]} : vector<4x18x18xf32> to vector<4x16x16xf32>
    %105 = vector.shape_cast %104 : vector<4x16x16xf32> to vector<4x256xf32>
    %106 = vector.extract_strided_slice %91 {offsets = [0, 2, 1], sizes = [4, 16, 16], strides = [1, 1, 1]} : vector<4x18x18xf32> to vector<4x16x16xf32>
    %107 = vector.shape_cast %106 : vector<4x16x16xf32> to vector<4x256xf32>
    %108 = vector.extract_strided_slice %91 {offsets = [0, 2, 2], sizes = [4, 16, 16], strides = [1, 1, 1]} : vector<4x18x18xf32> to vector<4x16x16xf32>
    %109 = vector.shape_cast %108 : vector<4x16x16xf32> to vector<4x256xf32>
    %110 = tpu.concatenate %93, %95, %97, %99, %101, %103, %105, %107, %109 in 0 : vector<4x256xf32>, vector<4x256xf32>, vector<4x256xf32>, vector<4x256xf32>, vector<4x256xf32>, vector<4x256xf32>, vector<4x256xf32>, vector<4x256xf32>, vector<4x256xf32> -> vector<36x256xf32>
    %c0_31 = arith.constant 0 : index
    %c0_32 = arith.constant 0 : index
    %111 = vector.load %arg6[%c0_31, %c0_32] : memref<8x36xf32, #tpu.memory_space<vmem>>, vector<8x36xf32>
    %cst_33 = arith.constant dense<0.000000e+00> : vector<8x256xf32>
    %112 = tpu.matmul %111, %110, %cst_33 {dimension_numbers = #tpu.dot_dimension_numbers<[1], [0], [0], [1], [0, 0, 1, 1], [], []>} : vector<8x36xf32>, vector<36x256xf32>, vector<8x256xf32> -> vector<8x256xf32>
    %c0_34 = arith.constant 0 : index
    %c0_35 = arith.constant 0 : index
    %113 = vector.load %arg7[%c0_34, %c0_35] : memref<8x1xf32, #tpu.memory_space<vmem>>, vector<8x1xf32>
    %114 = vector.broadcast %113 : vector<8x1xf32> to vector<8x256xf32>
    %115 = arith.addf %112, %114 : vector<8x256xf32>
    %c0_36 = arith.constant 0 : index
    %c0_37 = arith.constant 0 : index
    %116 = vector.load %arg8[%c0_36, %c0_37] : memref<8x1xf32, #tpu.memory_space<vmem>>, vector<8x1xf32>
    %c0_38 = arith.constant 0 : index
    %c0_39 = arith.constant 0 : index
    %117 = vector.load %arg9[%c0_38, %c0_39] : memref<8x1xf32, #tpu.memory_space<vmem>>, vector<8x1xf32>
    %118 = vector.extract_strided_slice %115 {offsets = [0, 0], sizes = [4, 256], strides = [1, 1]} : vector<8x256xf32> to vector<4x256xf32>
    %119 = vector.shape_cast %118 : vector<4x256xf32> to vector<1x4x256xf32>
    %cst_40 = arith.constant dense<0.000000e+00> : vector<1xf32>
    %120 = vector.multi_reduction <add>, %119, %cst_40 [1, 2] : vector<1x4x256xf32> to vector<1xf32>
    %121 = vector.shape_cast %120 : vector<1xf32> to vector<1x1x1xf32>
    %122 = vector.extract %121[0, 0, 0] : f32 from vector<1x1x1xf32>
    %cst_41 = arith.constant 1.024000e+03 : f32
    %123 = arith.divf %122, %cst_41 : f32
    %124 = vector.broadcast %123 : f32 to vector<4x256xf32>
    %125 = arith.subf %118, %124 : vector<4x256xf32>
    %126 = vector.broadcast %123 : f32 to vector<4x256xf32>
    %127 = arith.subf %118, %126 : vector<4x256xf32>
    %128 = arith.mulf %125, %127 : vector<4x256xf32>
    %129 = vector.shape_cast %128 : vector<4x256xf32> to vector<1x4x256xf32>
    %cst_42 = arith.constant dense<0.000000e+00> : vector<1xf32>
    %130 = vector.multi_reduction <add>, %129, %cst_42 [1, 2] : vector<1x4x256xf32> to vector<1xf32>
    %131 = vector.shape_cast %130 : vector<1xf32> to vector<1x1x1xf32>
    %132 = vector.extract %131[0, 0, 0] : f32 from vector<1x1x1xf32>
    %cst_43 = arith.constant 1.024000e+03 : f32
    %133 = arith.divf %132, %cst_43 : f32
    %cst_44 = arith.constant 9.99999974E-6 : f32
    %134 = arith.addf %133, %cst_44 : f32
    %135 = math.rsqrt %134 : f32
    %136 = vector.broadcast %123 : f32 to vector<4x256xf32>
    %137 = arith.subf %118, %136 : vector<4x256xf32>
    %138 = vector.broadcast %135 : f32 to vector<4x256xf32>
    %139 = arith.mulf %137, %138 : vector<4x256xf32>
    %140 = vector.extract_strided_slice %116 {offsets = [0, 0], sizes = [4, 1], strides = [1, 1]} : vector<8x1xf32> to vector<4x1xf32>
    %141 = vector.broadcast %140 : vector<4x1xf32> to vector<4x256xf32>
    %142 = arith.mulf %139, %141 : vector<4x256xf32>
    %143 = vector.extract_strided_slice %117 {offsets = [0, 0], sizes = [4, 1], strides = [1, 1]} : vector<8x1xf32> to vector<4x1xf32>
    %144 = vector.broadcast %143 : vector<4x1xf32> to vector<4x256xf32>
    %145 = arith.addf %142, %144 : vector<4x256xf32>
    %146 = vector.extract_strided_slice %115 {offsets = [4, 0], sizes = [4, 256], strides = [1, 1]} : vector<8x256xf32> to vector<4x256xf32>
    %147 = vector.shape_cast %146 : vector<4x256xf32> to vector<1x4x256xf32>
    %cst_45 = arith.constant dense<0.000000e+00> : vector<1xf32>
    %148 = vector.multi_reduction <add>, %147, %cst_45 [1, 2] : vector<1x4x256xf32> to vector<1xf32>
    %149 = vector.shape_cast %148 : vector<1xf32> to vector<1x1x1xf32>
    %150 = vector.extract %149[0, 0, 0] : f32 from vector<1x1x1xf32>
    %cst_46 = arith.constant 1.024000e+03 : f32
    %151 = arith.divf %150, %cst_46 : f32
    %152 = vector.broadcast %151 : f32 to vector<4x256xf32>
    %153 = arith.subf %146, %152 : vector<4x256xf32>
    %154 = vector.broadcast %151 : f32 to vector<4x256xf32>
    %155 = arith.subf %146, %154 : vector<4x256xf32>
    %156 = arith.mulf %153, %155 : vector<4x256xf32>
    %157 = vector.shape_cast %156 : vector<4x256xf32> to vector<1x4x256xf32>
    %cst_47 = arith.constant dense<0.000000e+00> : vector<1xf32>
    %158 = vector.multi_reduction <add>, %157, %cst_47 [1, 2] : vector<1x4x256xf32> to vector<1xf32>
    %159 = vector.shape_cast %158 : vector<1xf32> to vector<1x1x1xf32>
    %160 = vector.extract %159[0, 0, 0] : f32 from vector<1x1x1xf32>
    %cst_48 = arith.constant 1.024000e+03 : f32
    %161 = arith.divf %160, %cst_48 : f32
    %cst_49 = arith.constant 9.99999974E-6 : f32
    %162 = arith.addf %161, %cst_49 : f32
    %163 = math.rsqrt %162 : f32
    %164 = vector.broadcast %151 : f32 to vector<4x256xf32>
    %165 = arith.subf %146, %164 : vector<4x256xf32>
    %166 = vector.broadcast %163 : f32 to vector<4x256xf32>
    %167 = arith.mulf %165, %166 : vector<4x256xf32>
    %168 = vector.extract_strided_slice %116 {offsets = [4, 0], sizes = [4, 1], strides = [1, 1]} : vector<8x1xf32> to vector<4x1xf32>
    %169 = vector.broadcast %168 : vector<4x1xf32> to vector<4x256xf32>
    %170 = arith.mulf %167, %169 : vector<4x256xf32>
    %171 = vector.extract_strided_slice %117 {offsets = [4, 0], sizes = [4, 1], strides = [1, 1]} : vector<8x1xf32> to vector<4x1xf32>
    %172 = vector.broadcast %171 : vector<4x1xf32> to vector<4x256xf32>
    %173 = arith.addf %170, %172 : vector<4x256xf32>
    %174 = tpu.concatenate %145, %173 in 0 : vector<4x256xf32>, vector<4x256xf32> -> vector<8x256xf32>
    %cst_50 = arith.constant 0.000000e+00 : f32
    %175 = vector.broadcast %cst_50 : f32 to vector<8x256xf32>
    %176 = arith.maximumf %174, %175 : vector<8x256xf32>
    %177 = vector.shape_cast %176 : vector<8x256xf32> to vector<1x8x256xf32>
    %c0_51 = arith.constant 0 : index
    %c0_52 = arith.constant 0 : index
    %c0_53 = arith.constant 0 : index
    %178 = vector.load %arg10[%c0_51, %c0_52, %c0_53] : memref<1x8x256xf32, #tpu.memory_space<vmem>>, vector<1x8x256xf32>
    tpu.vector_store %arg10[%c0_51, %c0_52, %c0_53], %177 {strides = array<i32>} : memref<1x8x256xf32, #tpu.memory_space<vmem>>, vector<1x8x256xf32>,
    return
  }
  func.func @transform_0(%arg0: i32) -> (i32, i32, i32, i32) {
    %c0_i32 = arith.constant 0 : i32
    %c0_i32_0 = arith.constant 0 : i32
    %c0_i32_1 = arith.constant 0 : i32
    %c0_i32_2 = arith.constant 0 : i32
    return %arg0, %c0_i32, %c0_i32_0, %c0_i32_1 : i32, i32, i32, i32
  }
  func.func @transform_1(%arg0: i32) -> (i32, i32) {
    %c0_i32 = arith.constant 0 : i32
    %c0_i32_0 = arith.constant 0 : i32
    %c0_i32_1 = arith.constant 0 : i32
    return %c0_i32, %c0_i32_0 : i32, i32
  }
  func.func @transform_2(%arg0: i32) -> (i32, i32) {
    %c0_i32 = arith.constant 0 : i32
    %c0_i32_0 = arith.constant 0 : i32
    %c0_i32_1 = arith.constant 0 : i32
    return %c0_i32, %c0_i32_0 : i32, i32
  }
  func.func @transform_3(%arg0: i32) -> (i32, i32) {
    %c0_i32 = arith.constant 0 : i32
    %c0_i32_0 = arith.constant 0 : i32
    %c0_i32_1 = arith.constant 0 : i32
    return %c0_i32, %c0_i32_0 : i32, i32
  }
  func.func @transform_4(%arg0: i32) -> (i32, i32) {
    %c0_i32 = arith.constant 0 : i32
    %c0_i32_0 = arith.constant 0 : i32
    %c0_i32_1 = arith.constant 0 : i32
    return %c0_i32, %c0_i32_0 : i32, i32
  }
  func.func @transform_5(%arg0: i32) -> (i32, i32) {
    %c0_i32 = arith.constant 0 : i32
    %c0_i32_0 = arith.constant 0 : i32
    %c0_i32_1 = arith.constant 0 : i32
    return %c0_i32, %c0_i32_0 : i32, i32
  }
  func.func @transform_6(%arg0: i32) -> (i32, i32) {
    %c0_i32 = arith.constant 0 : i32
    %c0_i32_0 = arith.constant 0 : i32
    %c0_i32_1 = arith.constant 0 : i32
    return %c0_i32, %c0_i32_0 : i32, i32
  }
  func.func @transform_7(%arg0: i32) -> (i32, i32) {
    %c0_i32 = arith.constant 0 : i32
    %c0_i32_0 = arith.constant 0 : i32
    %c0_i32_1 = arith.constant 0 : i32
    return %c0_i32, %c0_i32_0 : i32, i32
  }
  func.func @transform_8(%arg0: i32) -> (i32, i32) {
    %c0_i32 = arith.constant 0 : i32
    %c0_i32_0 = arith.constant 0 : i32
    %c0_i32_1 = arith.constant 0 : i32
    return %c0_i32, %c0_i32_0 : i32, i32
  }
  func.func @transform_9(%arg0: i32) -> (i32, i32, i32) {
    %c0_i32 = arith.constant 0 : i32
    %c0_i32_0 = arith.constant 0 : i32
    %c0_i32_1 = arith.constant 0 : i32
    return %arg0, %c0_i32, %c0_i32_0 : i32, i32, i32
  }
}

</mosaic_0001>

<llo_original>
// kernel: double_conv_block_2d.1
$region0: #{double_conv_block_2d.1}
  #allocation0 [shape = 'u32[]', space=smem, size = 0x4, offset = 0x4, fixed_abs, tag = 'smem constant byte address 0x4 - core index']
  #allocation1 [shape = 'u32[144,128]{1,0:T(1,128)}', space=vmem, size = 0x12000, scoped, tag = 'internal scratch']
  #allocation2 [shape = 'f32[4,18,18]{2,1,0:T(8,128)}', space=vmem, size = 0xc000, scoped, tag = 'scratch operand']
  %s0 = inlined_call_operand.vmem [shape: f32[2,4,18,18], index: 0, kind: input, shape index: {}]
  %s1 = inlined_call_operand.vmem [shape: f32[4,36], index: 1, kind: input, shape index: {}]
  %s2 = inlined_call_operand.vmem [shape: f32[4,1], index: 2, kind: input, shape index: {}]
  %s3 = inlined_call_operand.vmem [shape: f32[4,1], index: 3, kind: input, shape index: {}]
  %s4 = inlined_call_operand.vmem [shape: f32[4,1], index: 4, kind: input, shape index: {}]
  %s5 = inlined_call_operand.vmem [shape: f32[8,36], index: 5, kind: input, shape index: {}]
  %s6 = inlined_call_operand.vmem [shape: f32[8,1], index: 6, kind: input, shape index: {}]
  %s7 = inlined_call_operand.vmem [shape: f32[8,1], index: 7, kind: input, shape index: {}]
  %s8 = inlined_call_operand.vmem [shape: f32[8,1], index: 8, kind: input, shape index: {}]
  %s9 = inlined_call_operand.vmem [shape: f32[2,8,256], index: 9, kind: output, shape index: {}]
  %s10 = sld [smem:[#allocation0]]
  $region69: #{double_conv_block_2d.1} parent=0
    _
  %s12 = ssub.s32 1, %s10
  %s13 = scalar_select 0, %s12, %s10
  loop: start=0, step=1, limit=4
  $region2: #{double_conv_block_2d.1} parent=0 // loop_pre_header
    _
  $region3: #{double_conv_block_2d.1} parent=0 // loop_header
    %s15 = sphi 0, %s19
    %p16 = scmp.ge.s32.totalorder %s15, 4
    %s25 = sphi 0, %s27
    %s28 = sphi 0, %s25
    %s29 = sphi 0, %s28
    %s45 = sphi 0, %s29
    %s49 = sphi 0, %s49
    %s51 = sphi 0, %s49
    %s52 = sphi 0, %s51
    %s66 = sphi 0, %s52
    %s70 = sphi 0, %s70
    %s72 = sphi 0, %s70
    %s73 = sphi 0, %s72
    %s87 = sphi 0, %s73
    %s91 = sphi 0, %s91
    %s93 = sphi 0, %s91
    %s94 = sphi 0, %s93
    %s108 = sphi 0, %s94
    %s112 = sphi 0, %s112
    %s114 = sphi 0, %s112
    %s115 = sphi 0, %s114
    %s129 = sphi 0, %s115
    %s133 = sphi 0, %s133
    %s135 = sphi 0, %s133
    %s136 = sphi 0, %s135
    %s150 = sphi 0, %s136
    %s154 = sphi 0, %s154
    %s156 = sphi 0, %s154
    %s157 = sphi 0, %s156
    %s171 = sphi 0, %s157
    %s175 = sphi 0, %s175
    %s177 = sphi 0, %s175
    %s178 = sphi 0, %s177
    %s192 = sphi 0, %s178
    %s196 = sphi 0, %s196
    %s198 = sphi 0, %s196
    %s199 = sphi 0, %s198
    %s213 = sphi 0, %s199
    %s219 = sphi 0, %s221
    %s222 = sphi 0, %s219
    %s223 = sphi 0, %s222
    %s239 = sphi 0, %s223
  $region4: #{double_conv_block_2d.1} parent=0 // loop_header_branch
    %18 = sbr.rel (%p16) target = $region8
  $region5: #{double_conv_block_2d.1} parent=0 // loop_body
    %s20 = ssub.s32 %s15, 1
    %s21 = ssub.s32 %s15, 2
    %s22 = sadd.s32 %s15, 1
    %s23 = ssub.s32 %s15, %s22
    %p24 = scmp.eq.s32.totalorder %s23, 0
    %s26 = sadd.s32 %s25, 1
    %s27 = scalar_select %p24, %s25, %s26
    %p30 = pneg %p24
    %p31 = scmp.eq.s32.totalorder %s15, 1
    %p32 = por %p30, %p31
    %p33 = scmp.ne.s32.totalorder %s25, %s28
    %p34 = scmp.eq.s32.totalorder %s15, 0
    %p35 = por %p33, %p34
    %p36 = scmp.ne.s32.totalorder %s25, %s28
    %p37 = scmp.eq.s32.totalorder %s20, 1
    %p38 = por %p36, %p37
    %p39 = scmp.ne.s32.totalorder %s28, %s29
    %p40 = scmp.eq.s32.totalorder %s20, 0
    %p41 = por %p39, %p40
    %p42 = scmp.ne.s32.totalorder %s28, %s29
    %p43 = scmp.eq.s32.totalorder %s21, 1
    %p44 = por %p42, %p43
    %p46 = scmp.ne.s32.totalorder %s29, %s45
    %p47 = scmp.eq.s32.totalorder %s21, 0
    %p48 = por %p46, %p47
    %s50 = sadd.s32 %s49, 1
    %p53 = scmp.eq.s32.totalorder %s15, 1
    %p54 = scmp.ne.s32.totalorder %s49, %s51
    %p55 = scmp.eq.s32.totalorder %s15, 0
    %p56 = por %p54, %p55
    %p57 = scmp.ne.s32.totalorder %s49, %s51
    %p58 = scmp.eq.s32.totalorder %s20, 1
    %p59 = por %p57, %p58
    %p60 = scmp.ne.s32.totalorder %s51, %s52
    %p61 = scmp.eq.s32.totalorder %s20, 0
    %p62 = por %p60, %p61
    %p63 = scmp.ne.s32.totalorder %s51, %s52
    %p64 = scmp.eq.s32.totalorder %s21, 1
    %p65 = por %p63, %p64
    %p67 = scmp.ne.s32.totalorder %s52, %s66
    %p68 = scmp.eq.s32.totalorder %s21, 0
    %p69 = por %p67, %p68
    %s71 = sadd.s32 %s70, 1
    %p74 = scmp.eq.s32.totalorder %s15, 1
    %p75 = scmp.ne.s32.totalorder %s70, %s72
    %p76 = scmp.eq.s32.totalorder %s15, 0
    %p77 = por %p75, %p76
    %p78 = scmp.ne.s32.totalorder %s70, %s72
    %p79 = scmp.eq.s32.totalorder %s20, 1
    %p80 = por %p78, %p79
    %p81 = scmp.ne.s32.totalorder %s72, %s73
    %p82 = scmp.eq.s32.totalorder %s20, 0
    %p83 = por %p81, %p82
    %p84 = scmp.ne.s32.totalorder %s72, %s73
    %p85 = scmp.eq.s32.totalorder %s21, 1
    %p86 = por %p84, %p85
    %p88 = scmp.ne.s32.totalorder %s73, %s87
    %p89 = scmp.eq.s32.totalorder %s21, 0
    %p90 = por %p88, %p89
    %s92 = sadd.s32 %s91, 1
    %p95 = scmp.eq.s32.totalorder %s15, 1
    %p96 = scmp.ne.s32.totalorder %s91, %s93
    %p97 = scmp.eq.s32.totalorder %s15, 0
    %p98 = por %p96, %p97
    %p99 = scmp.ne.s32.totalorder %s91, %s93
    %p100 = scmp.eq.s32.totalorder %s20, 1
    %p101 = por %p99, %p100
    %p102 = scmp.ne.s32.totalorder %s93, %s94
    %p103 = scmp.eq.s32.totalorder %s20, 0
    %p104 = por %p102, %p103
    %p105 = scmp.ne.s32.totalorder %s93, %s94
    %p106 = scmp.eq.s32.totalorder %s21, 1
    %p107 = por %p105, %p106
    %p109 = scmp.ne.s32.totalorder %s94, %s108
    %p110 = scmp.eq.s32.totalorder %s21, 0
    %p111 = por %p109, %p110
    %s113 = sadd.s32 %s112, 1
    %p116 = scmp.eq.s32.totalorder %s15, 1
    %p117 = scmp.ne.s32.totalorder %s112, %s114
    %p118 = scmp.eq.s32.totalorder %s15, 0
    %p119 = por %p117, %p118
    %p120 = scmp.ne.s32.totalorder %s112, %s114
    %p121 = scmp.eq.s32.totalorder %s20, 1
    %p122 = por %p120, %p121
    %p123 = scmp.ne.s32.totalorder %s114, %s115
    %p124 = scmp.eq.s32.totalorder %s20, 0
    %p125 = por %p123, %p124
    %p126 = scmp.ne.s32.totalorder %s114, %s115
    %p127 = scmp.eq.s32.totalorder %s21, 1
    %p128 = por %p126, %p127
    %p130 = scmp.ne.s32.totalorder %s115, %s129
    %p131 = scmp.eq.s32.totalorder %s21, 0
    %p132 = por %p130, %p131
    %s134 = sadd.s32 %s133, 1
    %p137 = scmp.eq.s32.totalorder %s15, 1
    %p138 = scmp.ne.s32.totalorder %s133, %s135
    %p139 = scmp.eq.s32.totalorder %s15, 0
    %p140 = por %p138, %p139
    %p141 = scmp.ne.s32.totalorder %s133, %s135
    %p142 = scmp.eq.s32.totalorder %s20, 1
    %p143 = por %p141, %p142
    %p144 = scmp.ne.s32.totalorder %s135, %s136
    %p145 = scmp.eq.s32.totalorder %s20, 0
    %p146 = por %p144, %p145
    %p147 = scmp.ne.s32.totalorder %s135, %s136
    %p148 = scmp.eq.s32.totalorder %s21, 1
    %p149 = por %p147, %p148
    %p151 = scmp.ne.s32.totalorder %s136, %s150
    %p152 = scmp.eq.s32.totalorder %s21, 0
    %p153 = por %p151, %p152
    %s155 = sadd.s32 %s154, 1
    %p158 = scmp.eq.s32.totalorder %s15, 1
    %p159 = scmp.ne.s32.totalorder %s154, %s156
    %p160 = scmp.eq.s32.totalorder %s15, 0
    %p161 = por %p159, %p160
    %p162 = scmp.ne.s32.totalorder %s154, %s156
    %p163 = scmp.eq.s32.totalorder %s20, 1
    %p164 = por %p162, %p163
    %p165 = scmp.ne.s32.totalorder %s156, %s157
    %p166 = scmp.eq.s32.totalorder %s20, 0
    %p167 = por %p165, %p166
    %p168 = scmp.ne.s32.totalorder %s156, %s157
    %p169 = scmp.eq.s32.totalorder %s21, 1
    %p170 = por %p168, %p169
    %p172 = scmp.ne.s32.totalorder %s157, %s171
    %p173 = scmp.eq.s32.totalorder %s21, 0
    %p174 = por %p172, %p173
    %s176 = sadd.s32 %s175, 1
    %p179 = scmp.eq.s32.totalorder %s15, 1
    %p180 = scmp.ne.s32.totalorder %s175, %s177
    %p181 = scmp.eq.s32.totalorder %s15, 0
    %p182 = por %p180, %p181
    %p183 = scmp.ne.s32.totalorder %s175, %s177
    %p184 = scmp.eq.s32.totalorder %s20, 1
    %p185 = por %p183, %p184
    %p186 = scmp.ne.s32.totalorder %s177, %s178
    %p187 = scmp.eq.s32.totalorder %s20, 0
    %p188 = por %p186, %p187
    %p189 = scmp.ne.s32.totalorder %s177, %s178
    %p190 = scmp.eq.s32.totalorder %s21, 1
    %p191 = por %p189, %p190
    %p193 = scmp.ne.s32.totalorder %s178, %s192
    %p194 = scmp.eq.s32.totalorder %s21, 0
    %p195 = por %p193, %p194
    %s197 = sadd.s32 %s196, 1
    %p200 = scmp.eq.s32.totalorder %s15, 1
    %p201 = scmp.ne.s32.totalorder %s196, %s198
    %p202 = scmp.eq.s32.totalorder %s15, 0
    %p203 = por %p201, %p202
    %p204 = scmp.ne.s32.totalorder %s196, %s198
    %p205 = scmp.eq.s32.totalorder %s20, 1
    %p206 = por %p204, %p205
    %p207 = scmp.ne.s32.totalorder %s198, %s199
    %p208 = scmp.eq.s32.totalorder %s20, 0
    %p209 = por %p207, %p208
    %p210 = scmp.ne.s32.totalorder %s198, %s199
    %p211 = scmp.eq.s32.totalorder %s21, 1
    %p212 = por %p210, %p211
    %p214 = scmp.ne.s32.totalorder %s199, %s213
    %p215 = scmp.eq.s32.totalorder %s21, 0
    %p216 = por %p214, %p215
    %s217 = ssub.s32 %s15, %s22
    %p218 = scmp.eq.s32.totalorder %s217, 0
    %s220 = sadd.s32 %s219, 1
    %s221 = scalar_select %p218, %s219, %s220
    %p224 = pneg %p218
    %p225 = scmp.eq.s32.totalorder %s15, 1
    %p226 = por %p224, %p225
    %p227 = scmp.ne.s32.totalorder %s219, %s222
    %p228 = scmp.eq.s32.totalorder %s15, 0
    %p229 = por %p227, %p228
    %p230 = scmp.ne.s32.totalorder %s219, %s222
    %p231 = scmp.eq.s32.totalorder %s20, 1
    %p232 = por %p230, %p231
    %p233 = scmp.ne.s32.totalorder %s222, %s223
    %p234 = scmp.eq.s32.totalorder %s20, 0
    %p235 = por %p233, %p234
    %p236 = scmp.ne.s32.totalorder %s222, %s223
    %p237 = scmp.eq.s32.totalorder %s21, 1
    %p238 = por %p236, %p237
    %p240 = scmp.ne.s32.totalorder %s223, %s239
    %p241 = scmp.eq.s32.totalorder %s21, 0
    %p242 = por %p240, %p241
    %p243 = scmp.le.s32.totalorder 1, %s15
    %p244 = scmp.lt.s32.totalorder %s15, 3
    %p245 = pnand %p243, %p244
    %p246 = pneg %p245
    // Predicated region
    $region9: #{double_conv_block_2d.1} parent=5 // pred_check
      _
    $region10: #{double_conv_block_2d.1} parent=5 // pred_check_branch
      %248 = sbr.rel (%p245) target = $region12
    $region11: #{double_conv_block_2d.1} parent=5 // pred_region
      %s249 = ssub.s32 %s15, 1
      // Predicated region
      $region13: #{double_conv_block_2d.1} parent=11 // pred_check
        %p250 = pneg %p62
      $region14: #{double_conv_block_2d.1} parent=11 // pred_check_branch
        %252 = sbr.rel (%p250) target = $region16
      $region15: #{double_conv_block_2d.1} parent=11 // pred_region
        _
      $region16: #{double_conv_block_2d.1} parent=11 // pred_fallthru
        _
      // Predicated region
      $region17: #{double_conv_block_2d.1} parent=11 // pred_check
        %p253 = pneg %p83
      $region18: #{double_conv_block_2d.1} parent=11 // pred_check_branch
        %255 = sbr.rel (%p253) target = $region20
      $region19: #{double_conv_block_2d.1} parent=11 // pred_region
        _
      $region20: #{double_conv_block_2d.1} parent=11 // pred_fallthru
        _
      // Predicated region
      $region21: #{double_conv_block_2d.1} parent=11 // pred_check
        %p256 = pneg %p104
      $region22: #{double_conv_block_2d.1} parent=11 // pred_check_branch
        %258 = sbr.rel (%p256) target = $region24
      $region23: #{double_conv_block_2d.1} parent=11 // pred_region
        _
      $region24: #{double_conv_block_2d.1} parent=11 // pred_fallthru
        _
      // Predicated region
      $region25: #{double_conv_block_2d.1} parent=11 // pred_check
        %p259 = pneg %p125
      $region26: #{double_conv_block_2d.1} parent=11 // pred_check_branch
        %261 = sbr.rel (%p259) target = $region28
      $region27: #{double_conv_block_2d.1} parent=11 // pred_region
        _
      $region28: #{double_conv_block_2d.1} parent=11 // pred_fallthru
        _
      // Predicated region
      $region29: #{double_conv_block_2d.1} parent=11 // pred_check
        %p262 = pneg %p146
      $region30: #{double_conv_block_2d.1} parent=11 // pred_check_branch
        %264 = sbr.rel (%p262) target = $region32
      $region31: #{double_conv_block_2d.1} parent=11 // pred_region
        _
      $region32: #{double_conv_block_2d.1} parent=11 // pred_fallthru
        _
      // Predicated region
      $region33: #{double_conv_block_2d.1} parent=11 // pred_check
        %p265 = pneg %p167
      $region34: #{double_conv_block_2d.1} parent=11 // pred_check_branch
        %267 = sbr.rel (%p265) target = $region36
      $region35: #{double_conv_block_2d.1} parent=11 // pred_region
        _
      $region36: #{double_conv_block_2d.1} parent=11 // pred_fallthru
        _
      // Predicated region
      $region37: #{double_conv_block_2d.1} parent=11 // pred_check
        %p268 = pneg %p188
      $region38: #{double_conv_block_2d.1} parent=11 // pred_check_branch
        %270 = sbr.rel (%p268) target = $region40
      $region39: #{double_conv_block_2d.1} parent=11 // pred_region
        _
      $region40: #{double_conv_block_2d.1} parent=11 // pred_fallthru
        _
      // Predicated region
      $region41: #{double_conv_block_2d.1} parent=11 // pred_check
        %p271 = pneg %p209
      $region42: #{double_conv_block_2d.1} parent=11 // pred_check_branch
        %273 = sbr.rel (%p271) target = $region44
      $region43: #{double_conv_block_2d.1} parent=11 // pred_region
        _
      $region44: #{double_conv_block_2d.1} parent=11 // pred_fallthru
        _
    $region12: #{double_conv_block_2d.1} parent=5 // pred_fallthru
      _
    %p274 = scmp.lt.s32.totalorder %s15, 2
    // Predicated region
    $region45: #{double_conv_block_2d.1} parent=5 // pred_check
      %p275 = pneg %p274
    $region46: #{double_conv_block_2d.1} parent=5 // pred_check_branch
      %277 = sbr.rel (%p275) target = $region48
    $region47: #{double_conv_block_2d.1} parent=5 // pred_region
      // Predicated region
      $region49: #{double_conv_block_2d.1} parent=47 // pred_check
        %p278 = pneg %p35
      $region50: #{double_conv_block_2d.1} parent=47 // pred_check_branch
        %280 = sbr.rel (%p278) target = $region52
      $region51: #{double_conv_block_2d.1} parent=47 // pred_region
        %p281 = scmp.lt.s32.totalorder %s15, 1
        %s282 = scalar_select %p281, %s15, 1
        %s283 = smul.addr %s282, 12
        %s284 = smul.addr %s283, 8
        %s285 = scalar_lea.vmem %s0, %s284
      $region52: #{double_conv_block_2d.1} parent=47 // pred_fallthru
        _
    $region48: #{double_conv_block_2d.1} parent=5 // pred_fallthru
      _
    %p286 = scmp.le.s32.totalorder 1, %s15
    %p287 = scmp.lt.s32.totalorder %s15, 3
    %p288 = pnand %p286, %p287
    %p289 = pneg %p288
    // Predicated region
    $region53: #{double_conv_block_2d.1} parent=5 // pred_check
      _
    $region54: #{double_conv_block_2d.1} parent=5 // pred_check_branch
      %291 = sbr.rel (%p288) target = $region56
    $region55: #{double_conv_block_2d.1} parent=5 // pred_region
      %s292 = ssub.s32 %s15, 1
      %p293 = scmp.lt.s32.totalorder %s20, 1
      %s294 = scalar_select %p293, %s20, 1
      %s295 = smul.addr %s294, 12
      %s296 = smul.addr %s295, 8
      %s297 = scalar_lea.vmem %s0, %s296
      %p298 = pneg %p41
      %p299 = pneg %p38
      %p300 = pneg %p62
      %p301 = pneg %p59
      %p302 = pneg %p83
      %p303 = pneg %p80
      %p304 = pneg %p104
      %p305 = pneg %p101
      %p306 = pneg %p125
      %p307 = pneg %p122
      %p308 = pneg %p146
      %p309 = pneg %p143
      %p310 = pneg %p167
      %p311 = pneg %p164
      %p312 = pneg %p188
      %p313 = pneg %p185
      %p314 = pneg %p209
      %p315 = pneg %p206
      %p316 = pneg %p235
      %p317 = pneg %p232
      %p318 = scmp.lt.s32.totalorder %s20, 1
      %s319 = scalar_select %p318, %s20, 1
      %s320 = smul.addr %s319, 2
      %s321 = smul.addr %s320, 8
      %s322 = scalar_lea.vmem %s9, %s321
      %p323 = scmp.lt.s32.totalorder %s20, 1
      %s324 = scalar_select %p323, %s20, 1
      %s325 = smul.addr %s324, 12
      %s326 = smul.addr %s325, 8
      %s327 = scalar_lea.vmem %s0, %s326
      %p328 = scmp.lt.s32.totalorder %s20, 1
      %s329 = scalar_select %p328, %s20, 1
      %s330 = smul.addr %s329, 2
      %s331 = smul.addr %s330, 8
      %s332 = scalar_lea.vmem %s9, %s331
      %v333 = vld [vmem:[%s327] sm:$0xff]
      %v334 = vld [vmem:[%s327 + $0x8] sm:$0xff]
      %v335 = vld [vmem:[%s327 + $0x10] sm:$0x3]
      %v336 = vld [vmem:[%s327 + $0x18] sm:$0xff]
      %v337 = vld [vmem:[%s327 + $0x20] sm:$0xff]
      %v338 = vld [vmem:[%s327 + $0x28] sm:$0x3]
      %v339 = vld [vmem:[%s327 + $0x30] sm:$0xff]
      %v340 = vld [vmem:[%s327 + $0x38] sm:$0xff]
      %v341 = vld [vmem:[%s327 + $0x40] sm:$0x3]
      %v342 = vld [vmem:[%s327 + $0x48] sm:$0xff]
      %v343 = vld [vmem:[%s327 + $0x50] sm:$0xff]
      %v344 = vld [vmem:[%s327 + $0x58] sm:$0x3]
      %v345 = vcombine.low %v333, %v339
      %v346 = vcombine.high %v333, %v339
      %v348 = vunpack.c.l.s4 1983009808
      %v349 = vunpack.c.0.s8 %v348
      %v350 = vlaneseq
      %v351 = vshrl.u32 %v350, 7
      %v352 = vsub.s32 %v349, %v351
      %v353 = vrot.slane %v345, %v352
      %v355 = vunpack.c.l.s4 1983009808
      %v356 = vunpack.c.0.s8 %v355
      %v357 = vlaneseq
      %v358 = vshrl.u32 %v357, 7
      %v359 = vsub.s32 %v356, %v358
      %v360 = vrot.slane %v346, %v359
      %v361 = vcombine.low %v336, %v342
      %v362 = vcombine.high %v336, %v342
      %v364 = vunpack.c.l.s4 1983009808
      %v365 = vunpack.c.0.s8 %v364
      %v366 = vlaneseq
      %v367 = vshrl.u32 %v366, 7
      %v368 = vsub.s32 %v365, %v367
      %v369 = vrot.slane %v361, %v368
      %v371 = vunpack.c.l.s4 1983009808
      %v372 = vunpack.c.0.s8 %v371
      %v373 = vlaneseq
      %v374 = vshrl.u32 %v373, 7
      %v375 = vsub.s32 %v372, %v374
      %v376 = vrot.slane %v362, %v375
      %v377 = vcombine.low %v353, %v369
      %v378 = vcombine.high %v353, %v369
      %v380 = vunpack.c.l.s4 1934713408
      %v381 = vunpack.c.0.s8 %v380
      %v382 = vlaneseq
      %v383 = vshrl.u32 %v382, 7
      %v384 = vsub.s32 %v381, %v383
      %v385 = vrot.slane %v377, %v384
      %v387 = vunpack.c.l.s4 1934713408
      %v388 = vunpack.c.0.s8 %v387
      %v389 = vlaneseq
      %v390 = vshrl.u32 %v389, 7
      %v391 = vsub.s32 %v388, %v390
      %v392 = vrot.slane %v378, %v391
      %v393 = vcombine.low %v360, %v376
      %v394 = vcombine.high %v360, %v376
      %v396 = vunpack.c.l.s4 1934713408
      %v397 = vunpack.c.0.s8 %v396
      %v398 = vlaneseq
      %v399 = vshrl.u32 %v398, 7
      %v400 = vsub.s32 %v397, %v399
      %v401 = vrot.slane %v393, %v400
      %v403 = vunpack.c.l.s4 1934713408
      %v404 = vunpack.c.0.s8 %v403
      %v405 = vlaneseq
      %v406 = vshrl.u32 %v405, 7
      %v407 = vsub.s32 %v404, %v406
      %v408 = vrot.slane %v394, %v407
      %v409 = vcombine.high %v385, 0.0
      %v410 = vcombine.high %v392, 0.0
      %v411 = vcombine.high %v401, 0.0
      %v412 = vcombine.high %v408, 0.0
      %v413 = vcombine.low %v334, %v340
      %v414 = vcombine.high %v334, %v340
      %v416 = vunpack.c.l.s4 1983009808
      %v417 = vunpack.c.0.s8 %v416
      %v418 = vlaneseq
      %v419 = vshrl.u32 %v418, 7
      %v420 = vsub.s32 %v417, %v419
      %v421 = vrot.slane %v413, %v420
      %v423 = vunpack.c.l.s4 1983009808
      %v424 = vunpack.c.0.s8 %v423
      %v425 = vlaneseq
      %v426 = vshrl.u32 %v425, 7
      %v427 = vsub.s32 %v424, %v426
      %v428 = vrot.slane %v414, %v427
      %v429 = vcombine.low %v337, %v343
      %v430 = vcombine.high %v337, %v343
      %v432 = vunpack.c.l.s4 1983009808
      %v433 = vunpack.c.0.s8 %v432
      %v434 = vlaneseq
      %v435 = vshrl.u32 %v434, 7
      %v436 = vsub.s32 %v433, %v435
      %v437 = vrot.slane %v429, %v436
      %v439 = vunpack.c.l.s4 1983009808
      %v440 = vunpack.c.0.s8 %v439
      %v441 = vlaneseq
      %v442 = vshrl.u32 %v441, 7
      %v443 = vsub.s32 %v440, %v442
      %v444 = vrot.slane %v430, %v443
      %v445 = vcombine.low %v421, %v437
      %v446 = vcombine.high %v421, %v437
      %v448 = vunpack.c.l.s4 1934713408
      %v449 = vunpack.c.0.s8 %v448
      %v450 = vlaneseq
      %v451 = vshrl.u32 %v450, 7
      %v452 = vsub.s32 %v449, %v451
      %v453 = vrot.slane %v445, %v452
      %v455 = vunpack.c.l.s4 1934713408
      %v456 = vunpack.c.0.s8 %v455
      %v457 = vlaneseq
      %v458 = vshrl.u32 %v457, 7
      %v459 = vsub.s32 %v456, %v458
      %v460 = vrot.slane %v446, %v459
      %v461 = vcombine.low %v428, %v444
      %v462 = vcombine.high %v428, %v444
      %v464 = vunpack.c.l.s4 1934713408
      %v465 = vunpack.c.0.s8 %v464
      %v466 = vlaneseq
      %v467 = vshrl.u32 %v466, 7
      %v468 = vsub.s32 %v465, %v467
      %v469 = vrot.slane %v461, %v468
      %v471 = vunpack.c.l.s4 1934713408
      %v472 = vunpack.c.0.s8 %v471
      %v473 = vlaneseq
      %v474 = vshrl.u32 %v473, 7
      %v475 = vsub.s32 %v472, %v474
      %v476 = vrot.slane %v462, %v475
      %v477 = vcombine.high %v453, 0.0
      %v478 = vcombine.high %v460, 0.0
      %v479 = vcombine.high %v469, 0.0
      %v480 = vcombine.high %v476, 0.0
      %482 = vrot.lane.b32.xlu0 %v409, 16
      %v483 = vpop.permute.xlu0 %482
      %486 = vrot.lane.b32.xlu0 %v392, 32
      %v487 = vpop.permute.xlu0 %486
      %490 = vrot.lane.b32.xlu0 %v410, 48
      %v491 = vpop.permute.xlu0 %490
      %494 = vrot.lane.b32.xlu0 %v401, 64
      %v495 = vpop.permute.xlu0 %494
      %498 = vrot.lane.b32.xlu0 %v411, 80
      %v499 = vpop.permute.xlu0 %498
      %502 = vrot.lane.b32.xlu0 %v408, 96
      %v503 = vpop.permute.xlu0 %502
      %506 = vrot.lane.b32.xlu0 %v412, 112
      %v507 = vpop.permute.xlu0 %506
      %510 = vrot.lane.b32.xlu0 %v477, 16
      %v511 = vpop.permute.xlu0 %510
      %514 = vrot.lane.b32.xlu0 %v460, 32
      %v515 = vpop.permute.xlu0 %514
      %518 = vrot.lane.b32.xlu0 %v478, 48
      %v519 = vpop.permute.xlu0 %518
      %522 = vrot.lane.b32.xlu0 %v469, 64
      %v523 = vpop.permute.xlu0 %522
      %526 = vrot.lane.b32.xlu0 %v479, 80
      %v527 = vpop.permute.xlu0 %526
      %530 = vrot.lane.b32.xlu0 %v476, 96
      %v531 = vpop.permute.xlu0 %530
      %534 = vrot.lane.b32.xlu0 %v480, 112
      %v535 = vpop.permute.xlu0 %534
      %vm537 = vcmask 130048
      %v538 = vsel %vm537, %v385, %v483
      %vm539 = vcmask 261120
      %v540 = vsel %vm539, %v538, %v487
      %vm541 = vcmask 392192
      %v542 = vsel %vm541, %v540, %v491
      %vm543 = vcmask 523264
      %v544 = vsel %vm543, %v542, %v495
      %vm545 = vcmask 654336
      %v546 = vsel %vm545, %v544, %v499
      %vm547 = vcmask 785408
      %v548 = vsel %vm547, %v546, %v503
      %vm549 = vcmask 916480
      %v550 = vsel %vm549, %v548, %v507
      %v551 = vsel %vm537, %v453, %v511
      %v552 = vsel %vm539, %v551, %v515
      %v553 = vsel %vm541, %v552, %v519
      %v554 = vsel %vm543, %v553, %v523
      %v555 = vsel %vm545, %v554, %v527
      %v556 = vsel %vm547, %v555, %v531
      %v557 = vsel %vm549, %v556, %v535
      %566 = vrot.lane.b32.xlu0 %v333, 127
      %v567 = vpop.permute.xlu0 %566
      %568 = vrot.lane.b32.xlu0 %v334, 127
      %v569 = vpop.permute.xlu0 %568
      %570 = vrot.lane.b32.xlu0 %v336, 127
      %v571 = vpop.permute.xlu0 %570
      %572 = vrot.lane.b32.xlu0 %v337, 127
      %v573 = vpop.permute.xlu0 %572
      %574 = vrot.lane.b32.xlu0 %v339, 127
      %v575 = vpop.permute.xlu0 %574
      %576 = vrot.lane.b32.xlu0 %v340, 127
      %v577 = vpop.permute.xlu0 %576
      %578 = vrot.lane.b32.xlu0 %v342, 127
      %v579 = vpop.permute.xlu0 %578
      %580 = vrot.lane.b32.xlu0 %v343, 127
      %v581 = vpop.permute.xlu0 %580
      %v590 = vcombine.low %v567, %v575
      %v591 = vcombine.high %v567, %v575
      %v593 = vunpack.c.l.s4 1983009808
      %v594 = vunpack.c.0.s8 %v593
      %v595 = vlaneseq
      %v596 = vshrl.u32 %v595, 7
      %v597 = vsub.s32 %v594, %v596
      %v598 = vrot.slane %v590, %v597
      %v600 = vunpack.c.l.s4 1983009808
      %v601 = vunpack.c.0.s8 %v600
      %v602 = vlaneseq
      %v603 = vshrl.u32 %v602, 7
      %v604 = vsub.s32 %v601, %v603
      %v605 = vrot.slane %v591, %v604
      %v606 = vcombine.low %v571, %v579
      %v607 = vcombine.high %v571, %v579
      %v609 = vunpack.c.l.s4 1983009808
      %v610 = vunpack.c.0.s8 %v609
      %v611 = vlaneseq
      %v612 = vshrl.u32 %v611, 7
      %v613 = vsub.s32 %v610, %v612
      %v614 = vrot.slane %v606, %v613
      %v616 = vunpack.c.l.s4 1983009808
      %v617 = vunpack.c.0.s8 %v616
      %v618 = vlaneseq
      %v619 = vshrl.u32 %v618, 7
      %v620 = vsub.s32 %v617, %v619
      %v621 = vrot.slane %v607, %v620
      %v622 = vcombine.low %v598, %v614
      %v623 = vcombine.high %v598, %v614
      %v625 = vunpack.c.l.s4 1934713408
      %v626 = vunpack.c.0.s8 %v625
      %v627 = vlaneseq
      %v628 = vshrl.u32 %v627, 7
      %v629 = vsub.s32 %v626, %v628
      %v630 = vrot.slane %v622, %v629
      %v632 = vunpack.c.l.s4 1934713408
      %v633 = vunpack.c.0.s8 %v632
      %v634 = vlaneseq
      %v635 = vshrl.u32 %v634, 7
      %v636 = vsub.s32 %v633, %v635
      %v637 = vrot.slane %v623, %v636
      %v638 = vcombine.low %v605, %v621
      %v639 = vcombine.high %v605, %v621
      %v641 = vunpack.c.l.s4 1934713408
      %v642 = vunpack.c.0.s8 %v641
      %v643 = vlaneseq
      %v644 = vshrl.u32 %v643, 7
      %v645 = vsub.s32 %v642, %v644
      %v646 = vrot.slane %v638, %v645
      %v648 = vunpack.c.l.s4 1934713408
      %v649 = vunpack.c.0.s8 %v648
      %v650 = vlaneseq
      %v651 = vshrl.u32 %v650, 7
      %v652 = vsub.s32 %v649, %v651
      %v653 = vrot.slane %v639, %v652
      %v654 = vcombine.high %v630, 0.0
      %v655 = vcombine.high %v637, 0.0
      %v656 = vcombine.high %v646, 0.0
      %v657 = vcombine.high %v653, 0.0
      %v658 = vcombine.low %v569, %v577
      %v659 = vcombine.high %v569, %v577
      %v661 = vunpack.c.l.s4 1983009808
      %v662 = vunpack.c.0.s8 %v661
      %v663 = vlaneseq
      %v664 = vshrl.u32 %v663, 7
      %v665 = vsub.s32 %v662, %v664
      %v666 = vrot.slane %v658, %v665
      %v668 = vunpack.c.l.s4 1983009808
      %v669 = vunpack.c.0.s8 %v668
      %v670 = vlaneseq
      %v671 = vshrl.u32 %v670, 7
      %v672 = vsub.s32 %v669, %v671
      %v673 = vrot.slane %v659, %v672
      %v674 = vcombine.low %v573, %v581
      %v675 = vcombine.high %v573, %v581
      %v677 = vunpack.c.l.s4 1983009808
      %v678 = vunpack.c.0.s8 %v677
      %v679 = vlaneseq
      %v680 = vshrl.u32 %v679, 7
      %v681 = vsub.s32 %v678, %v680
      %v682 = vrot.slane %v674, %v681
      %v684 = vunpack.c.l.s4 1983009808
      %v685 = vunpack.c.0.s8 %v684
      %v686 = vlaneseq
      %v687 = vshrl.u32 %v686, 7
      %v688 = vsub.s32 %v685, %v687
      %v689 = vrot.slane %v675, %v688
      %v690 = vcombine.low %v666, %v682
      %v691 = vcombine.high %v666, %v682
      %v693 = vunpack.c.l.s4 1934713408
      %v694 = vunpack.c.0.s8 %v693
      %v695 = vlaneseq
      %v696 = vshrl.u32 %v695, 7
      %v697 = vsub.s32 %v694, %v696
      %v698 = vrot.slane %v690, %v697
      %v700 = vunpack.c.l.s4 1934713408
      %v701 = vunpack.c.0.s8 %v700
      %v702 = vlaneseq
      %v703 = vshrl.u32 %v702, 7
      %v704 = vsub.s32 %v701, %v703
      %v705 = vrot.slane %v691, %v704
      %v706 = vcombine.low %v673, %v689
      %v707 = vcombine.high %v673, %v689
      %v709 = vunpack.c.l.s4 1934713408
      %v710 = vunpack.c.0.s8 %v709
      %v711 = vlaneseq
      %v712 = vshrl.u32 %v711, 7
      %v713 = vsub.s32 %v710, %v712
      %v714 = vrot.slane %v706, %v713
      %v716 = vunpack.c.l.s4 1934713408
      %v717 = vunpack.c.0.s8 %v716
      %v718 = vlaneseq
      %v719 = vshrl.u32 %v718, 7
      %v720 = vsub.s32 %v717, %v719
      %v721 = vrot.slane %v707, %v720
      %v722 = vcombine.high %v698, 0.0
      %v723 = vcombine.high %v705, 0.0
      %v724 = vcombine.high %v714, 0.0
      %v725 = vcombine.high %v721, 0.0
      %727 = vrot.lane.b32.xlu0 %v654, 16
      %v728 = vpop.permute.xlu0 %727
      %731 = vrot.lane.b32.xlu0 %v637, 32
      %v732 = vpop.permute.xlu0 %731
      %735 = vrot.lane.b32.xlu0 %v655, 48
      %v736 = vpop.permute.xlu0 %735
      %739 = vrot.lane.b32.xlu0 %v646, 64
      %v740 = vpop.permute.xlu0 %739
      %743 = vrot.lane.b32.xlu0 %v656, 80
      %v744 = vpop.permute.xlu0 %743
      %747 = vrot.lane.b32.xlu0 %v653, 96
      %v748 = vpop.permute.xlu0 %747
      %751 = vrot.lane.b32.xlu0 %v657, 112
      %v752 = vpop.permute.xlu0 %751
      %755 = vrot.lane.b32.xlu0 %v722, 16
      %v756 = vpop.permute.xlu0 %755
      %759 = vrot.lane.b32.xlu0 %v705, 32
      %v760 = vpop.permute.xlu0 %759
      %763 = vrot.lane.b32.xlu0 %v723, 48
      %v764 = vpop.permute.xlu0 %763
      %767 = vrot.lane.b32.xlu0 %v714, 64
      %v768 = vpop.permute.xlu0 %767
      %771 = vrot.lane.b32.xlu0 %v724, 80
      %v772 = vpop.permute.xlu0 %771
      %775 = vrot.lane.b32.xlu0 %v721, 96
      %v776 = vpop.permute.xlu0 %775
      %779 = vrot.lane.b32.xlu0 %v725, 112
      %v780 = vpop.permute.xlu0 %779
      %v782 = vsel %vm537, %v630, %v728
      %v783 = vsel %vm539, %v782, %v732
      %v784 = vsel %vm541, %v783, %v736
      %v785 = vsel %vm543, %v784, %v740
      %v786 = vsel %vm545, %v785, %v744
      %v787 = vsel %vm547, %v786, %v748
      %v788 = vsel %vm549, %v787, %v752
      %v789 = vsel %vm537, %v698, %v756
      %v790 = vsel %vm539, %v789, %v760
      %v791 = vsel %vm541, %v790, %v764
      %v792 = vsel %vm543, %v791, %v768
      %v793 = vsel %vm545, %v792, %v772
      %v794 = vsel %vm547, %v793, %v776
      %v795 = vsel %vm549, %v794, %v780
      %796 = vrot.lane.b32.xlu0 %v333, 126
      %v797 = vpop.permute.xlu0 %796
      %798 = vrot.lane.b32.xlu0 %v334, 126
      %v799 = vpop.permute.xlu0 %798
      %800 = vrot.lane.b32.xlu0 %v336, 126
      %v801 = vpop.permute.xlu0 %800
      %802 = vrot.lane.b32.xlu0 %v337, 126
      %v803 = vpop.permute.xlu0 %802
      %804 = vrot.lane.b32.xlu0 %v339, 126
      %v805 = vpop.permute.xlu0 %804
      %806 = vrot.lane.b32.xlu0 %v340, 126
      %v807 = vpop.permute.xlu0 %806
      %808 = vrot.lane.b32.xlu0 %v342, 126
      %v809 = vpop.permute.xlu0 %808
      %810 = vrot.lane.b32.xlu0 %v343, 126
      %v811 = vpop.permute.xlu0 %810
      %v820 = vcombine.low %v797, %v805
      %v821 = vcombine.high %v797, %v805
      %v823 = vunpack.c.l.s4 1983009808
      %v824 = vunpack.c.0.s8 %v823
      %v825 = vlaneseq
      %v826 = vshrl.u32 %v825, 7
      %v827 = vsub.s32 %v824, %v826
      %v828 = vrot.slane %v820, %v827
      %v830 = vunpack.c.l.s4 1983009808
      %v831 = vunpack.c.0.s8 %v830
      %v832 = vlaneseq
      %v833 = vshrl.u32 %v832, 7
      %v834 = vsub.s32 %v831, %v833
      %v835 = vrot.slane %v821, %v834
      %v836 = vcombine.low %v801, %v809
      %v837 = vcombine.high %v801, %v809
      %v839 = vunpack.c.l.s4 1983009808
      %v840 = vunpack.c.0.s8 %v839
      %v841 = vlaneseq
      %v842 = vshrl.u32 %v841, 7
      %v843 = vsub.s32 %v840, %v842
      %v844 = vrot.slane %v836, %v843
      %v846 = vunpack.c.l.s4 1983009808
      %v847 = vunpack.c.0.s8 %v846
      %v848 = vlaneseq
      %v849 = vshrl.u32 %v848, 7
      %v850 = vsub.s32 %v847, %v849
      %v851 = vrot.slane %v837, %v850
      %v852 = vcombine.low %v828, %v844
      %v853 = vcombine.high %v828, %v844
      %v855 = vunpack.c.l.s4 1934713408
      %v856 = vunpack.c.0.s8 %v855
      %v857 = vlaneseq
      %v858 = vshrl.u32 %v857, 7
      %v859 = vsub.s32 %v856, %v858
      %v860 = vrot.slane %v852, %v859
      %v862 = vunpack.c.l.s4 1934713408
      %v863 = vunpack.c.0.s8 %v862
      %v864 = vlaneseq
      %v865 = vshrl.u32 %v864, 7
      %v866 = vsub.s32 %v863, %v865
      %v867 = vrot.slane %v853, %v866
      %v868 = vcombine.low %v835, %v851
      %v869 = vcombine.high %v835, %v851
      %v871 = vunpack.c.l.s4 1934713408
      %v872 = vunpack.c.0.s8 %v871
      %v873 = vlaneseq
      %v874 = vshrl.u32 %v873, 7
      %v875 = vsub.s32 %v872, %v874
      %v876 = vrot.slane %v868, %v875
      %v878 = vunpack.c.l.s4 1934713408
      %v879 = vunpack.c.0.s8 %v878
      %v880 = vlaneseq
      %v881 = vshrl.u32 %v880, 7
      %v882 = vsub.s32 %v879, %v881
      %v883 = vrot.slane %v869, %v882
      %v884 = vcombine.high %v860, 0.0
      %v885 = vcombine.high %v867, 0.0
      %v886 = vcombine.high %v876, 0.0
      %v887 = vcombine.high %v883, 0.0
      %v888 = vcombine.low %v799, %v807
      %v889 = vcombine.high %v799, %v807
      %v891 = vunpack.c.l.s4 1983009808
      %v892 = vunpack.c.0.s8 %v891
      %v893 = vlaneseq
      %v894 = vshrl.u32 %v893, 7
      %v895 = vsub.s32 %v892, %v894
      %v896 = vrot.slane %v888, %v895
      %v898 = vunpack.c.l.s4 1983009808
      %v899 = vunpack.c.0.s8 %v898
      %v900 = vlaneseq
      %v901 = vshrl.u32 %v900, 7
      %v902 = vsub.s32 %v899, %v901
      %v903 = vrot.slane %v889, %v902
      %v904 = vcombine.low %v803, %v811
      %v905 = vcombine.high %v803, %v811
      %v907 = vunpack.c.l.s4 1983009808
      %v908 = vunpack.c.0.s8 %v907
      %v909 = vlaneseq
      %v910 = vshrl.u32 %v909, 7
      %v911 = vsub.s32 %v908, %v910
      %v912 = vrot.slane %v904, %v911
      %v914 = vunpack.c.l.s4 1983009808
      %v915 = vunpack.c.0.s8 %v914
      %v916 = vlaneseq
      %v917 = vshrl.u32 %v916, 7
      %v918 = vsub.s32 %v915, %v917
      %v919 = vrot.slane %v905, %v918
      %v920 = vcombine.low %v896, %v912
      %v921 = vcombine.high %v896, %v912
      %v923 = vunpack.c.l.s4 1934713408
      %v924 = vunpack.c.0.s8 %v923
      %v925 = vlaneseq
      %v926 = vshrl.u32 %v925, 7
      %v927 = vsub.s32 %v924, %v926
      %v928 = vrot.slane %v920, %v927
      %v930 = vunpack.c.l.s4 1934713408
      %v931 = vunpack.c.0.s8 %v930
      %v932 = vlaneseq
      %v933 = vshrl.u32 %v932, 7
      %v934 = vsub.s32 %v931, %v933
      %v935 = vrot.slane %v921, %v934
      %v936 = vcombine.low %v903, %v919
      %v937 = vcombine.high %v903, %v919
      %v939 = vunpack.c.l.s4 1934713408
      %v940 = vunpack.c.0.s8 %v939
      %v941 = vlaneseq
      %v942 = vshrl.u32 %v941, 7
      %v943 = vsub.s32 %v940, %v942
      %v944 = vrot.slane %v936, %v943
      %v946 = vunpack.c.l.s4 1934713408
      %v947 = vunpack.c.0.s8 %v946
      %v948 = vlaneseq
      %v949 = vshrl.u32 %v948, 7
      %v950 = vsub.s32 %v947, %v949
      %v951 = vrot.slane %v937, %v950
      %v952 = vcombine.high %v928, 0.0
      %v953 = vcombine.high %v935, 0.0
      %v954 = vcombine.high %v944, 0.0
      %v955 = vcombine.high %v951, 0.0
      %957 = vrot.lane.b32.xlu0 %v884, 16
      %v958 = vpop.permute.xlu0 %957
      %961 = vrot.lane.b32.xlu0 %v867, 32
      %v962 = vpop.permute.xlu0 %961
      %965 = vrot.lane.b32.xlu0 %v885, 48
      %v966 = vpop.permute.xlu0 %965
      %969 = vrot.lane.b32.xlu0 %v876, 64
      %v970 = vpop.permute.xlu0 %969
      %973 = vrot.lane.b32.xlu0 %v886, 80
      %v974 = vpop.permute.xlu0 %973
      %977 = vrot.lane.b32.xlu0 %v883, 96
      %v978 = vpop.permute.xlu0 %977
      %981 = vrot.lane.b32.xlu0 %v887, 112
      %v982 = vpop.permute.xlu0 %981
      %985 = vrot.lane.b32.xlu0 %v952, 16
      %v986 = vpop.permute.xlu0 %985
      %989 = vrot.lane.b32.xlu0 %v935, 32
      %v990 = vpop.permute.xlu0 %989
      %993 = vrot.lane.b32.xlu0 %v953, 48
      %v994 = vpop.permute.xlu0 %993
      %997 = vrot.lane.b32.xlu0 %v944, 64
      %v998 = vpop.permute.xlu0 %997
      %1001 = vrot.lane.b32.xlu0 %v954, 80
      %v1002 = vpop.permute.xlu0 %1001
      %1005 = vrot.lane.b32.xlu0 %v951, 96
      %v1006 = vpop.permute.xlu0 %1005
      %1009 = vrot.lane.b32.xlu0 %v955, 112
      %v1010 = vpop.permute.xlu0 %1009
      %v1012 = vsel %vm537, %v860, %v958
      %v1013 = vsel %vm539, %v1012, %v962
      %v1014 = vsel %vm541, %v1013, %v966
      %v1015 = vsel %vm543, %v1014, %v970
      %v1016 = vsel %vm545, %v1015, %v974
      %v1017 = vsel %vm547, %v1016, %v978
      %v1018 = vsel %vm549, %v1017, %v982
      %v1019 = vsel %vm537, %v928, %v986
      %v1020 = vsel %vm539, %v1019, %v990
      %v1021 = vsel %vm541, %v1020, %v994
      %v1022 = vsel %vm543, %v1021, %v998
      %v1023 = vsel %vm545, %v1022, %v1002
      %v1024 = vsel %vm547, %v1023, %v1006
      %v1025 = vsel %vm549, %v1024, %v1010
      %vm1030 = vcmask 1046528
      %v1031 = vrot.slane %v333, 1
      %v1032 = vrot.slane %v334, 1
      %v1033 = vsel %vm1030, %v1031, %v1032
      %v1034 = vrot.slane %v335, 1
      %v1035 = vsel %vm1030, %v1032, %v1034
      %v1036 = vrot.slane %v336, 1
      %v1037 = vrot.slane %v337, 1
      %v1038 = vsel %vm1030, %v1036, %v1037
      %v1039 = vrot.slane %v338, 1
      %v1040 = vsel %vm1030, %v1037, %v1039
      %v1041 = vrot.slane %v339, 1
      %v1042 = vrot.slane %v340, 1
      %v1043 = vsel %vm1030, %v1041, %v1042
      %v1044 = vrot.slane %v341, 1
      %v1045 = vsel %vm1030, %v1042, %v1044
      %v1046 = vrot.slane %v342, 1
      %v1047 = vrot.slane %v343, 1
      %v1048 = vsel %vm1030, %v1046, %v1047
      %v1049 = vrot.slane %v344, 1
      %v1050 = vsel %vm1030, %v1047, %v1049
      %v1059 = vcombine.low %v1033, %v1043
      %v1060 = vcombine.high %v1033, %v1043
      %v1062 = vunpack.c.l.s4 1983009808
      %v1063 = vunpack.c.0.s8 %v1062
      %v1064 = vlaneseq
      %v1065 = vshrl.u32 %v1064, 7
      %v1066 = vsub.s32 %v1063, %v1065
      %v1067 = vrot.slane %v1059, %v1066
      %v1069 = vunpack.c.l.s4 1983009808
      %v1070 = vunpack.c.0.s8 %v1069
      %v1071 = vlaneseq
      %v1072 = vshrl.u32 %v1071, 7
      %v1073 = vsub.s32 %v1070, %v1072
      %v1074 = vrot.slane %v1060, %v1073
      %v1075 = vcombine.low %v1038, %v1048
      %v1076 = vcombine.high %v1038, %v1048
      %v1078 = vunpack.c.l.s4 1983009808
      %v1079 = vunpack.c.0.s8 %v1078
      %v1080 = vlaneseq
      %v1081 = vshrl.u32 %v1080, 7
      %v1082 = vsub.s32 %v1079, %v1081
      %v1083 = vrot.slane %v1075, %v1082
      %v1085 = vunpack.c.l.s4 1983009808
      %v1086 = vunpack.c.0.s8 %v1085
      %v1087 = vlaneseq
      %v1088 = vshrl.u32 %v1087, 7
      %v1089 = vsub.s32 %v1086, %v1088
      %v1090 = vrot.slane %v1076, %v1089
      %v1091 = vcombine.low %v1067, %v1083
      %v1092 = vcombine.high %v1067, %v1083
      %v1094 = vunpack.c.l.s4 1934713408
      %v1095 = vunpack.c.0.s8 %v1094
      %v1096 = vlaneseq
      %v1097 = vshrl.u32 %v1096, 7
      %v1098 = vsub.s32 %v1095, %v1097
      %v1099 = vrot.slane %v1091, %v1098
      %v1101 = vunpack.c.l.s4 1934713408
      %v1102 = vunpack.c.0.s8 %v1101
      %v1103 = vlaneseq
      %v1104 = vshrl.u32 %v1103, 7
      %v1105 = vsub.s32 %v1102, %v1104
      %v1106 = vrot.slane %v1092, %v1105
      %v1107 = vcombine.low %v1074, %v1090
      %v1108 = vcombine.high %v1074, %v1090
      %v1110 = vunpack.c.l.s4 1934713408
      %v1111 = vunpack.c.0.s8 %v1110
      %v1112 = vlaneseq
      %v1113 = vshrl.u32 %v1112, 7
      %v1114 = vsub.s32 %v1111, %v1113
      %v1115 = vrot.slane %v1107, %v1114
      %v1117 = vunpack.c.l.s4 1934713408
      %v1118 = vunpack.c.0.s8 %v1117
      %v1119 = vlaneseq
      %v1120 = vshrl.u32 %v1119, 7
      %v1121 = vsub.s32 %v1118, %v1120
      %v1122 = vrot.slane %v1108, %v1121
      %v1123 = vcombine.high %v1099, 0.0
      %v1124 = vcombine.high %v1106, 0.0
      %v1125 = vcombine.high %v1115, 0.0
      %v1126 = vcombine.high %v1122, 0.0
      %v1127 = vcombine.low %v1035, %v1045
      %v1128 = vcombine.high %v1035, %v1045
      %v1130 = vunpack.c.l.s4 1983009808
      %v1131 = vunpack.c.0.s8 %v1130
      %v1132 = vlaneseq
      %v1133 = vshrl.u32 %v1132, 7
      %v1134 = vsub.s32 %v1131, %v1133
      %v1135 = vrot.slane %v1127, %v1134
      %v1137 = vunpack.c.l.s4 1983009808
      %v1138 = vunpack.c.0.s8 %v1137
      %v1139 = vlaneseq
      %v1140 = vshrl.u32 %v1139, 7
      %v1141 = vsub.s32 %v1138, %v1140
      %v1142 = vrot.slane %v1128, %v1141
      %v1143 = vcombine.low %v1040, %v1050
      %v1144 = vcombine.high %v1040, %v1050
      %v1146 = vunpack.c.l.s4 1983009808
      %v1147 = vunpack.c.0.s8 %v1146
      %v1148 = vlaneseq
      %v1149 = vshrl.u32 %v1148, 7
      %v1150 = vsub.s32 %v1147, %v1149
      %v1151 = vrot.slane %v1143, %v1150
      %v1153 = vunpack.c.l.s4 1983009808
      %v1154 = vunpack.c.0.s8 %v1153
      %v1155 = vlaneseq
      %v1156 = vshrl.u32 %v1155, 7
      %v1157 = vsub.s32 %v1154, %v1156
      %v1158 = vrot.slane %v1144, %v1157
      %v1159 = vcombine.low %v1135, %v1151
      %v1160 = vcombine.high %v1135, %v1151
      %v1162 = vunpack.c.l.s4 1934713408
      %v1163 = vunpack.c.0.s8 %v1162
      %v1164 = vlaneseq
      %v1165 = vshrl.u32 %v1164, 7
      %v1166 = vsub.s32 %v1163, %v1165
      %v1167 = vrot.slane %v1159, %v1166
      %v1169 = vunpack.c.l.s4 1934713408
      %v1170 = vunpack.c.0.s8 %v1169
      %v1171 = vlaneseq
      %v1172 = vshrl.u32 %v1171, 7
      %v1173 = vsub.s32 %v1170, %v1172
      %v1174 = vrot.slane %v1160, %v1173
      %v1175 = vcombine.low %v1142, %v1158
      %v1176 = vcombine.high %v1142, %v1158
      %v1178 = vunpack.c.l.s4 1934713408
      %v1179 = vunpack.c.0.s8 %v1178
      %v1180 = vlaneseq
      %v1181 = vshrl.u32 %v1180, 7
      %v1182 = vsub.s32 %v1179, %v1181
      %v1183 = vrot.slane %v1175, %v1182
      %v1185 = vunpack.c.l.s4 1934713408
      %v1186 = vunpack.c.0.s8 %v1185
      %v1187 = vlaneseq
      %v1188 = vshrl.u32 %v1187, 7
      %v1189 = vsub.s32 %v1186, %v1188
      %v1190 = vrot.slane %v1176, %v1189
      %v1191 = vcombine.high %v1167, 0.0
      %v1192 = vcombine.high %v1174, 0.0
      %v1193 = vcombine.high %v1183, 0.0
      %v1194 = vcombine.high %v1190, 0.0
      %1196 = vrot.lane.b32.xlu0 %v1123, 16
      %v1197 = vpop.permute.xlu0 %1196
      %1200 = vrot.lane.b32.xlu0 %v1106, 32
      %v1201 = vpop.permute.xlu0 %1200
      %1204 = vrot.lane.b32.xlu0 %v1124, 48
      %v1205 = vpop.permute.xlu0 %1204
      %1208 = vrot.lane.b32.xlu0 %v1115, 64
      %v1209 = vpop.permute.xlu0 %1208
      %1212 = vrot.lane.b32.xlu0 %v1125, 80
      %v1213 = vpop.permute.xlu0 %1212
      %1216 = vrot.lane.b32.xlu0 %v1122, 96
      %v1217 = vpop.permute.xlu0 %1216
      %1220 = vrot.lane.b32.xlu0 %v1126, 112
      %v1221 = vpop.permute.xlu0 %1220
      %1224 = vrot.lane.b32.xlu0 %v1191, 16
      %v1225 = vpop.permute.xlu0 %1224
      %1228 = vrot.lane.b32.xlu0 %v1174, 32
      %v1229 = vpop.permute.xlu0 %1228
      %1232 = vrot.lane.b32.xlu0 %v1192, 48
      %v1233 = vpop.permute.xlu0 %1232
      %1236 = vrot.lane.b32.xlu0 %v1183, 64
      %v1237 = vpop.permute.xlu0 %1236
      %1240 = vrot.lane.b32.xlu0 %v1193, 80
      %v1241 = vpop.permute.xlu0 %1240
      %1244 = vrot.lane.b32.xlu0 %v1190, 96
      %v1245 = vpop.permute.xlu0 %1244
      %1248 = vrot.lane.b32.xlu0 %v1194, 112
      %v1249 = vpop.permute.xlu0 %1248
      %v1251 = vsel %vm537, %v1099, %v1197
      %v1252 = vsel %vm539, %v1251, %v1201
      %v1253 = vsel %vm541, %v1252, %v1205
      %v1254 = vsel %vm543, %v1253, %v1209
      %v1255 = vsel %vm545, %v1254, %v1213
      %v1256 = vsel %vm547, %v1255, %v1217
      %v1257 = vsel %vm549, %v1256, %v1221
      %v1258 = vsel %vm537, %v1167, %v1225
      %v1259 = vsel %vm539, %v1258, %v1229
      %v1260 = vsel %vm541, %v1259, %v1233
      %v1261 = vsel %vm543, %v1260, %v1237
      %v1262 = vsel %vm545, %v1261, %v1241
      %v1263 = vsel %vm547, %v1262, %v1245
      %v1264 = vsel %vm549, %v1263, %v1249
      %1265 = vrot.lane.b32.xlu0 %v1033, 127
      %v1266 = vpop.permute.xlu0 %1265
      %1267 = vrot.lane.b32.xlu0 %v1035, 127
      %v1268 = vpop.permute.xlu0 %1267
      %1269 = vrot.lane.b32.xlu0 %v1038, 127
      %v1270 = vpop.permute.xlu0 %1269
      %1271 = vrot.lane.b32.xlu0 %v1040, 127
      %v1272 = vpop.permute.xlu0 %1271
      %1273 = vrot.lane.b32.xlu0 %v1043, 127
      %v1274 = vpop.permute.xlu0 %1273
      %1275 = vrot.lane.b32.xlu0 %v1045, 127
      %v1276 = vpop.permute.xlu0 %1275
      %1277 = vrot.lane.b32.xlu0 %v1048, 127
      %v1278 = vpop.permute.xlu0 %1277
      %1279 = vrot.lane.b32.xlu0 %v1050, 127
      %v1280 = vpop.permute.xlu0 %1279
      %v1289 = vcombine.low %v1266, %v1274
      %v1290 = vcombine.high %v1266, %v1274
      %v1292 = vunpack.c.l.s4 1983009808
      %v1293 = vunpack.c.0.s8 %v1292
      %v1294 = vlaneseq
      %v1295 = vshrl.u32 %v1294, 7
      %v1296 = vsub.s32 %v1293, %v1295
      %v1297 = vrot.slane %v1289, %v1296
      %v1299 = vunpack.c.l.s4 1983009808
      %v1300 = vunpack.c.0.s8 %v1299
      %v1301 = vlaneseq
      %v1302 = vshrl.u32 %v1301, 7
      %v1303 = vsub.s32 %v1300, %v1302
      %v1304 = vrot.slane %v1290, %v1303
      %v1305 = vcombine.low %v1270, %v1278
      %v1306 = vcombine.high %v1270, %v1278
      %v1308 = vunpack.c.l.s4 1983009808
      %v1309 = vunpack.c.0.s8 %v1308
      %v1310 = vlaneseq
      %v1311 = vshrl.u32 %v1310, 7
      %v1312 = vsub.s32 %v1309, %v1311
      %v1313 = vrot.slane %v1305, %v1312
      %v1315 = vunpack.c.l.s4 1983009808
      %v1316 = vunpack.c.0.s8 %v1315
      %v1317 = vlaneseq
      %v1318 = vshrl.u32 %v1317, 7
      %v1319 = vsub.s32 %v1316, %v1318
      %v1320 = vrot.slane %v1306, %v1319
      %v1321 = vcombine.low %v1297, %v1313
      %v1322 = vcombine.high %v1297, %v1313
      %v1324 = vunpack.c.l.s4 1934713408
      %v1325 = vunpack.c.0.s8 %v1324
      %v1326 = vlaneseq
      %v1327 = vshrl.u32 %v1326, 7
      %v1328 = vsub.s32 %v1325, %v1327
      %v1329 = vrot.slane %v1321, %v1328
      %v1331 = vunpack.c.l.s4 1934713408
      %v1332 = vunpack.c.0.s8 %v1331
      %v1333 = vlaneseq
      %v1334 = vshrl.u32 %v1333, 7
      %v1335 = vsub.s32 %v1332, %v1334
      %v1336 = vrot.slane %v1322, %v1335
      %v1337 = vcombine.low %v1304, %v1320
      %v1338 = vcombine.high %v1304, %v1320
      %v1340 = vunpack.c.l.s4 1934713408
      %v1341 = vunpack.c.0.s8 %v1340
      %v1342 = vlaneseq
      %v1343 = vshrl.u32 %v1342, 7
      %v1344 = vsub.s32 %v1341, %v1343
      %v1345 = vrot.slane %v1337, %v1344
      %v1347 = vunpack.c.l.s4 1934713408
      %v1348 = vunpack.c.0.s8 %v1347
      %v1349 = vlaneseq
      %v1350 = vshrl.u32 %v1349, 7
      %v1351 = vsub.s32 %v1348, %v1350
      %v1352 = vrot.slane %v1338, %v1351
      %v1353 = vcombine.high %v1329, 0.0
      %v1354 = vcombine.high %v1336, 0.0
      %v1355 = vcombine.high %v1345, 0.0
      %v1356 = vcombine.high %v1352, 0.0
      %v1357 = vcombine.low %v1268, %v1276
      %v1358 = vcombine.high %v1268, %v1276
      %v1360 = vunpack.c.l.s4 1983009808
      %v1361 = vunpack.c.0.s8 %v1360
      %v1362 = vlaneseq
      %v1363 = vshrl.u32 %v1362, 7
      %v1364 = vsub.s32 %v1361, %v1363
      %v1365 = vrot.slane %v1357, %v1364
      %v1367 = vunpack.c.l.s4 1983009808
      %v1368 = vunpack.c.0.s8 %v1367
      %v1369 = vlaneseq
      %v1370 = vshrl.u32 %v1369, 7
      %v1371 = vsub.s32 %v1368, %v1370
      %v1372 = vrot.slane %v1358, %v1371
      %v1373 = vcombine.low %v1272, %v1280
      %v1374 = vcombine.high %v1272, %v1280
      %v1376 = vunpack.c.l.s4 1983009808
      %v1377 = vunpack.c.0.s8 %v1376
      %v1378 = vlaneseq
      %v1379 = vshrl.u32 %v1378, 7
      %v1380 = vsub.s32 %v1377, %v1379
      %v1381 = vrot.slane %v1373, %v1380
      %v1383 = vunpack.c.l.s4 1983009808
      %v1384 = vunpack.c.0.s8 %v1383
      %v1385 = vlaneseq
      %v1386 = vshrl.u32 %v1385, 7
      %v1387 = vsub.s32 %v1384, %v1386
      %v1388 = vrot.slane %v1374, %v1387
      %v1389 = vcombine.low %v1365, %v1381
      %v1390 = vcombine.high %v1365, %v1381
      %v1392 = vunpack.c.l.s4 1934713408
      %v1393 = vunpack.c.0.s8 %v1392
      %v1394 = vlaneseq
      %v1395 = vshrl.u32 %v1394, 7
      %v1396 = vsub.s32 %v1393, %v1395
      %v1397 = vrot.slane %v1389, %v1396
      %v1399 = vunpack.c.l.s4 1934713408
      %v1400 = vunpack.c.0.s8 %v1399
      %v1401 = vlaneseq
      %v1402 = vshrl.u32 %v1401, 7
      %v1403 = vsub.s32 %v1400, %v1402
      %v1404 = vrot.slane %v1390, %v1403
      %v1405 = vcombine.low %v1372, %v1388
      %v1406 = vcombine.high %v1372, %v1388
      %v1408 = vunpack.c.l.s4 1934713408
      %v1409 = vunpack.c.0.s8 %v1408
      %v1410 = vlaneseq
      %v1411 = vshrl.u32 %v1410, 7
      %v1412 = vsub.s32 %v1409, %v1411
      %v1413 = vrot.slane %v1405, %v1412
      %v1415 = vunpack.c.l.s4 1934713408
      %v1416 = vunpack.c.0.s8 %v1415
      %v1417 = vlaneseq
      %v1418 = vshrl.u32 %v1417, 7
      %v1419 = vsub.s32 %v1416, %v1418
      %v1420 = vrot.slane %v1406, %v1419
      %v1421 = vcombine.high %v1397, 0.0
      %v1422 = vcombine.high %v1404, 0.0
      %v1423 = vcombine.high %v1413, 0.0
      %v1424 = vcombine.high %v1420, 0.0
      %1426 = vrot.lane.b32.xlu0 %v1353, 16
      %v1427 = vpop.permute.xlu0 %1426
      %1430 = vrot.lane.b32.xlu0 %v1336, 32
      %v1431 = vpop.permute.xlu0 %1430
      %1434 = vrot.lane.b32.xlu0 %v1354, 48
      %v1435 = vpop.permute.xlu0 %1434
      %1438 = vrot.lane.b32.xlu0 %v1345, 64
      %v1439 = vpop.permute.xlu0 %1438
      %1442 = vrot.lane.b32.xlu0 %v1355, 80
      %v1443 = vpop.permute.xlu0 %1442
      %1446 = vrot.lane.b32.xlu0 %v1352, 96
      %v1447 = vpop.permute.xlu0 %1446
      %1450 = vrot.lane.b32.xlu0 %v1356, 112
      %v1451 = vpop.permute.xlu0 %1450
      %1454 = vrot.lane.b32.xlu0 %v1421, 16
      %v1455 = vpop.permute.xlu0 %1454
      %1458 = vrot.lane.b32.xlu0 %v1404, 32
      %v1459 = vpop.permute.xlu0 %1458
      %1462 = vrot.lane.b32.xlu0 %v1422, 48
      %v1463 = vpop.permute.xlu0 %1462
      %1466 = vrot.lane.b32.xlu0 %v1413, 64
      %v1467 = vpop.permute.xlu0 %1466
      %1470 = vrot.lane.b32.xlu0 %v1423, 80
      %v1471 = vpop.permute.xlu0 %1470
      %1474 = vrot.lane.b32.xlu0 %v1420, 96
      %v1475 = vpop.permute.xlu0 %1474
      %1478 = vrot.lane.b32.xlu0 %v1424, 112
      %v1479 = vpop.permute.xlu0 %1478
      %v1481 = vsel %vm537, %v1329, %v1427
      %v1482 = vsel %vm539, %v1481, %v1431
      %v1483 = vsel %vm541, %v1482, %v1435
      %v1484 = vsel %vm543, %v1483, %v1439
      %v1485 = vsel %vm545, %v1484, %v1443
      %v1486 = vsel %vm547, %v1485, %v1447
      %v1487 = vsel %vm549, %v1486, %v1451
      %v1488 = vsel %vm537, %v1397, %v1455
      %v1489 = vsel %vm539, %v1488, %v1459
      %v1490 = vsel %vm541, %v1489, %v1463
      %v1491 = vsel %vm543, %v1490, %v1467
      %v1492 = vsel %vm545, %v1491, %v1471
      %v1493 = vsel %vm547, %v1492, %v1475
      %v1494 = vsel %vm549, %v1493, %v1479
      %1495 = vrot.lane.b32.xlu0 %v1033, 126
      %v1496 = vpop.permute.xlu0 %1495
      %1497 = vrot.lane.b32.xlu0 %v1035, 126
      %v1498 = vpop.permute.xlu0 %1497
      %1499 = vrot.lane.b32.xlu0 %v1038, 126
      %v1500 = vpop.permute.xlu0 %1499
      %1501 = vrot.lane.b32.xlu0 %v1040, 126
      %v1502 = vpop.permute.xlu0 %1501
      %1503 = vrot.lane.b32.xlu0 %v1043, 126
      %v1504 = vpop.permute.xlu0 %1503
      %1505 = vrot.lane.b32.xlu0 %v1045, 126
      %v1506 = vpop.permute.xlu0 %1505
      %1507 = vrot.lane.b32.xlu0 %v1048, 126
      %v1508 = vpop.permute.xlu0 %1507
      %1509 = vrot.lane.b32.xlu0 %v1050, 126
      %v1510 = vpop.permute.xlu0 %1509
      %v1519 = vcombine.low %v1496, %v1504
      %v1520 = vcombine.high %v1496, %v1504
      %v1522 = vunpack.c.l.s4 1983009808
      %v1523 = vunpack.c.0.s8 %v1522
      %v1524 = vlaneseq
      %v1525 = vshrl.u32 %v1524, 7
      %v1526 = vsub.s32 %v1523, %v1525
      %v1527 = vrot.slane %v1519, %v1526
      %v1529 = vunpack.c.l.s4 1983009808
      %v1530 = vunpack.c.0.s8 %v1529
      %v1531 = vlaneseq
      %v1532 = vshrl.u32 %v1531, 7
      %v1533 = vsub.s32 %v1530, %v1532
      %v1534 = vrot.slane %v1520, %v1533
      %v1535 = vcombine.low %v1500, %v1508
      %v1536 = vcombine.high %v1500, %v1508
      %v1538 = vunpack.c.l.s4 1983009808
      %v1539 = vunpack.c.0.s8 %v1538
      %v1540 = vlaneseq
      %v1541 = vshrl.u32 %v1540, 7
      %v1542 = vsub.s32 %v1539, %v1541
      %v1543 = vrot.slane %v1535, %v1542
      %v1545 = vunpack.c.l.s4 1983009808
      %v1546 = vunpack.c.0.s8 %v1545
      %v1547 = vlaneseq
      %v1548 = vshrl.u32 %v1547, 7
      %v1549 = vsub.s32 %v1546, %v1548
      %v1550 = vrot.slane %v1536, %v1549
      %v1551 = vcombine.low %v1527, %v1543
      %v1552 = vcombine.high %v1527, %v1543
      %v1554 = vunpack.c.l.s4 1934713408
      %v1555 = vunpack.c.0.s8 %v1554
      %v1556 = vlaneseq
      %v1557 = vshrl.u32 %v1556, 7
      %v1558 = vsub.s32 %v1555, %v1557
      %v1559 = vrot.slane %v1551, %v1558
      %v1561 = vunpack.c.l.s4 1934713408
      %v1562 = vunpack.c.0.s8 %v1561
      %v1563 = vlaneseq
      %v1564 = vshrl.u32 %v1563, 7
      %v1565 = vsub.s32 %v1562, %v1564
      %v1566 = vrot.slane %v1552, %v1565
      %v1567 = vcombine.low %v1534, %v1550
      %v1568 = vcombine.high %v1534, %v1550
      %v1570 = vunpack.c.l.s4 1934713408
      %v1571 = vunpack.c.0.s8 %v1570
      %v1572 = vlaneseq
      %v1573 = vshrl.u32 %v1572, 7
      %v1574 = vsub.s32 %v1571, %v1573
      %v1575 = vrot.slane %v1567, %v1574
      %v1577 = vunpack.c.l.s4 1934713408
      %v1578 = vunpack.c.0.s8 %v1577
      %v1579 = vlaneseq
      %v1580 = vshrl.u32 %v1579, 7
      %v1581 = vsub.s32 %v1578, %v1580
      %v1582 = vrot.slane %v1568, %v1581
      %v1583 = vcombine.high %v1559, 0.0
      %v1584 = vcombine.high %v1566, 0.0
      %v1585 = vcombine.high %v1575, 0.0
      %v1586 = vcombine.high %v1582, 0.0
      %v1587 = vcombine.low %v1498, %v1506
      %v1588 = vcombine.high %v1498, %v1506
      %v1590 = vunpack.c.l.s4 1983009808
      %v1591 = vunpack.c.0.s8 %v1590
      %v1592 = vlaneseq
      %v1593 = vshrl.u32 %v1592, 7
      %v1594 = vsub.s32 %v1591, %v1593
      %v1595 = vrot.slane %v1587, %v1594
      %v1597 = vunpack.c.l.s4 1983009808
      %v1598 = vunpack.c.0.s8 %v1597
      %v1599 = vlaneseq
      %v1600 = vshrl.u32 %v1599, 7
      %v1601 = vsub.s32 %v1598, %v1600
      %v1602 = vrot.slane %v1588, %v1601
      %v1603 = vcombine.low %v1502, %v1510
      %v1604 = vcombine.high %v1502, %v1510
      %v1606 = vunpack.c.l.s4 1983009808
      %v1607 = vunpack.c.0.s8 %v1606
      %v1608 = vlaneseq
      %v1609 = vshrl.u32 %v1608, 7
      %v1610 = vsub.s32 %v1607, %v1609
      %v1611 = vrot.slane %v1603, %v1610
      %v1613 = vunpack.c.l.s4 1983009808
      %v1614 = vunpack.c.0.s8 %v1613
      %v1615 = vlaneseq
      %v1616 = vshrl.u32 %v1615, 7
      %v1617 = vsub.s32 %v1614, %v1616
      %v1618 = vrot.slane %v1604, %v1617
      %v1619 = vcombine.low %v1595, %v1611
      %v1620 = vcombine.high %v1595, %v1611
      %v1622 = vunpack.c.l.s4 1934713408
      %v1623 = vunpack.c.0.s8 %v1622
      %v1624 = vlaneseq
      %v1625 = vshrl.u32 %v1624, 7
      %v1626 = vsub.s32 %v1623, %v1625
      %v1627 = vrot.slane %v1619, %v1626
      %v1629 = vunpack.c.l.s4 1934713408
      %v1630 = vunpack.c.0.s8 %v1629
      %v1631 = vlaneseq
      %v1632 = vshrl.u32 %v1631, 7
      %v1633 = vsub.s32 %v1630, %v1632
      %v1634 = vrot.slane %v1620, %v1633
      %v1635 = vcombine.low %v1602, %v1618
      %v1636 = vcombine.high %v1602, %v1618
      %v1638 = vunpack.c.l.s4 1934713408
      %v1639 = vunpack.c.0.s8 %v1638
      %v1640 = vlaneseq
      %v1641 = vshrl.u32 %v1640, 7
      %v1642 = vsub.s32 %v1639, %v1641
      %v1643 = vrot.slane %v1635, %v1642
      %v1645 = vunpack.c.l.s4 1934713408
      %v1646 = vunpack.c.0.s8 %v1645
      %v1647 = vlaneseq
      %v1648 = vshrl.u32 %v1647, 7
      %v1649 = vsub.s32 %v1646, %v1648
      %v1650 = vrot.slane %v1636, %v1649
      %v1651 = vcombine.high %v1627, 0.0
      %v1652 = vcombine.high %v1634, 0.0
      %v1653 = vcombine.high %v1643, 0.0
      %v1654 = vcombine.high %v1650, 0.0
      %1656 = vrot.lane.b32.xlu0 %v1583, 16
      %v1657 = vpop.permute.xlu0 %1656
      %1660 = vrot.lane.b32.xlu0 %v1566, 32
      %v1661 = vpop.permute.xlu0 %1660
      %1664 = vrot.lane.b32.xlu0 %v1584, 48
      %v1665 = vpop.permute.xlu0 %1664
      %1668 = vrot.lane.b32.xlu0 %v1575, 64
      %v1669 = vpop.permute.xlu0 %1668
      %1672 = vrot.lane.b32.xlu0 %v1585, 80
      %v1673 = vpop.permute.xlu0 %1672
      %1676 = vrot.lane.b32.xlu0 %v1582, 96
      %v1677 = vpop.permute.xlu0 %1676
      %1680 = vrot.lane.b32.xlu0 %v1586, 112
      %v1681 = vpop.permute.xlu0 %1680
      %1684 = vrot.lane.b32.xlu0 %v1651, 16
      %v1685 = vpop.permute.xlu0 %1684
      %1688 = vrot.lane.b32.xlu0 %v1634, 32
      %v1689 = vpop.permute.xlu0 %1688
      %1692 = vrot.lane.b32.xlu0 %v1652, 48
      %v1693 = vpop.permute.xlu0 %1692
      %1696 = vrot.lane.b32.xlu0 %v1643, 64
      %v1697 = vpop.permute.xlu0 %1696
      %1700 = vrot.lane.b32.xlu0 %v1653, 80
      %v1701 = vpop.permute.xlu0 %1700
      %1704 = vrot.lane.b32.xlu0 %v1650, 96
      %v1705 = vpop.permute.xlu0 %1704
      %1708 = vrot.lane.b32.xlu0 %v1654, 112
      %v1709 = vpop.permute.xlu0 %1708
      %v1711 = vsel %vm537, %v1559, %v1657
      %v1712 = vsel %vm539, %v1711, %v1661
      %v1713 = vsel %vm541, %v1712, %v1665
      %v1714 = vsel %vm543, %v1713, %v1669
      %v1715 = vsel %vm545, %v1714, %v1673
      %v1716 = vsel %vm547, %v1715, %v1677
      %v1717 = vsel %vm549, %v1716, %v1681
      %v1718 = vsel %vm537, %v1627, %v1685
      %v1719 = vsel %vm539, %v1718, %v1689
      %v1720 = vsel %vm541, %v1719, %v1693
      %v1721 = vsel %vm543, %v1720, %v1697
      %v1722 = vsel %vm545, %v1721, %v1701
      %v1723 = vsel %vm547, %v1722, %v1705
      %v1724 = vsel %vm549, %v1723, %v1709
      %vm1725 = vcmask 1045504
      %v1726 = vrot.slane %v333, 2
      %v1727 = vrot.slane %v334, 2
      %v1728 = vsel %vm1725, %v1726, %v1727
      %v1729 = vrot.slane %v335, 2
      %v1730 = vsel %vm1725, %v1727, %v1729
      %v1731 = vrot.slane %v336, 2
      %v1732 = vrot.slane %v337, 2
      %v1733 = vsel %vm1725, %v1731, %v1732
      %v1734 = vrot.slane %v338, 2
      %v1735 = vsel %vm1725, %v1732, %v1734
      %v1736 = vrot.slane %v339, 2
      %v1737 = vrot.slane %v340, 2
      %v1738 = vsel %vm1725, %v1736, %v1737
      %v1739 = vrot.slane %v341, 2
      %v1740 = vsel %vm1725, %v1737, %v1739
      %v1741 = vrot.slane %v342, 2
      %v1742 = vrot.slane %v343, 2
      %v1743 = vsel %vm1725, %v1741, %v1742
      %v1744 = vrot.slane %v344, 2
      %v1745 = vsel %vm1725, %v1742, %v1744
      %v1754 = vcombine.low %v1728, %v1738
      %v1755 = vcombine.high %v1728, %v1738
      %v1757 = vunpack.c.l.s4 1983009808
      %v1758 = vunpack.c.0.s8 %v1757
      %v1759 = vlaneseq
      %v1760 = vshrl.u32 %v1759, 7
      %v1761 = vsub.s32 %v1758, %v1760
      %v1762 = vrot.slane %v1754, %v1761
      %v1764 = vunpack.c.l.s4 1983009808
      %v1765 = vunpack.c.0.s8 %v1764
      %v1766 = vlaneseq
      %v1767 = vshrl.u32 %v1766, 7
      %v1768 = vsub.s32 %v1765, %v1767
      %v1769 = vrot.slane %v1755, %v1768
      %v1770 = vcombine.low %v1733, %v1743
      %v1771 = vcombine.high %v1733, %v1743
      %v1773 = vunpack.c.l.s4 1983009808
      %v1774 = vunpack.c.0.s8 %v1773
      %v1775 = vlaneseq
      %v1776 = vshrl.u32 %v1775, 7
      %v1777 = vsub.s32 %v1774, %v1776
      %v1778 = vrot.slane %v1770, %v1777
      %v1780 = vunpack.c.l.s4 1983009808
      %v1781 = vunpack.c.0.s8 %v1780
      %v1782 = vlaneseq
      %v1783 = vshrl.u32 %v1782, 7
      %v1784 = vsub.s32 %v1781, %v1783
      %v1785 = vrot.slane %v1771, %v1784
      %v1786 = vcombine.low %v1762, %v1778
      %v1787 = vcombine.high %v1762, %v1778
      %v1789 = vunpack.c.l.s4 1934713408
      %v1790 = vunpack.c.0.s8 %v1789
      %v1791 = vlaneseq
      %v1792 = vshrl.u32 %v1791, 7
      %v1793 = vsub.s32 %v1790, %v1792
      %v1794 = vrot.slane %v1786, %v1793
      %v1796 = vunpack.c.l.s4 1934713408
      %v1797 = vunpack.c.0.s8 %v1796
      %v1798 = vlaneseq
      %v1799 = vshrl.u32 %v1798, 7
      %v1800 = vsub.s32 %v1797, %v1799
      %v1801 = vrot.slane %v1787, %v1800
      %v1802 = vcombine.low %v1769, %v1785
      %v1803 = vcombine.high %v1769, %v1785
      %v1805 = vunpack.c.l.s4 1934713408
      %v1806 = vunpack.c.0.s8 %v1805
      %v1807 = vlaneseq
      %v1808 = vshrl.u32 %v1807, 7
      %v1809 = vsub.s32 %v1806, %v1808
      %v1810 = vrot.slane %v1802, %v1809
      %v1812 = vunpack.c.l.s4 1934713408
      %v1813 = vunpack.c.0.s8 %v1812
      %v1814 = vlaneseq
      %v1815 = vshrl.u32 %v1814, 7
      %v1816 = vsub.s32 %v1813, %v1815
      %v1817 = vrot.slane %v1803, %v1816
      %v1818 = vcombine.high %v1794, 0.0
      %v1819 = vcombine.high %v1801, 0.0
      %v1820 = vcombine.high %v1810, 0.0
      %v1821 = vcombine.high %v1817, 0.0
      %v1822 = vcombine.low %v1730, %v1740
      %v1823 = vcombine.high %v1730, %v1740
      %v1825 = vunpack.c.l.s4 1983009808
      %v1826 = vunpack.c.0.s8 %v1825
      %v1827 = vlaneseq
      %v1828 = vshrl.u32 %v1827, 7
      %v1829 = vsub.s32 %v1826, %v1828
      %v1830 = vrot.slane %v1822, %v1829
      %v1832 = vunpack.c.l.s4 1983009808
      %v1833 = vunpack.c.0.s8 %v1832
      %v1834 = vlaneseq
      %v1835 = vshrl.u32 %v1834, 7
      %v1836 = vsub.s32 %v1833, %v1835
      %v1837 = vrot.slane %v1823, %v1836
      %v1838 = vcombine.low %v1735, %v1745
      %v1839 = vcombine.high %v1735, %v1745
      %v1841 = vunpack.c.l.s4 1983009808
      %v1842 = vunpack.c.0.s8 %v1841
      %v1843 = vlaneseq
      %v1844 = vshrl.u32 %v1843, 7
      %v1845 = vsub.s32 %v1842, %v1844
      %v1846 = vrot.slane %v1838, %v1845
      %v1848 = vunpack.c.l.s4 1983009808
      %v1849 = vunpack.c.0.s8 %v1848
      %v1850 = vlaneseq
      %v1851 = vshrl.u32 %v1850, 7
      %v1852 = vsub.s32 %v1849, %v1851
      %v1853 = vrot.slane %v1839, %v1852
      %v1854 = vcombine.low %v1830, %v1846
      %v1855 = vcombine.high %v1830, %v1846
      %v1857 = vunpack.c.l.s4 1934713408
      %v1858 = vunpack.c.0.s8 %v1857
      %v1859 = vlaneseq
      %v1860 = vshrl.u32 %v1859, 7
      %v1861 = vsub.s32 %v1858, %v1860
      %v1862 = vrot.slane %v1854, %v1861
      %v1864 = vunpack.c.l.s4 1934713408
      %v1865 = vunpack.c.0.s8 %v1864
      %v1866 = vlaneseq
      %v1867 = vshrl.u32 %v1866, 7
      %v1868 = vsub.s32 %v1865, %v1867
      %v1869 = vrot.slane %v1855, %v1868
      %v1870 = vcombine.low %v1837, %v1853
      %v1871 = vcombine.high %v1837, %v1853
      %v1873 = vunpack.c.l.s4 1934713408
      %v1874 = vunpack.c.0.s8 %v1873
      %v1875 = vlaneseq
      %v1876 = vshrl.u32 %v1875, 7
      %v1877 = vsub.s32 %v1874, %v1876
      %v1878 = vrot.slane %v1870, %v1877
      %v1880 = vunpack.c.l.s4 1934713408
      %v1881 = vunpack.c.0.s8 %v1880
      %v1882 = vlaneseq
      %v1883 = vshrl.u32 %v1882, 7
      %v1884 = vsub.s32 %v1881, %v1883
      %v1885 = vrot.slane %v1871, %v1884
      %v1886 = vcombine.high %v1862, 0.0
      %v1887 = vcombine.high %v1869, 0.0
      %v1888 = vcombine.high %v1878, 0.0
      %v1889 = vcombine.high %v1885, 0.0
      %1891 = vrot.lane.b32.xlu0 %v1818, 16
      %v1892 = vpop.permute.xlu0 %1891
      %1895 = vrot.lane.b32.xlu0 %v1801, 32
      %v1896 = vpop.permute.xlu0 %1895
      %1899 = vrot.lane.b32.xlu0 %v1819, 48
      %v1900 = vpop.permute.xlu0 %1899
      %1903 = vrot.lane.b32.xlu0 %v1810, 64
      %v1904 = vpop.permute.xlu0 %1903
      %1907 = vrot.lane.b32.xlu0 %v1820, 80
      %v1908 = vpop.permute.xlu0 %1907
      %1911 = vrot.lane.b32.xlu0 %v1817, 96
      %v1912 = vpop.permute.xlu0 %1911
      %1915 = vrot.lane.b32.xlu0 %v1821, 112
      %v1916 = vpop.permute.xlu0 %1915
      %1919 = vrot.lane.b32.xlu0 %v1886, 16
      %v1920 = vpop.permute.xlu0 %1919
      %1923 = vrot.lane.b32.xlu0 %v1869, 32
      %v1924 = vpop.permute.xlu0 %1923
      %1927 = vrot.lane.b32.xlu0 %v1887, 48
      %v1928 = vpop.permute.xlu0 %1927
      %1931 = vrot.lane.b32.xlu0 %v1878, 64
      %v1932 = vpop.permute.xlu0 %1931
      %1935 = vrot.lane.b32.xlu0 %v1888, 80
      %v1936 = vpop.permute.xlu0 %1935
      %1939 = vrot.lane.b32.xlu0 %v1885, 96
      %v1940 = vpop.permute.xlu0 %1939
      %1943 = vrot.lane.b32.xlu0 %v1889, 112
      %v1944 = vpop.permute.xlu0 %1943
      %v1946 = vsel %vm537, %v1794, %v1892
      %v1947 = vsel %vm539, %v1946, %v1896
      %v1948 = vsel %vm541, %v1947, %v1900
      %v1949 = vsel %vm543, %v1948, %v1904
      %v1950 = vsel %vm545, %v1949, %v1908
      %v1951 = vsel %vm547, %v1950, %v1912
      %v1952 = vsel %vm549, %v1951, %v1916
      %v1953 = vsel %vm537, %v1862, %v1920
      %v1954 = vsel %vm539, %v1953, %v1924
      %v1955 = vsel %vm541, %v1954, %v1928
      %v1956 = vsel %vm543, %v1955, %v1932
      %v1957 = vsel %vm545, %v1956, %v1936
      %v1958 = vsel %vm547, %v1957, %v1940
      %v1959 = vsel %vm549, %v1958, %v1944
      %1960 = vrot.lane.b32.xlu0 %v1728, 127
      %v1961 = vpop.permute.xlu0 %1960
      %1962 = vrot.lane.b32.xlu0 %v1730, 127
      %v1963 = vpop.permute.xlu0 %1962
      %1964 = vrot.lane.b32.xlu0 %v1733, 127
      %v1965 = vpop.permute.xlu0 %1964
      %1966 = vrot.lane.b32.xlu0 %v1735, 127
      %v1967 = vpop.permute.xlu0 %1966
      %1968 = vrot.lane.b32.xlu0 %v1738, 127
      %v1969 = vpop.permute.xlu0 %1968
      %1970 = vrot.lane.b32.xlu0 %v1740, 127
      %v1971 = vpop.permute.xlu0 %1970
      %1972 = vrot.lane.b32.xlu0 %v1743, 127
      %v1973 = vpop.permute.xlu0 %1972
      %1974 = vrot.lane.b32.xlu0 %v1745, 127
      %v1975 = vpop.permute.xlu0 %1974
      %v1984 = vcombine.low %v1961, %v1969
      %v1985 = vcombine.high %v1961, %v1969
      %v1987 = vunpack.c.l.s4 1983009808
      %v1988 = vunpack.c.0.s8 %v1987
      %v1989 = vlaneseq
      %v1990 = vshrl.u32 %v1989, 7
      %v1991 = vsub.s32 %v1988, %v1990
      %v1992 = vrot.slane %v1984, %v1991
      %v1994 = vunpack.c.l.s4 1983009808
      %v1995 = vunpack.c.0.s8 %v1994
      %v1996 = vlaneseq
      %v1997 = vshrl.u32 %v1996, 7
      %v1998 = vsub.s32 %v1995, %v1997
      %v1999 = vrot.slane %v1985, %v1998
      %v2000 = vcombine.low %v1965, %v1973
      %v2001 = vcombine.high %v1965, %v1973
      %v2003 = vunpack.c.l.s4 1983009808
      %v2004 = vunpack.c.0.s8 %v2003
      %v2005 = vlaneseq
      %v2006 = vshrl.u32 %v2005, 7
      %v2007 = vsub.s32 %v2004, %v2006
      %v2008 = vrot.slane %v2000, %v2007
      %v2010 = vunpack.c.l.s4 1983009808
      %v2011 = vunpack.c.0.s8 %v2010
      %v2012 = vlaneseq
      %v2013 = vshrl.u32 %v2012, 7
      %v2014 = vsub.s32 %v2011, %v2013
      %v2015 = vrot.slane %v2001, %v2014
      %v2016 = vcombine.low %v1992, %v2008
      %v2017 = vcombine.high %v1992, %v2008
      %v2019 = vunpack.c.l.s4 1934713408
      %v2020 = vunpack.c.0.s8 %v2019
      %v2021 = vlaneseq
      %v2022 = vshrl.u32 %v2021, 7
      %v2023 = vsub.s32 %v2020, %v2022
      %v2024 = vrot.slane %v2016, %v2023
      %v2026 = vunpack.c.l.s4 1934713408
      %v2027 = vunpack.c.0.s8 %v2026
      %v2028 = vlaneseq
      %v2029 = vshrl.u32 %v2028, 7
      %v2030 = vsub.s32 %v2027, %v2029
      %v2031 = vrot.slane %v2017, %v2030
      %v2032 = vcombine.low %v1999, %v2015
      %v2033 = vcombine.high %v1999, %v2015
      %v2035 = vunpack.c.l.s4 1934713408
      %v2036 = vunpack.c.0.s8 %v2035
      %v2037 = vlaneseq
      %v2038 = vshrl.u32 %v2037, 7
      %v2039 = vsub.s32 %v2036, %v2038
      %v2040 = vrot.slane %v2032, %v2039
      %v2042 = vunpack.c.l.s4 1934713408
      %v2043 = vunpack.c.0.s8 %v2042
      %v2044 = vlaneseq
      %v2045 = vshrl.u32 %v2044, 7
      %v2046 = vsub.s32 %v2043, %v2045
      %v2047 = vrot.slane %v2033, %v2046
      %v2048 = vcombine.high %v2024, 0.0
      %v2049 = vcombine.high %v2031, 0.0
      %v2050 = vcombine.high %v2040, 0.0
      %v2051 = vcombine.high %v2047, 0.0
      %v2052 = vcombine.low %v1963, %v1971
      %v2053 = vcombine.high %v1963, %v1971
      %v2055 = vunpack.c.l.s4 1983009808
      %v2056 = vunpack.c.0.s8 %v2055
      %v2057 = vlaneseq
      %v2058 = vshrl.u32 %v2057, 7
      %v2059 = vsub.s32 %v2056, %v2058
      %v2060 = vrot.slane %v2052, %v2059
      %v2062 = vunpack.c.l.s4 1983009808
      %v2063 = vunpack.c.0.s8 %v2062
      %v2064 = vlaneseq
      %v2065 = vshrl.u32 %v2064, 7
      %v2066 = vsub.s32 %v2063, %v2065
      %v2067 = vrot.slane %v2053, %v2066
      %v2068 = vcombine.low %v1967, %v1975
      %v2069 = vcombine.high %v1967, %v1975
      %v2071 = vunpack.c.l.s4 1983009808
      %v2072 = vunpack.c.0.s8 %v2071
      %v2073 = vlaneseq
      %v2074 = vshrl.u32 %v2073, 7
      %v2075 = vsub.s32 %v2072, %v2074
      %v2076 = vrot.slane %v2068, %v2075
      %v2078 = vunpack.c.l.s4 1983009808
      %v2079 = vunpack.c.0.s8 %v2078
      %v2080 = vlaneseq
      %v2081 = vshrl.u32 %v2080, 7
      %v2082 = vsub.s32 %v2079, %v2081
      %v2083 = vrot.slane %v2069, %v2082
      %v2084 = vcombine.low %v2060, %v2076
      %v2085 = vcombine.high %v2060, %v2076
      %v2087 = vunpack.c.l.s4 1934713408
      %v2088 = vunpack.c.0.s8 %v2087
      %v2089 = vlaneseq
      %v2090 = vshrl.u32 %v2089, 7
      %v2091 = vsub.s32 %v2088, %v2090
      %v2092 = vrot.slane %v2084, %v2091
      %v2094 = vunpack.c.l.s4 1934713408
      %v2095 = vunpack.c.0.s8 %v2094
      %v2096 = vlaneseq
      %v2097 = vshrl.u32 %v2096, 7
      %v2098 = vsub.s32 %v2095, %v2097
      %v2099 = vrot.slane %v2085, %v2098
      %v2100 = vcombine.low %v2067, %v2083
      %v2101 = vcombine.high %v2067, %v2083
      %v2103 = vunpack.c.l.s4 1934713408
      %v2104 = vunpack.c.0.s8 %v2103
      %v2105 = vlaneseq
      %v2106 = vshrl.u32 %v2105, 7
      %v2107 = vsub.s32 %v2104, %v2106
      %v2108 = vrot.slane %v2100, %v2107
      %v2110 = vunpack.c.l.s4 1934713408
      %v2111 = vunpack.c.0.s8 %v2110
      %v2112 = vlaneseq
      %v2113 = vshrl.u32 %v2112, 7
      %v2114 = vsub.s32 %v2111, %v2113
      %v2115 = vrot.slane %v2101, %v2114
      %v2116 = vcombine.high %v2092, 0.0
      %v2117 = vcombine.high %v2099, 0.0
      %v2118 = vcombine.high %v2108, 0.0
      %v2119 = vcombine.high %v2115, 0.0
      %2121 = vrot.lane.b32.xlu0 %v2048, 16
      %v2122 = vpop.permute.xlu0 %2121
      %2125 = vrot.lane.b32.xlu0 %v2031, 32
      %v2126 = vpop.permute.xlu0 %2125
      %2129 = vrot.lane.b32.xlu0 %v2049, 48
      %v2130 = vpop.permute.xlu0 %2129
      %2133 = vrot.lane.b32.xlu0 %v2040, 64
      %v2134 = vpop.permute.xlu0 %2133
      %2137 = vrot.lane.b32.xlu0 %v2050, 80
      %v2138 = vpop.permute.xlu0 %2137
      %2141 = vrot.lane.b32.xlu0 %v2047, 96
      %v2142 = vpop.permute.xlu0 %2141
      %2145 = vrot.lane.b32.xlu0 %v2051, 112
      %v2146 = vpop.permute.xlu0 %2145
      %2149 = vrot.lane.b32.xlu0 %v2116, 16
      %v2150 = vpop.permute.xlu0 %2149
      %2153 = vrot.lane.b32.xlu0 %v2099, 32
      %v2154 = vpop.permute.xlu0 %2153
      %2157 = vrot.lane.b32.xlu0 %v2117, 48
      %v2158 = vpop.permute.xlu0 %2157
      %2161 = vrot.lane.b32.xlu0 %v2108, 64
      %v2162 = vpop.permute.xlu0 %2161
      %2165 = vrot.lane.b32.xlu0 %v2118, 80
      %v2166 = vpop.permute.xlu0 %2165
      %2169 = vrot.lane.b32.xlu0 %v2115, 96
      %v2170 = vpop.permute.xlu0 %2169
      %2173 = vrot.lane.b32.xlu0 %v2119, 112
      %v2174 = vpop.permute.xlu0 %2173
      %v2176 = vsel %vm537, %v2024, %v2122
      %v2177 = vsel %vm539, %v2176, %v2126
      %v2178 = vsel %vm541, %v2177, %v2130
      %v2179 = vsel %vm543, %v2178, %v2134
      %v2180 = vsel %vm545, %v2179, %v2138
      %v2181 = vsel %vm547, %v2180, %v2142
      %v2182 = vsel %vm549, %v2181, %v2146
      %v2183 = vsel %vm537, %v2092, %v2150
      %v2184 = vsel %vm539, %v2183, %v2154
      %v2185 = vsel %vm541, %v2184, %v2158
      %v2186 = vsel %vm543, %v2185, %v2162
      %v2187 = vsel %vm545, %v2186, %v2166
      %v2188 = vsel %vm547, %v2187, %v2170
      %v2189 = vsel %vm549, %v2188, %v2174
      %2190 = vrot.lane.b32.xlu0 %v1728, 126
      %v2191 = vpop.permute.xlu0 %2190
      %2192 = vrot.lane.b32.xlu0 %v1730, 126
      %v2193 = vpop.permute.xlu0 %2192
      %2194 = vrot.lane.b32.xlu0 %v1733, 126
      %v2195 = vpop.permute.xlu0 %2194
      %2196 = vrot.lane.b32.xlu0 %v1735, 126
      %v2197 = vpop.permute.xlu0 %2196
      %2198 = vrot.lane.b32.xlu0 %v1738, 126
      %v2199 = vpop.permute.xlu0 %2198
      %2200 = vrot.lane.b32.xlu0 %v1740, 126
      %v2201 = vpop.permute.xlu0 %2200
      %2202 = vrot.lane.b32.xlu0 %v1743, 126
      %v2203 = vpop.permute.xlu0 %2202
      %2204 = vrot.lane.b32.xlu0 %v1745, 126
      %v2205 = vpop.permute.xlu0 %2204
      %v2214 = vcombine.low %v2191, %v2199
      %v2215 = vcombine.high %v2191, %v2199
      %v2217 = vunpack.c.l.s4 1983009808
      %v2218 = vunpack.c.0.s8 %v2217
      %v2219 = vlaneseq
      %v2220 = vshrl.u32 %v2219, 7
      %v2221 = vsub.s32 %v2218, %v2220
      %v2222 = vrot.slane %v2214, %v2221
      %v2224 = vunpack.c.l.s4 1983009808
      %v2225 = vunpack.c.0.s8 %v2224
      %v2226 = vlaneseq
      %v2227 = vshrl.u32 %v2226, 7
      %v2228 = vsub.s32 %v2225, %v2227
      %v2229 = vrot.slane %v2215, %v2228
      %v2230 = vcombine.low %v2195, %v2203
      %v2231 = vcombine.high %v2195, %v2203
      %v2233 = vunpack.c.l.s4 1983009808
      %v2234 = vunpack.c.0.s8 %v2233
      %v2235 = vlaneseq
      %v2236 = vshrl.u32 %v2235, 7
      %v2237 = vsub.s32 %v2234, %v2236
      %v2238 = vrot.slane %v2230, %v2237
      %v2240 = vunpack.c.l.s4 1983009808
      %v2241 = vunpack.c.0.s8 %v2240
      %v2242 = vlaneseq
      %v2243 = vshrl.u32 %v2242, 7
      %v2244 = vsub.s32 %v2241, %v2243
      %v2245 = vrot.slane %v2231, %v2244
      %v2246 = vcombine.low %v2222, %v2238
      %v2247 = vcombine.high %v2222, %v2238
      %v2249 = vunpack.c.l.s4 1934713408
      %v2250 = vunpack.c.0.s8 %v2249
      %v2251 = vlaneseq
      %v2252 = vshrl.u32 %v2251, 7
      %v2253 = vsub.s32 %v2250, %v2252
      %v2254 = vrot.slane %v2246, %v2253
      %v2256 = vunpack.c.l.s4 1934713408
      %v2257 = vunpack.c.0.s8 %v2256
      %v2258 = vlaneseq
      %v2259 = vshrl.u32 %v2258, 7
      %v2260 = vsub.s32 %v2257, %v2259
      %v2261 = vrot.slane %v2247, %v2260
      %v2262 = vcombine.low %v2229, %v2245
      %v2263 = vcombine.high %v2229, %v2245
      %v2265 = vunpack.c.l.s4 1934713408
      %v2266 = vunpack.c.0.s8 %v2265
      %v2267 = vlaneseq
      %v2268 = vshrl.u32 %v2267, 7
      %v2269 = vsub.s32 %v2266, %v2268
      %v2270 = vrot.slane %v2262, %v2269
      %v2272 = vunpack.c.l.s4 1934713408
      %v2273 = vunpack.c.0.s8 %v2272
      %v2274 = vlaneseq
      %v2275 = vshrl.u32 %v2274, 7
      %v2276 = vsub.s32 %v2273, %v2275
      %v2277 = vrot.slane %v2263, %v2276
      %v2278 = vcombine.high %v2254, 0.0
      %v2279 = vcombine.high %v2261, 0.0
      %v2280 = vcombine.high %v2270, 0.0
      %v2281 = vcombine.high %v2277, 0.0
      %v2282 = vcombine.low %v2193, %v2201
      %v2283 = vcombine.high %v2193, %v2201
      %v2285 = vunpack.c.l.s4 1983009808
      %v2286 = vunpack.c.0.s8 %v2285
      %v2287 = vlaneseq
      %v2288 = vshrl.u32 %v2287, 7
      %v2289 = vsub.s32 %v2286, %v2288
      %v2290 = vrot.slane %v2282, %v2289
      %v2292 = vunpack.c.l.s4 1983009808
      %v2293 = vunpack.c.0.s8 %v2292
      %v2294 = vlaneseq
      %v2295 = vshrl.u32 %v2294, 7
      %v2296 = vsub.s32 %v2293, %v2295
      %v2297 = vrot.slane %v2283, %v2296
      %v2298 = vcombine.low %v2197, %v2205
      %v2299 = vcombine.high %v2197, %v2205
      %v2301 = vunpack.c.l.s4 1983009808
      %v2302 = vunpack.c.0.s8 %v2301
      %v2303 = vlaneseq
      %v2304 = vshrl.u32 %v2303, 7
      %v2305 = vsub.s32 %v2302, %v2304
      %v2306 = vrot.slane %v2298, %v2305
      %v2308 = vunpack.c.l.s4 1983009808
      %v2309 = vunpack.c.0.s8 %v2308
      %v2310 = vlaneseq
      %v2311 = vshrl.u32 %v2310, 7
      %v2312 = vsub.s32 %v2309, %v2311
      %v2313 = vrot.slane %v2299, %v2312
      %v2314 = vcombine.low %v2290, %v2306
      %v2315 = vcombine.high %v2290, %v2306
      %v2317 = vunpack.c.l.s4 1934713408
      %v2318 = vunpack.c.0.s8 %v2317
      %v2319 = vlaneseq
      %v2320 = vshrl.u32 %v2319, 7
      %v2321 = vsub.s32 %v2318, %v2320
      %v2322 = vrot.slane %v2314, %v2321
      %v2324 = vunpack.c.l.s4 1934713408
      %v2325 = vunpack.c.0.s8 %v2324
      %v2326 = vlaneseq
      %v2327 = vshrl.u32 %v2326, 7
      %v2328 = vsub.s32 %v2325, %v2327
      %v2329 = vrot.slane %v2315, %v2328
      %v2330 = vcombine.low %v2297, %v2313
      %v2331 = vcombine.high %v2297, %v2313
      %v2333 = vunpack.c.l.s4 1934713408
      %v2334 = vunpack.c.0.s8 %v2333
      %v2335 = vlaneseq
      %v2336 = vshrl.u32 %v2335, 7
      %v2337 = vsub.s32 %v2334, %v2336
      %v2338 = vrot.slane %v2330, %v2337
      %v2340 = vunpack.c.l.s4 1934713408
      %v2341 = vunpack.c.0.s8 %v2340
      %v2342 = vlaneseq
      %v2343 = vshrl.u32 %v2342, 7
      %v2344 = vsub.s32 %v2341, %v2343
      %v2345 = vrot.slane %v2331, %v2344
      %v2346 = vcombine.high %v2322, 0.0
      %v2347 = vcombine.high %v2329, 0.0
      %v2348 = vcombine.high %v2338, 0.0
      %v2349 = vcombine.high %v2345, 0.0
      %2351 = vrot.lane.b32.xlu0 %v2278, 16
      %v2352 = vpop.permute.xlu0 %2351
      %2355 = vrot.lane.b32.xlu0 %v2261, 32
      %v2356 = vpop.permute.xlu0 %2355
      %2359 = vrot.lane.b32.xlu0 %v2279, 48
      %v2360 = vpop.permute.xlu0 %2359
      %2363 = vrot.lane.b32.xlu0 %v2270, 64
      %v2364 = vpop.permute.xlu0 %2363
      %2367 = vrot.lane.b32.xlu0 %v2280, 80
      %v2368 = vpop.permute.xlu0 %2367
      %2371 = vrot.lane.b32.xlu0 %v2277, 96
      %v2372 = vpop.permute.xlu0 %2371
      %2375 = vrot.lane.b32.xlu0 %v2281, 112
      %v2376 = vpop.permute.xlu0 %2375
      %2379 = vrot.lane.b32.xlu0 %v2346, 16
      %v2380 = vpop.permute.xlu0 %2379
      %2383 = vrot.lane.b32.xlu0 %v2329, 32
      %v2384 = vpop.permute.xlu0 %2383
      %2387 = vrot.lane.b32.xlu0 %v2347, 48
      %v2388 = vpop.permute.xlu0 %2387
      %2391 = vrot.lane.b32.xlu0 %v2338, 64
      %v2392 = vpop.permute.xlu0 %2391
      %2395 = vrot.lane.b32.xlu0 %v2348, 80
      %v2396 = vpop.permute.xlu0 %2395
      %2399 = vrot.lane.b32.xlu0 %v2345, 96
      %v2400 = vpop.permute.xlu0 %2399
      %2403 = vrot.lane.b32.xlu0 %v2349, 112
      %v2404 = vpop.permute.xlu0 %2403
      %v2406 = vsel %vm537, %v2254, %v2352
      %v2407 = vsel %vm539, %v2406, %v2356
      %v2408 = vsel %vm541, %v2407, %v2360
      %v2409 = vsel %vm543, %v2408, %v2364
      %v2410 = vsel %vm545, %v2409, %v2368
      %v2411 = vsel %vm547, %v2410, %v2372
      %v2412 = vsel %vm549, %v2411, %v2376
      %v2413 = vsel %vm537, %v2322, %v2380
      %v2414 = vsel %vm539, %v2413, %v2384
      %v2415 = vsel %vm541, %v2414, %v2388
      %v2416 = vsel %vm543, %v2415, %v2392
      %v2417 = vsel %vm545, %v2416, %v2396
      %v2418 = vsel %vm547, %v2417, %v2400
      %v2419 = vsel %vm549, %v2418, %v2404
      %v2422 = vrot.slane %v788, 4
      %v2423 = vrot.slane %v795, 4
      %v2428 = vrot.slane %v1257, 4
      %v2429 = vrot.slane %v1264, 4
      %v2434 = vrot.slane %v1717, 4
      %v2435 = vrot.slane %v1724, 4
      %v2440 = vrot.slane %v2182, 4
      %v2441 = vrot.slane %v2189, 4
      %vm2444 = vcmask 1043456
      %v2445 = vsel %vm2444, %v550, %v2422
      %v2446 = vsel %vm2444, %v557, %v2423
      %v2447 = vsel %vm2444, %v1018, %v2428
      %v2448 = vsel %vm2444, %v1025, %v2429
      %v2449 = vsel %vm2444, %v1487, %v2434
      %v2450 = vsel %vm2444, %v1494, %v2435
      %v2451 = vsel %vm2444, %v1952, %v2440
      %v2452 = vsel %vm2444, %v1959, %v2441
      %v2453 = vld [vmem:[%s1] sm:$0xf]
      %v2454 = vld [vmem:[%s2] sm:$0xf]
      %2456 = vset.pattern.permute.xlu0 0
      %2457 = vperm.xlu0 %2456, %v2454
      %v2458 = vpop.permute.xlu0 %2457
      %vm2460 = vcmask 293888
      %v2462 = vsel %vm2460, %v2453, 0
      %v2465 = vsel %vm2444, %v2412, 0
      %v2468 = vsel %vm2444, %v2419, 0
      %2470 = vmatprep.subr.mxu0 %v2446
      %2471 = vmatpush1.msra.mxu0 %v2445
      %2472 = vmatprep.subr.mxu0 %v2448
      %2473 = vmatpush1.msra.mxu0 %v2447
      %2474 = vmatprep.subr.mxu0 %v2450
      %2475 = vmatpush1.msra.mxu0 %v2449
      %2476 = vmatprep.subr.mxu0 %v2452
      %2477 = vmatpush1.msra.mxu0 %v2451
      %2478 = vmatprep.subr.mxu0 %v2468
      %2479 = vmatpush1.msra.mxu0 %v2465
      %2480 = vmatprep.subr.mxu0 0.0
      %2481 = vmatpush1.msra.mxu0 0.0
      %2482 = vmatprep.subr.mxu0 0.0
      %2483 = vmatpush1.msra.mxu0 0.0
      %2484 = vmatprep.subr.mxu0 0.0
      %2485 = vmatpush1.msra.mxu0 0.0
      %2486 = vmatprep.subr.mxu0 0.0
      %2487 = vmatpush1.msra.mxu0 0.0
      %2488 = vmatprep.subr.mxu0 0.0
      %2489 = vmatpush1.msra.mxu0 0.0
      %2490 = vmatprep.subr.mxu0 0.0
      %2491 = vmatpush1.msra.mxu0 0.0
      %2492 = vmatprep.subr.mxu0 0.0
      %2493 = vmatpush1.msra.mxu0 0.0
      %2494 = vmatprep.subr.mxu0 0.0
      %2495 = vmatpush1.msra.mxu0 0.0
      %2496 = vmatprep.subr.mxu0 0.0
      %2497 = vmatpush1.msra.mxu0 0.0
      %2498 = vmatprep.subr.mxu0 0.0
      %2499 = vmatpush1.msra.mxu0 0.0
      %2500 = vmatprep.subr.mxu0 0.0
      %2501 = vmatpush1.msra.mxu0 0.0
      %2502 = vmatprep.subr.mxu0 0.0
      %2503 = vmatpush1.msra.mxu0 0.0
      %2504 = vmatprep.subr.mxu0 0.0
      %2505 = vmatpush1.msra.mxu0 0.0
      %2506 = vmatprep.subr.mxu0 0.0
      %2507 = vmatpush1.msra.mxu0 0.0
      %2508 = vmatprep.subr.mxu0 0.0
      %2509 = vmatpush1.msra.mxu0 0.0
      %2510 = vmatprep.subr.mxu0 0.0
      %2511 = vmatpush1.msra.mxu0 0.0
      %2512 = vmatprep.subr.mxu0 0.0
      %2513 = vmatpush1.msra.mxu0 0.0
      %2514 = vmatprep.subr.mxu0 0.0
      %2515 = vmatpush1.msra.mxu0 0.0
      %2516 = vmatprep.subr.mxu0 0.0
      %2517 = vmatpush1.msra.mxu0 0.0
      %2518 = vmatprep.subr.mxu0 0.0
      %2519 = vmatpush1.msra.mxu0 0.0
      %2520 = vmatprep.subr.mxu0 0.0
      %2521 = vmatpush1.msra.mxu0 0.0
      %2522 = vmatprep.subr.mxu0 0.0
      %2523 = vmatpush1.msra.mxu0 0.0
      %2524 = vmatprep.subr.mxu0 0.0
      %2525 = vmatpush1.msra.mxu0 0.0
      %2526 = vmatprep.subr.mxu0 0.0
      %2527 = vmatpush1.msra.mxu0 0.0
      %2528 = vmatprep.subr.mxu0 0.0
      %2529 = vmatpush1.msra.mxu0 0.0
      %2530 = vmatprep.subr.mxu0 0.0
      %2531 = vmatpush1.msra.mxu0 0.0
      %2532 = vmatprep.subr.mxu0 0.0
      %2533 = vmatpush1.msra.mxu0 0.0
      %2534 = vmatprep.mubr.f32.mxu0 0.0
      %2535 = vmatmul.mubr.f32.gmra.mrb[0].mxu0 %v2462
      %v2536 = vpop.f32.mrb[0].mxu0
      %v2537 = vadd.f32 %v2458, %v2536
      %v2538 = vpop.f32.mrb[0].mxu0
      %v2539 = vadd.f32 %v2458, %v2538
      %2540 = vdwg.mxu0
      %v2541 = vld [vmem:[%s3] sm:$0xf]
      %v2542 = vld [vmem:[%s4] sm:$0xf]
      %vm2543 = vcmask 1041408
      %v2544 = vsel %vm2543, %v2537, 0.0
      %v2545 = vsel %vm2543, %v2539, 0.0
      %v2546 = vadd.f32 %v2544, %v2545
      %2547 = vadd.xlane.f32.xlu0 %v2546
      %v2548 = vpop.xlane.xlu0 %2547
      %v2549 = vrot.slane %v2548, 4
      %v2550 = vadd.f32 %v2548, %v2549
      %v2551 = vrot.slane %v2550, 2
      %v2552 = vadd.f32 %v2550, %v2551
      %v2553 = vrot.slane %v2552, 1
      %v2554 = vadd.f32 %v2552, %v2553
      %s2555 = vtos %v2554
      %v2556 = vrcp.pop 512.0
      %s2557 = vtos %v2556
      %s2558 = smul.f32 %s2555, %s2557
      %v2559 = vstv %s2558
      %v2560 = vsub.f32 %v2537, %v2559
      %v2561 = vsub.f32 %v2539, %v2559
      %v2562 = vmul.f32 %v2560, %v2560
      %v2563 = vmul.f32 %v2561, %v2561
      %v2564 = vsel %vm2543, %v2562, 0.0
      %v2565 = vsel %vm2543, %v2563, 0.0
      %v2566 = vadd.f32 %v2564, %v2565
      %2567 = vadd.xlane.f32.xlu0 %v2566
      %v2568 = vpop.xlane.xlu0 %2567
      %v2569 = vrot.slane %v2568, 4
      %v2570 = vadd.f32 %v2568, %v2569
      %v2571 = vrot.slane %v2570, 2
      %v2572 = vadd.f32 %v2570, %v2571
      %v2573 = vrot.slane %v2572, 1
      %v2574 = vadd.f32 %v2572, %v2573
      %s2575 = vtos %v2574
      %v2576 = vrcp.pop 512.0
      %s2577 = vtos %v2576
      %s2578 = smul.f32 %s2575, %s2577
      %s2579 = sadd.f32 %s2578, 1e-05
      %v2580 = vstv %s2579
      %v2581 = vrsqrt.pop %v2580
      %s2582 = vtos %v2581
      %v2583 = vstv %s2582
      %v2584 = vmul.f32 %v2560, %v2583
      %v2585 = vmul.f32 %v2561, %v2583
      %2587 = vset.pattern.permute.xlu0 0
      %2588 = vperm.xlu0 %2587, %v2541
      %v2589 = vpop.permute.xlu0 %2588
      %v2591 = vmul.f32 %v2584, %v2589
      %v2592 = vmul.f32 %v2585, %v2589
      %2594 = vset.pattern.permute.xlu0 0
      %2595 = vperm.xlu0 %2594, %v2542
      %v2596 = vpop.permute.xlu0 %2595
      %v2598 = vadd.f32 %v2591, %v2596
      %v2599 = vadd.f32 %v2592, %v2596
      %v2602 = vrot.slane %v2537, 2
      %v2603 = vrot.slane %v2539, 2
      %v2606 = vsel %vm2543, %v2602, 0.0
      %v2607 = vsel %vm2543, %v2603, 0.0
      %v2608 = vadd.f32 %v2606, %v2607
      %2609 = vadd.xlane.f32.xlu0 %v2608
      %v2610 = vpop.xlane.xlu0 %2609
      %v2611 = vrot.slane %v2610, 4
      %v2612 = vadd.f32 %v2610, %v2611
      %v2613 = vrot.slane %v2612, 2
      %v2614 = vadd.f32 %v2612, %v2613
      %v2615 = vrot.slane %v2614, 1
      %v2616 = vadd.f32 %v2614, %v2615
      %s2617 = vtos %v2616
      %v2618 = vrcp.pop 512.0
      %s2619 = vtos %v2618
      %s2620 = smul.f32 %s2617, %s2619
      %v2621 = vstv %s2620
      %v2622 = vsub.f32 %v2537, %v2621
      %v2623 = vsub.f32 %v2539, %v2621
      %v2624 = vmul.f32 %v2622, %v2622
      %v2625 = vmul.f32 %v2623, %v2623
      %v2628 = vrot.slane %v2624, 2
      %v2629 = vrot.slane %v2625, 2
      %v2632 = vsel %vm2543, %v2628, 0.0
      %v2633 = vsel %vm2543, %v2629, 0.0
      %v2634 = vadd.f32 %v2632, %v2633
      %2635 = vadd.xlane.f32.xlu0 %v2634
      %v2636 = vpop.xlane.xlu0 %2635
      %v2637 = vrot.slane %v2636, 4
      %v2638 = vadd.f32 %v2636, %v2637
      %v2639 = vrot.slane %v2638, 2
      %v2640 = vadd.f32 %v2638, %v2639
      %v2641 = vrot.slane %v2640, 1
      %v2642 = vadd.f32 %v2640, %v2641
      %s2643 = vtos %v2642
      %v2644 = vrcp.pop 512.0
      %s2645 = vtos %v2644
      %s2646 = smul.f32 %s2643, %s2645
      %s2647 = sadd.f32 %s2646, 1e-05
      %v2648 = vstv %s2647
      %v2649 = vrsqrt.pop %v2648
      %s2650 = vtos %v2649
      %v2651 = vstv %s2650
      %v2652 = vmul.f32 %v2622, %v2651
      %v2653 = vmul.f32 %v2623, %v2651
      %v2654 = vmul.f32 %v2652, %v2589
      %v2655 = vmul.f32 %v2653, %v2589
      %v2656 = vadd.f32 %v2654, %v2596
      %v2657 = vadd.f32 %v2655, %v2596
      %v2658 = vsel %vm2543, %v2598, %v2656
      %v2659 = vsel %vm2543, %v2599, %v2657
      %v2660 = vmax.f32 %v2658, 0.0
      %v2661 = vmax.f32 %v2659, 0.0
      %vm2662 = vcmask 146432
      %2663 = vst.msk [vmem:[#allocation2] sm:$0xff] %vm2662, 0.0
      %2664 = vst.msk [vmem:[#allocation2 + $0x8] sm:$0xff] %vm2662, 0.0
      %vm2665 = vcmask 140288
      %2666 = vst.msk [vmem:[#allocation2 + $0x10] sm:$0x3] %vm2665, 0.0
      %2667 = vst.msk [vmem:[#allocation2 + $0x18] sm:$0xff] %vm2662, 0.0
      %2668 = vst.msk [vmem:[#allocation2 + $0x20] sm:$0xff] %vm2662, 0.0
      %2669 = vst.msk [vmem:[#allocation2 + $0x28] sm:$0x3] %vm2665, 0.0
      %2670 = vst.msk [vmem:[#allocation2 + $0x30] sm:$0xff] %vm2662, 0.0
      %2671 = vst.msk [vmem:[#allocation2 + $0x38] sm:$0xff] %vm2662, 0.0
      %2672 = vst.msk [vmem:[#allocation2 + $0x40] sm:$0x3] %vm2665, 0.0
      %2673 = vst.msk [vmem:[#allocation2 + $0x48] sm:$0xff] %vm2662, 0.0
      %2674 = vst.msk [vmem:[#allocation2 + $0x50] sm:$0xff] %vm2662, 0.0
      %2675 = vst.msk [vmem:[#allocation2 + $0x58] sm:$0x3] %vm2665, 0.0
      %2677 = vrot.lane.b32.xlu0 %v2660, 112
      %v2678 = vpop.permute.xlu0 %2677
      %2680 = vrot.lane.b32.xlu0 %v2660, 96
      %v2681 = vpop.permute.xlu0 %2680
      %2683 = vrot.lane.b32.xlu0 %v2660, 80
      %v2684 = vpop.permute.xlu0 %2683
      %2686 = vrot.lane.b32.xlu0 %v2660, 64
      %v2687 = vpop.permute.xlu0 %2686
      %2689 = vrot.lane.b32.xlu0 %v2660, 48
      %v2690 = vpop.permute.xlu0 %2689
      %2692 = vrot.lane.b32.xlu0 %v2660, 32
      %v2693 = vpop.permute.xlu0 %2692
      %2695 = vrot.lane.b32.xlu0 %v2660, 16
      %v2696 = vpop.permute.xlu0 %2695
      %2699 = vrot.lane.b32.xlu0 %v2661, 112
      %v2700 = vpop.permute.xlu0 %2699
      %2702 = vrot.lane.b32.xlu0 %v2661, 96
      %v2703 = vpop.permute.xlu0 %2702
      %2705 = vrot.lane.b32.xlu0 %v2661, 80
      %v2706 = vpop.permute.xlu0 %2705
      %2708 = vrot.lane.b32.xlu0 %v2661, 64
      %v2709 = vpop.permute.xlu0 %2708
      %2711 = vrot.lane.b32.xlu0 %v2661, 48
      %v2712 = vpop.permute.xlu0 %2711
      %2714 = vrot.lane.b32.xlu0 %v2661, 32
      %v2715 = vpop.permute.xlu0 %2714
      %2717 = vrot.lane.b32.xlu0 %v2661, 16
      %v2718 = vpop.permute.xlu0 %2717
      %v2720 = vcombine.low %v2660, %v2681
      %v2722 = vunpack.c.l.s4 1983009808
      %v2723 = vunpack.c.0.s8 %v2722
      %v2724 = vlaneseq
      %v2725 = vshrl.u32 %v2724, 7
      %v2726 = vsub.s32 %v2723, %v2725
      %v2727 = vrot.slane %v2720, %v2726
      %v2728 = vcombine.low %v2678, %v2684
      %v2730 = vunpack.c.l.s4 1983009808
      %v2731 = vunpack.c.0.s8 %v2730
      %v2732 = vlaneseq
      %v2733 = vshrl.u32 %v2732, 7
      %v2734 = vsub.s32 %v2731, %v2733
      %v2735 = vrot.slane %v2728, %v2734
      %v2736 = vcombine.low %v2687, %v2693
      %v2738 = vunpack.c.l.s4 1983009808
      %v2739 = vunpack.c.0.s8 %v2738
      %v2740 = vlaneseq
      %v2741 = vshrl.u32 %v2740, 7
      %v2742 = vsub.s32 %v2739, %v2741
      %v2743 = vrot.slane %v2736, %v2742
      %v2744 = vcombine.low %v2690, %v2696
      %v2746 = vunpack.c.l.s4 1983009808
      %v2747 = vunpack.c.0.s8 %v2746
      %v2748 = vlaneseq
      %v2749 = vshrl.u32 %v2748, 7
      %v2750 = vsub.s32 %v2747, %v2749
      %v2751 = vrot.slane %v2744, %v2750
      %v2752 = vcombine.low %v2727, %v2735
      %v2753 = vcombine.high %v2727, %v2735
      %v2755 = vunpack.c.l.s4 1934713408
      %v2756 = vunpack.c.0.s8 %v2755
      %v2757 = vlaneseq
      %v2758 = vshrl.u32 %v2757, 7
      %v2759 = vsub.s32 %v2756, %v2758
      %v2760 = vrot.slane %v2752, %v2759
      %v2762 = vunpack.c.l.s4 1934713408
      %v2763 = vunpack.c.0.s8 %v2762
      %v2764 = vlaneseq
      %v2765 = vshrl.u32 %v2764, 7
      %v2766 = vsub.s32 %v2763, %v2765
      %v2767 = vrot.slane %v2753, %v2766
      %v2768 = vcombine.low %v2743, %v2751
      %v2769 = vcombine.high %v2743, %v2751
      %v2771 = vunpack.c.l.s4 1934713408
      %v2772 = vunpack.c.0.s8 %v2771
      %v2773 = vlaneseq
      %v2774 = vshrl.u32 %v2773, 7
      %v2775 = vsub.s32 %v2772, %v2774
      %v2776 = vrot.slane %v2768, %v2775
      %v2778 = vunpack.c.l.s4 1934713408
      %v2779 = vunpack.c.0.s8 %v2778
      %v2780 = vlaneseq
      %v2781 = vshrl.u32 %v2780, 7
      %v2782 = vsub.s32 %v2779, %v2781
      %v2783 = vrot.slane %v2769, %v2782
      %v2784 = vcombine.low %v2760, %v2776
      %v2785 = vcombine.high %v2760, %v2776
      %v2786 = vcombine.low %v2767, %v2783
      %v2787 = vcombine.high %v2767, %v2783
      %v2788 = vcombine.low %v2661, %v2703
      %v2790 = vunpack.c.l.s4 1983009808
      %v2791 = vunpack.c.0.s8 %v2790
      %v2792 = vlaneseq
      %v2793 = vshrl.u32 %v2792, 7
      %v2794 = vsub.s32 %v2791, %v2793
      %v2795 = vrot.slane %v2788, %v2794
      %v2796 = vcombine.low %v2700, %v2706
      %v2798 = vunpack.c.l.s4 1983009808
      %v2799 = vunpack.c.0.s8 %v2798
      %v2800 = vlaneseq
      %v2801 = vshrl.u32 %v2800, 7
      %v2802 = vsub.s32 %v2799, %v2801
      %v2803 = vrot.slane %v2796, %v2802
      %v2804 = vcombine.low %v2709, %v2715
      %v2806 = vunpack.c.l.s4 1983009808
      %v2807 = vunpack.c.0.s8 %v2806
      %v2808 = vlaneseq
      %v2809 = vshrl.u32 %v2808, 7
      %v2810 = vsub.s32 %v2807, %v2809
      %v2811 = vrot.slane %v2804, %v2810
      %v2812 = vcombine.low %v2712, %v2718
      %v2814 = vunpack.c.l.s4 1983009808
      %v2815 = vunpack.c.0.s8 %v2814
      %v2816 = vlaneseq
      %v2817 = vshrl.u32 %v2816, 7
      %v2818 = vsub.s32 %v2815, %v2817
      %v2819 = vrot.slane %v2812, %v2818
      %v2820 = vcombine.low %v2795, %v2803
      %v2821 = vcombine.high %v2795, %v2803
      %v2823 = vunpack.c.l.s4 1934713408
      %v2824 = vunpack.c.0.s8 %v2823
      %v2825 = vlaneseq
      %v2826 = vshrl.u32 %v2825, 7
      %v2827 = vsub.s32 %v2824, %v2826
      %v2828 = vrot.slane %v2820, %v2827
      %v2830 = vunpack.c.l.s4 1934713408
      %v2831 = vunpack.c.0.s8 %v2830
      %v2832 = vlaneseq
      %v2833 = vshrl.u32 %v2832, 7
      %v2834 = vsub.s32 %v2831, %v2833
      %v2835 = vrot.slane %v2821, %v2834
      %v2836 = vcombine.low %v2811, %v2819
      %v2837 = vcombine.high %v2811, %v2819
      %v2839 = vunpack.c.l.s4 1934713408
      %v2840 = vunpack.c.0.s8 %v2839
      %v2841 = vlaneseq
      %v2842 = vshrl.u32 %v2841, 7
      %v2843 = vsub.s32 %v2840, %v2842
      %v2844 = vrot.slane %v2836, %v2843
      %v2846 = vunpack.c.l.s4 1934713408
      %v2847 = vunpack.c.0.s8 %v2846
      %v2848 = vlaneseq
      %v2849 = vshrl.u32 %v2848, 7
      %v2850 = vsub.s32 %v2847, %v2849
      %v2851 = vrot.slane %v2837, %v2850
      %v2852 = vcombine.low %v2828, %v2844
      %v2853 = vcombine.high %v2828, %v2844
      %v2854 = vcombine.low %v2835, %v2851
      %v2855 = vcombine.high %v2835, %v2851
      %2864 = vrot.lane.b32.xlu0 %v2784, 1
      %v2865 = vpop.permute.xlu0 %2864
      %2866 = vrot.lane.b32.xlu0 %v2852, 1
      %v2867 = vpop.permute.xlu0 %2866
      %2868 = vrot.lane.b32.xlu0 %v2785, 1
      %v2869 = vpop.permute.xlu0 %2868
      %2870 = vrot.lane.b32.xlu0 %v2853, 1
      %v2871 = vpop.permute.xlu0 %2870
      %2872 = vrot.lane.b32.xlu0 %v2786, 1
      %v2873 = vpop.permute.xlu0 %2872
      %2874 = vrot.lane.b32.xlu0 %v2854, 1
      %v2875 = vpop.permute.xlu0 %2874
      %2876 = vrot.lane.b32.xlu0 %v2787, 1
      %v2877 = vpop.permute.xlu0 %2876
      %2878 = vrot.lane.b32.xlu0 %v2855, 1
      %v2879 = vpop.permute.xlu0 %2878
      %vm2888 = vcmask 138248
      %2889 = vst.msk [vmem:[#allocation2 + $0x1] sm:$0xff] %vm2888, %v2865
      %2890 = vst.msk [vmem:[#allocation2 + $0x9] sm:$0xff] %vm2888, %v2867
      %2891 = vst.msk [vmem:[#allocation2 + $0x19] sm:$0xff] %vm2888, %v2869
      %2892 = vst.msk [vmem:[#allocation2 + $0x21] sm:$0xff] %vm2888, %v2871
      %2893 = vst.msk [vmem:[#allocation2 + $0x31] sm:$0xff] %vm2888, %v2873
      %2894 = vst.msk [vmem:[#allocation2 + $0x39] sm:$0xff] %vm2888, %v2875
      %2895 = vst.msk [vmem:[#allocation2 + $0x49] sm:$0xff] %vm2888, %v2877
      %2896 = vst.msk [vmem:[#allocation2 + $0x51] sm:$0xff] %vm2888, %v2879
      %v2897 = vld [vmem:[#allocation2] sm:$0xff]
      %v2898 = vld [vmem:[#allocation2 + $0x8] sm:$0xff]
      %v2899 = vld [vmem:[#allocation2 + $0x10] sm:$0x3]
      %v2900 = vld [vmem:[#allocation2 + $0x18] sm:$0xff]
      %v2901 = vld [vmem:[#allocation2 + $0x20] sm:$0xff]
      %v2902 = vld [vmem:[#allocation2 + $0x28] sm:$0x3]
      %v2903 = vld [vmem:[#allocation2 + $0x30] sm:$0xff]
      %v2904 = vld [vmem:[#allocation2 + $0x38] sm:$0xff]
      %v2905 = vld [vmem:[#allocation2 + $0x40] sm:$0x3]
      %v2906 = vld [vmem:[#allocation2 + $0x48] sm:$0xff]
      %v2907 = vld [vmem:[#allocation2 + $0x50] sm:$0xff]
      %v2908 = vld [vmem:[#allocation2 + $0x58] sm:$0x3]
      %v2909 = vcombine.low %v2897, %v2903
      %v2910 = vcombine.high %v2897, %v2903
      %v2912 = vunpack.c.l.s4 1983009808
      %v2913 = vunpack.c.0.s8 %v2912
      %v2914 = vlaneseq
      %v2915 = vshrl.u32 %v2914, 7
      %v2916 = vsub.s32 %v2913, %v2915
      %v2917 = vrot.slane %v2909, %v2916
      %v2919 = vunpack.c.l.s4 1983009808
      %v2920 = vunpack.c.0.s8 %v2919
      %v2921 = vlaneseq
      %v2922 = vshrl.u32 %v2921, 7
      %v2923 = vsub.s32 %v2920, %v2922
      %v2924 = vrot.slane %v2910, %v2923
      %v2925 = vcombine.low %v2900, %v2906
      %v2926 = vcombine.high %v2900, %v2906
      %v2928 = vunpack.c.l.s4 1983009808
      %v2929 = vunpack.c.0.s8 %v2928
      %v2930 = vlaneseq
      %v2931 = vshrl.u32 %v2930, 7
      %v2932 = vsub.s32 %v2929, %v2931
      %v2933 = vrot.slane %v2925, %v2932
      %v2935 = vunpack.c.l.s4 1983009808
      %v2936 = vunpack.c.0.s8 %v2935
      %v2937 = vlaneseq
      %v2938 = vshrl.u32 %v2937, 7
      %v2939 = vsub.s32 %v2936, %v2938
      %v2940 = vrot.slane %v2926, %v2939
      %v2941 = vcombine.low %v2917, %v2933
      %v2942 = vcombine.high %v2917, %v2933
      %v2944 = vunpack.c.l.s4 1934713408
      %v2945 = vunpack.c.0.s8 %v2944
      %v2946 = vlaneseq
      %v2947 = vshrl.u32 %v2946, 7
      %v2948 = vsub.s32 %v2945, %v2947
      %v2949 = vrot.slane %v2941, %v2948
      %v2951 = vunpack.c.l.s4 1934713408
      %v2952 = vunpack.c.0.s8 %v2951
      %v2953 = vlaneseq
      %v2954 = vshrl.u32 %v2953, 7
      %v2955 = vsub.s32 %v2952, %v2954
      %v2956 = vrot.slane %v2942, %v2955
      %v2957 = vcombine.low %v2924, %v2940
      %v2958 = vcombine.high %v2924, %v2940
      %v2960 = vunpack.c.l.s4 1934713408
      %v2961 = vunpack.c.0.s8 %v2960
      %v2962 = vlaneseq
      %v2963 = vshrl.u32 %v2962, 7
      %v2964 = vsub.s32 %v2961, %v2963
      %v2965 = vrot.slane %v2957, %v2964
      %v2967 = vunpack.c.l.s4 1934713408
      %v2968 = vunpack.c.0.s8 %v2967
      %v2969 = vlaneseq
      %v2970 = vshrl.u32 %v2969, 7
      %v2971 = vsub.s32 %v2968, %v2970
      %v2972 = vrot.slane %v2958, %v2971
      %v2973 = vcombine.high %v2949, 0.0
      %v2974 = vcombine.high %v2956, 0.0
      %v2975 = vcombine.high %v2965, 0.0
      %v2976 = vcombine.high %v2972, 0.0
      %v2977 = vcombine.low %v2898, %v2904
      %v2978 = vcombine.high %v2898, %v2904
      %v2980 = vunpack.c.l.s4 1983009808
      %v2981 = vunpack.c.0.s8 %v2980
      %v2982 = vlaneseq
      %v2983 = vshrl.u32 %v2982, 7
      %v2984 = vsub.s32 %v2981, %v2983
      %v2985 = vrot.slane %v2977, %v2984
      %v2987 = vunpack.c.l.s4 1983009808
      %v2988 = vunpack.c.0.s8 %v2987
      %v2989 = vlaneseq
      %v2990 = vshrl.u32 %v2989, 7
      %v2991 = vsub.s32 %v2988, %v2990
      %v2992 = vrot.slane %v2978, %v2991
      %v2993 = vcombine.low %v2901, %v2907
      %v2994 = vcombine.high %v2901, %v2907
      %v2996 = vunpack.c.l.s4 1983009808
      %v2997 = vunpack.c.0.s8 %v2996
      %v2998 = vlaneseq
      %v2999 = vshrl.u32 %v2998, 7
      %v3000 = vsub.s32 %v2997, %v2999
      %v3001 = vrot.slane %v2993, %v3000
      %v3003 = vunpack.c.l.s4 1983009808
      %v3004 = vunpack.c.0.s8 %v3003
      %v3005 = vlaneseq
      %v3006 = vshrl.u32 %v3005, 7
      %v3007 = vsub.s32 %v3004, %v3006
      %v3008 = vrot.slane %v2994, %v3007
      %v3009 = vcombine.low %v2985, %v3001
      %v3010 = vcombine.high %v2985, %v3001
      %v3012 = vunpack.c.l.s4 1934713408
      %v3013 = vunpack.c.0.s8 %v3012
      %v3014 = vlaneseq
      %v3015 = vshrl.u32 %v3014, 7
      %v3016 = vsub.s32 %v3013, %v3015
      %v3017 = vrot.slane %v3009, %v3016
      %v3019 = vunpack.c.l.s4 1934713408
      %v3020 = vunpack.c.0.s8 %v3019
      %v3021 = vlaneseq
      %v3022 = vshrl.u32 %v3021, 7
      %v3023 = vsub.s32 %v3020, %v3022
      %v3024 = vrot.slane %v3010, %v3023
      %v3025 = vcombine.low %v2992, %v3008
      %v3026 = vcombine.high %v2992, %v3008
      %v3028 = vunpack.c.l.s4 1934713408
      %v3029 = vunpack.c.0.s8 %v3028
      %v3030 = vlaneseq
      %v3031 = vshrl.u32 %v3030, 7
      %v3032 = vsub.s32 %v3029, %v3031
      %v3033 = vrot.slane %v3025, %v3032
      %v3035 = vunpack.c.l.s4 1934713408
      %v3036 = vunpack.c.0.s8 %v3035
      %v3037 = vlaneseq
      %v3038 = vshrl.u32 %v3037, 7
      %v3039 = vsub.s32 %v3036, %v3038
      %v3040 = vrot.slane %v3026, %v3039
      %v3041 = vcombine.high %v3017, 0.0
      %v3042 = vcombine.high %v3024, 0.0
      %v3043 = vcombine.high %v3033, 0.0
      %v3044 = vcombine.high %v3040, 0.0
      %3046 = vrot.lane.b32.xlu0 %v2973, 16
      %v3047 = vpop.permute.xlu0 %3046
      %3050 = vrot.lane.b32.xlu0 %v2956, 32
      %v3051 = vpop.permute.xlu0 %3050
      %3054 = vrot.lane.b32.xlu0 %v2974, 48
      %v3055 = vpop.permute.xlu0 %3054
      %3058 = vrot.lane.b32.xlu0 %v2965, 64
      %v3059 = vpop.permute.xlu0 %3058
      %3062 = vrot.lane.b32.xlu0 %v2975, 80
      %v3063 = vpop.permute.xlu0 %3062
      %3066 = vrot.lane.b32.xlu0 %v2972, 96
      %v3067 = vpop.permute.xlu0 %3066
      %3070 = vrot.lane.b32.xlu0 %v2976, 112
      %v3071 = vpop.permute.xlu0 %3070
      %3074 = vrot.lane.b32.xlu0 %v3041, 16
      %v3075 = vpop.permute.xlu0 %3074
      %3078 = vrot.lane.b32.xlu0 %v3024, 32
      %v3079 = vpop.permute.xlu0 %3078
      %3082 = vrot.lane.b32.xlu0 %v3042, 48
      %v3083 = vpop.permute.xlu0 %3082
      %3086 = vrot.lane.b32.xlu0 %v3033, 64
      %v3087 = vpop.permute.xlu0 %3086
      %3090 = vrot.lane.b32.xlu0 %v3043, 80
      %v3091 = vpop.permute.xlu0 %3090
      %3094 = vrot.lane.b32.xlu0 %v3040, 96
      %v3095 = vpop.permute.xlu0 %3094
      %3098 = vrot.lane.b32.xlu0 %v3044, 112
      %v3099 = vpop.permute.xlu0 %3098
      %v3101 = vsel %vm537, %v2949, %v3047
      %v3102 = vsel %vm539, %v3101, %v3051
      %v3103 = vsel %vm541, %v3102, %v3055
      %v3104 = vsel %vm543, %v3103, %v3059
      %v3105 = vsel %vm545, %v3104, %v3063
      %v3106 = vsel %vm547, %v3105, %v3067
      %v3107 = vsel %vm549, %v3106, %v3071
      %v3108 = vsel %vm537, %v3017, %v3075
      %v3109 = vsel %vm539, %v3108, %v3079
      %v3110 = vsel %vm541, %v3109, %v3083
      %v3111 = vsel %vm543, %v3110, %v3087
      %v3112 = vsel %vm545, %v3111, %v3091
      %v3113 = vsel %vm547, %v3112, %v3095
      %v3114 = vsel %vm549, %v3113, %v3099
      %3123 = vrot.lane.b32.xlu0 %v2897, 127
      %v3124 = vpop.permute.xlu0 %3123
      %3125 = vrot.lane.b32.xlu0 %v2898, 127
      %v3126 = vpop.permute.xlu0 %3125
      %3127 = vrot.lane.b32.xlu0 %v2900, 127
      %v3128 = vpop.permute.xlu0 %3127
      %3129 = vrot.lane.b32.xlu0 %v2901, 127
      %v3130 = vpop.permute.xlu0 %3129
      %3131 = vrot.lane.b32.xlu0 %v2903, 127
      %v3132 = vpop.permute.xlu0 %3131
      %3133 = vrot.lane.b32.xlu0 %v2904, 127
      %v3134 = vpop.permute.xlu0 %3133
      %3135 = vrot.lane.b32.xlu0 %v2906, 127
      %v3136 = vpop.permute.xlu0 %3135
      %3137 = vrot.lane.b32.xlu0 %v2907, 127
      %v3138 = vpop.permute.xlu0 %3137
      %v3147 = vcombine.low %v3124, %v3132
      %v3148 = vcombine.high %v3124, %v3132
      %v3150 = vunpack.c.l.s4 1983009808
      %v3151 = vunpack.c.0.s8 %v3150
      %v3152 = vlaneseq
      %v3153 = vshrl.u32 %v3152, 7
      %v3154 = vsub.s32 %v3151, %v3153
      %v3155 = vrot.slane %v3147, %v3154
      %v3157 = vunpack.c.l.s4 1983009808
      %v3158 = vunpack.c.0.s8 %v3157
      %v3159 = vlaneseq
      %v3160 = vshrl.u32 %v3159, 7
      %v3161 = vsub.s32 %v3158, %v3160
      %v3162 = vrot.slane %v3148, %v3161
      %v3163 = vcombine.low %v3128, %v3136
      %v3164 = vcombine.high %v3128, %v3136
      %v3166 = vunpack.c.l.s4 1983009808
      %v3167 = vunpack.c.0.s8 %v3166
      %v3168 = vlaneseq
      %v3169 = vshrl.u32 %v3168, 7
      %v3170 = vsub.s32 %v3167, %v3169
      %v3171 = vrot.slane %v3163, %v3170
      %v3173 = vunpack.c.l.s4 1983009808
      %v3174 = vunpack.c.0.s8 %v3173
      %v3175 = vlaneseq
      %v3176 = vshrl.u32 %v3175, 7
      %v3177 = vsub.s32 %v3174, %v3176
      %v3178 = vrot.slane %v3164, %v3177
      %v3179 = vcombine.low %v3155, %v3171
      %v3180 = vcombine.high %v3155, %v3171
      %v3182 = vunpack.c.l.s4 1934713408
      %v3183 = vunpack.c.0.s8 %v3182
      %v3184 = vlaneseq
      %v3185 = vshrl.u32 %v3184, 7
      %v3186 = vsub.s32 %v3183, %v3185
      %v3187 = vrot.slane %v3179, %v3186
      %v3189 = vunpack.c.l.s4 1934713408
      %v3190 = vunpack.c.0.s8 %v3189
      %v3191 = vlaneseq
      %v3192 = vshrl.u32 %v3191, 7
      %v3193 = vsub.s32 %v3190, %v3192
      %v3194 = vrot.slane %v3180, %v3193
      %v3195 = vcombine.low %v3162, %v3178
      %v3196 = vcombine.high %v3162, %v3178
      %v3198 = vunpack.c.l.s4 1934713408
      %v3199 = vunpack.c.0.s8 %v3198
      %v3200 = vlaneseq
      %v3201 = vshrl.u32 %v3200, 7
      %v3202 = vsub.s32 %v3199, %v3201
      %v3203 = vrot.slane %v3195, %v3202
      %v3205 = vunpack.c.l.s4 1934713408
      %v3206 = vunpack.c.0.s8 %v3205
      %v3207 = vlaneseq
      %v3208 = vshrl.u32 %v3207, 7
      %v3209 = vsub.s32 %v3206, %v3208
      %v3210 = vrot.slane %v3196, %v3209
      %v3211 = vcombine.high %v3187, 0.0
      %v3212 = vcombine.high %v3194, 0.0
      %v3213 = vcombine.high %v3203, 0.0
      %v3214 = vcombine.high %v3210, 0.0
      %v3215 = vcombine.low %v3126, %v3134
      %v3216 = vcombine.high %v3126, %v3134
      %v3218 = vunpack.c.l.s4 1983009808
      %v3219 = vunpack.c.0.s8 %v3218
      %v3220 = vlaneseq
      %v3221 = vshrl.u32 %v3220, 7
      %v3222 = vsub.s32 %v3219, %v3221
      %v3223 = vrot.slane %v3215, %v3222
      %v3225 = vunpack.c.l.s4 1983009808
      %v3226 = vunpack.c.0.s8 %v3225
      %v3227 = vlaneseq
      %v3228 = vshrl.u32 %v3227, 7
      %v3229 = vsub.s32 %v3226, %v3228
      %v3230 = vrot.slane %v3216, %v3229
      %v3231 = vcombine.low %v3130, %v3138
      %v3232 = vcombine.high %v3130, %v3138
      %v3234 = vunpack.c.l.s4 1983009808
      %v3235 = vunpack.c.0.s8 %v3234
      %v3236 = vlaneseq
      %v3237 = vshrl.u32 %v3236, 7
      %v3238 = vsub.s32 %v3235, %v3237
      %v3239 = vrot.slane %v3231, %v3238
      %v3241 = vunpack.c.l.s4 1983009808
      %v3242 = vunpack.c.0.s8 %v3241
      %v3243 = vlaneseq
      %v3244 = vshrl.u32 %v3243, 7
      %v3245 = vsub.s32 %v3242, %v3244
      %v3246 = vrot.slane %v3232, %v3245
      %v3247 = vcombine.low %v3223, %v3239
      %v3248 = vcombine.high %v3223, %v3239
      %v3250 = vunpack.c.l.s4 1934713408
      %v3251 = vunpack.c.0.s8 %v3250
      %v3252 = vlaneseq
      %v3253 = vshrl.u32 %v3252, 7
      %v3254 = vsub.s32 %v3251, %v3253
      %v3255 = vrot.slane %v3247, %v3254
      %v3257 = vunpack.c.l.s4 1934713408
      %v3258 = vunpack.c.0.s8 %v3257
      %v3259 = vlaneseq
      %v3260 = vshrl.u32 %v3259, 7
      %v3261 = vsub.s32 %v3258, %v3260
      %v3262 = vrot.slane %v3248, %v3261
      %v3263 = vcombine.low %v3230, %v3246
      %v3264 = vcombine.high %v3230, %v3246
      %v3266 = vunpack.c.l.s4 1934713408
      %v3267 = vunpack.c.0.s8 %v3266
      %v3268 = vlaneseq
      %v3269 = vshrl.u32 %v3268, 7
      %v3270 = vsub.s32 %v3267, %v3269
      %v3271 = vrot.slane %v3263, %v3270
      %v3273 = vunpack.c.l.s4 1934713408
      %v3274 = vunpack.c.0.s8 %v3273
      %v3275 = vlaneseq
      %v3276 = vshrl.u32 %v3275, 7
      %v3277 = vsub.s32 %v3274, %v3276
      %v3278 = vrot.slane %v3264, %v3277
      %v3279 = vcombine.high %v3255, 0.0
      %v3280 = vcombine.high %v3262, 0.0
      %v3281 = vcombine.high %v3271, 0.0
      %v3282 = vcombine.high %v3278, 0.0
      %3284 = vrot.lane.b32.xlu0 %v3211, 16
      %v3285 = vpop.permute.xlu0 %3284
      %3288 = vrot.lane.b32.xlu0 %v3194, 32
      %v3289 = vpop.permute.xlu0 %3288
      %3292 = vrot.lane.b32.xlu0 %v3212, 48
      %v3293 = vpop.permute.xlu0 %3292
      %3296 = vrot.lane.b32.xlu0 %v3203, 64
      %v3297 = vpop.permute.xlu0 %3296
      %3300 = vrot.lane.b32.xlu0 %v3213, 80
      %v3301 = vpop.permute.xlu0 %3300
      %3304 = vrot.lane.b32.xlu0 %v3210, 96
      %v3305 = vpop.permute.xlu0 %3304
      %3308 = vrot.lane.b32.xlu0 %v3214, 112
      %v3309 = vpop.permute.xlu0 %3308
      %3312 = vrot.lane.b32.xlu0 %v3279, 16
      %v3313 = vpop.permute.xlu0 %3312
      %3316 = vrot.lane.b32.xlu0 %v3262, 32
      %v3317 = vpop.permute.xlu0 %3316
      %3320 = vrot.lane.b32.xlu0 %v3280, 48
      %v3321 = vpop.permute.xlu0 %3320
      %3324 = vrot.lane.b32.xlu0 %v3271, 64
      %v3325 = vpop.permute.xlu0 %3324
      %3328 = vrot.lane.b32.xlu0 %v3281, 80
      %v3329 = vpop.permute.xlu0 %3328
      %3332 = vrot.lane.b32.xlu0 %v3278, 96
      %v3333 = vpop.permute.xlu0 %3332
      %3336 = vrot.lane.b32.xlu0 %v3282, 112
      %v3337 = vpop.permute.xlu0 %3336
      %v3339 = vsel %vm537, %v3187, %v3285
      %v3340 = vsel %vm539, %v3339, %v3289
      %v3341 = vsel %vm541, %v3340, %v3293
      %v3342 = vsel %vm543, %v3341, %v3297
      %v3343 = vsel %vm545, %v3342, %v3301
      %v3344 = vsel %vm547, %v3343, %v3305
      %v3345 = vsel %vm549, %v3344, %v3309
      %v3346 = vsel %vm537, %v3255, %v3313
      %v3347 = vsel %vm539, %v3346, %v3317
      %v3348 = vsel %vm541, %v3347, %v3321
      %v3349 = vsel %vm543, %v3348, %v3325
      %v3350 = vsel %vm545, %v3349, %v3329
      %v3351 = vsel %vm547, %v3350, %v3333
      %v3352 = vsel %vm549, %v3351, %v3337
      %3353 = vrot.lane.b32.xlu0 %v2897, 126
      %v3354 = vpop.permute.xlu0 %3353
      %3355 = vrot.lane.b32.xlu0 %v2898, 126
      %v3356 = vpop.permute.xlu0 %3355
      %3357 = vrot.lane.b32.xlu0 %v2900, 126
      %v3358 = vpop.permute.xlu0 %3357
      %3359 = vrot.lane.b32.xlu0 %v2901, 126
      %v3360 = vpop.permute.xlu0 %3359
      %3361 = vrot.lane.b32.xlu0 %v2903, 126
      %v3362 = vpop.permute.xlu0 %3361
      %3363 = vrot.lane.b32.xlu0 %v2904, 126
      %v3364 = vpop.permute.xlu0 %3363
      %3365 = vrot.lane.b32.xlu0 %v2906, 126
      %v3366 = vpop.permute.xlu0 %3365
      %3367 = vrot.lane.b32.xlu0 %v2907, 126
      %v3368 = vpop.permute.xlu0 %3367
      %v3377 = vcombine.low %v3354, %v3362
      %v3378 = vcombine.high %v3354, %v3362
      %v3380 = vunpack.c.l.s4 1983009808
      %v3381 = vunpack.c.0.s8 %v3380
      %v3382 = vlaneseq
      %v3383 = vshrl.u32 %v3382, 7
      %v3384 = vsub.s32 %v3381, %v3383
      %v3385 = vrot.slane %v3377, %v3384
      %v3387 = vunpack.c.l.s4 1983009808
      %v3388 = vunpack.c.0.s8 %v3387
      %v3389 = vlaneseq
      %v3390 = vshrl.u32 %v3389, 7
      %v3391 = vsub.s32 %v3388, %v3390
      %v3392 = vrot.slane %v3378, %v3391
      %v3393 = vcombine.low %v3358, %v3366
      %v3394 = vcombine.high %v3358, %v3366
      %v3396 = vunpack.c.l.s4 1983009808
      %v3397 = vunpack.c.0.s8 %v3396
      %v3398 = vlaneseq
      %v3399 = vshrl.u32 %v3398, 7
      %v3400 = vsub.s32 %v3397, %v3399
      %v3401 = vrot.slane %v3393, %v3400
      %v3403 = vunpack.c.l.s4 1983009808
      %v3404 = vunpack.c.0.s8 %v3403
      %v3405 = vlaneseq
      %v3406 = vshrl.u32 %v3405, 7
      %v3407 = vsub.s32 %v3404, %v3406
      %v3408 = vrot.slane %v3394, %v3407
      %v3409 = vcombine.low %v3385, %v3401
      %v3410 = vcombine.high %v3385, %v3401
      %v3412 = vunpack.c.l.s4 1934713408
      %v3413 = vunpack.c.0.s8 %v3412
      %v3414 = vlaneseq
      %v3415 = vshrl.u32 %v3414, 7
      %v3416 = vsub.s32 %v3413, %v3415
      %v3417 = vrot.slane %v3409, %v3416
      %v3419 = vunpack.c.l.s4 1934713408
      %v3420 = vunpack.c.0.s8 %v3419
      %v3421 = vlaneseq
      %v3422 = vshrl.u32 %v3421, 7
      %v3423 = vsub.s32 %v3420, %v3422
      %v3424 = vrot.slane %v3410, %v3423
      %v3425 = vcombine.low %v3392, %v3408
      %v3426 = vcombine.high %v3392, %v3408
      %v3428 = vunpack.c.l.s4 1934713408
      %v3429 = vunpack.c.0.s8 %v3428
      %v3430 = vlaneseq
      %v3431 = vshrl.u32 %v3430, 7
      %v3432 = vsub.s32 %v3429, %v3431
      %v3433 = vrot.slane %v3425, %v3432
      %v3435 = vunpack.c.l.s4 1934713408
      %v3436 = vunpack.c.0.s8 %v3435
      %v3437 = vlaneseq
      %v3438 = vshrl.u32 %v3437, 7
      %v3439 = vsub.s32 %v3436, %v3438
      %v3440 = vrot.slane %v3426, %v3439
      %v3441 = vcombine.high %v3417, 0.0
      %v3442 = vcombine.high %v3424, 0.0
      %v3443 = vcombine.high %v3433, 0.0
      %v3444 = vcombine.high %v3440, 0.0
      %v3445 = vcombine.low %v3356, %v3364
      %v3446 = vcombine.high %v3356, %v3364
      %v3448 = vunpack.c.l.s4 1983009808
      %v3449 = vunpack.c.0.s8 %v3448
      %v3450 = vlaneseq
      %v3451 = vshrl.u32 %v3450, 7
      %v3452 = vsub.s32 %v3449, %v3451
      %v3453 = vrot.slane %v3445, %v3452
      %v3455 = vunpack.c.l.s4 1983009808
      %v3456 = vunpack.c.0.s8 %v3455
      %v3457 = vlaneseq
      %v3458 = vshrl.u32 %v3457, 7
      %v3459 = vsub.s32 %v3456, %v3458
      %v3460 = vrot.slane %v3446, %v3459
      %v3461 = vcombine.low %v3360, %v3368
      %v3462 = vcombine.high %v3360, %v3368
      %v3464 = vunpack.c.l.s4 1983009808
      %v3465 = vunpack.c.0.s8 %v3464
      %v3466 = vlaneseq
      %v3467 = vshrl.u32 %v3466, 7
      %v3468 = vsub.s32 %v3465, %v3467
      %v3469 = vrot.slane %v3461, %v3468
      %v3471 = vunpack.c.l.s4 1983009808
      %v3472 = vunpack.c.0.s8 %v3471
      %v3473 = vlaneseq
      %v3474 = vshrl.u32 %v3473, 7
      %v3475 = vsub.s32 %v3472, %v3474
      %v3476 = vrot.slane %v3462, %v3475
      %v3477 = vcombine.low %v3453, %v3469
      %v3478 = vcombine.high %v3453, %v3469
      %v3480 = vunpack.c.l.s4 1934713408
      %v3481 = vunpack.c.0.s8 %v3480
      %v3482 = vlaneseq
      %v3483 = vshrl.u32 %v3482, 7
      %v3484 = vsub.s32 %v3481, %v3483
      %v3485 = vrot.slane %v3477, %v3484
      %v3487 = vunpack.c.l.s4 1934713408
      %v3488 = vunpack.c.0.s8 %v3487
      %v3489 = vlaneseq
      %v3490 = vshrl.u32 %v3489, 7
      %v3491 = vsub.s32 %v3488, %v3490
      %v3492 = vrot.slane %v3478, %v3491
      %v3493 = vcombine.low %v3460, %v3476
      %v3494 = vcombine.high %v3460, %v3476
      %v3496 = vunpack.c.l.s4 1934713408
      %v3497 = vunpack.c.0.s8 %v3496
      %v3498 = vlaneseq
      %v3499 = vshrl.u32 %v3498, 7
      %v3500 = vsub.s32 %v3497, %v3499
      %v3501 = vrot.slane %v3493, %v3500
      %v3503 = vunpack.c.l.s4 1934713408
      %v3504 = vunpack.c.0.s8 %v3503
      %v3505 = vlaneseq
      %v3506 = vshrl.u32 %v3505, 7
      %v3507 = vsub.s32 %v3504, %v3506
      %v3508 = vrot.slane %v3494, %v3507
      %v3509 = vcombine.high %v3485, 0.0
      %v3510 = vcombine.high %v3492, 0.0
      %v3511 = vcombine.high %v3501, 0.0
      %v3512 = vcombine.high %v3508, 0.0
      %3514 = vrot.lane.b32.xlu0 %v3441, 16
      %v3515 = vpop.permute.xlu0 %3514
      %3518 = vrot.lane.b32.xlu0 %v3424, 32
      %v3519 = vpop.permute.xlu0 %3518
      %3522 = vrot.lane.b32.xlu0 %v3442, 48
      %v3523 = vpop.permute.xlu0 %3522
      %3526 = vrot.lane.b32.xlu0 %v3433, 64
      %v3527 = vpop.permute.xlu0 %3526
      %3530 = vrot.lane.b32.xlu0 %v3443, 80
      %v3531 = vpop.permute.xlu0 %3530
      %3534 = vrot.lane.b32.xlu0 %v3440, 96
      %v3535 = vpop.permute.xlu0 %3534
      %3538 = vrot.lane.b32.xlu0 %v3444, 112
      %v3539 = vpop.permute.xlu0 %3538
      %3542 = vrot.lane.b32.xlu0 %v3509, 16
      %v3543 = vpop.permute.xlu0 %3542
      %3546 = vrot.lane.b32.xlu0 %v3492, 32
      %v3547 = vpop.permute.xlu0 %3546
      %3550 = vrot.lane.b32.xlu0 %v3510, 48
      %v3551 = vpop.permute.xlu0 %3550
      %3554 = vrot.lane.b32.xlu0 %v3501, 64
      %v3555 = vpop.permute.xlu0 %3554
      %3558 = vrot.lane.b32.xlu0 %v3511, 80
      %v3559 = vpop.permute.xlu0 %3558
      %3562 = vrot.lane.b32.xlu0 %v3508, 96
      %v3563 = vpop.permute.xlu0 %3562
      %3566 = vrot.lane.b32.xlu0 %v3512, 112
      %v3567 = vpop.permute.xlu0 %3566
      %v3569 = vsel %vm537, %v3417, %v3515
      %v3570 = vsel %vm539, %v3569, %v3519
      %v3571 = vsel %vm541, %v3570, %v3523
      %v3572 = vsel %vm543, %v3571, %v3527
      %v3573 = vsel %vm545, %v3572, %v3531
      %v3574 = vsel %vm547, %v3573, %v3535
      %v3575 = vsel %vm549, %v3574, %v3539
      %v3576 = vsel %vm537, %v3485, %v3543
      %v3577 = vsel %vm539, %v3576, %v3547
      %v3578 = vsel %vm541, %v3577, %v3551
      %v3579 = vsel %vm543, %v3578, %v3555
      %v3580 = vsel %vm545, %v3579, %v3559
      %v3581 = vsel %vm547, %v3580, %v3563
      %v3582 = vsel %vm549, %v3581, %v3567
      %v3587 = vrot.slane %v2897, 1
      %v3588 = vrot.slane %v2898, 1
      %v3589 = vsel %vm1030, %v3587, %v3588
      %v3590 = vrot.slane %v2899, 1
      %v3591 = vsel %vm1030, %v3588, %v3590
      %v3592 = vrot.slane %v2900, 1
      %v3593 = vrot.slane %v2901, 1
      %v3594 = vsel %vm1030, %v3592, %v3593
      %v3595 = vrot.slane %v2902, 1
      %v3596 = vsel %vm1030, %v3593, %v3595
      %v3597 = vrot.slane %v2903, 1
      %v3598 = vrot.slane %v2904, 1
      %v3599 = vsel %vm1030, %v3597, %v3598
      %v3600 = vrot.slane %v2905, 1
      %v3601 = vsel %vm1030, %v3598, %v3600
      %v3602 = vrot.slane %v2906, 1
      %v3603 = vrot.slane %v2907, 1
      %v3604 = vsel %vm1030, %v3602, %v3603
      %v3605 = vrot.slane %v2908, 1
      %v3606 = vsel %vm1030, %v3603, %v3605
      %v3615 = vcombine.low %v3589, %v3599
      %v3616 = vcombine.high %v3589, %v3599
      %v3618 = vunpack.c.l.s4 1983009808
      %v3619 = vunpack.c.0.s8 %v3618
      %v3620 = vlaneseq
      %v3621 = vshrl.u32 %v3620, 7
      %v3622 = vsub.s32 %v3619, %v3621
      %v3623 = vrot.slane %v3615, %v3622
      %v3625 = vunpack.c.l.s4 1983009808
      %v3626 = vunpack.c.0.s8 %v3625
      %v3627 = vlaneseq
      %v3628 = vshrl.u32 %v3627, 7
      %v3629 = vsub.s32 %v3626, %v3628
      %v3630 = vrot.slane %v3616, %v3629
      %v3631 = vcombine.low %v3594, %v3604
      %v3632 = vcombine.high %v3594, %v3604
      %v3634 = vunpack.c.l.s4 1983009808
      %v3635 = vunpack.c.0.s8 %v3634
      %v3636 = vlaneseq
      %v3637 = vshrl.u32 %v3636, 7
      %v3638 = vsub.s32 %v3635, %v3637
      %v3639 = vrot.slane %v3631, %v3638
      %v3641 = vunpack.c.l.s4 1983009808
      %v3642 = vunpack.c.0.s8 %v3641
      %v3643 = vlaneseq
      %v3644 = vshrl.u32 %v3643, 7
      %v3645 = vsub.s32 %v3642, %v3644
      %v3646 = vrot.slane %v3632, %v3645
      %v3647 = vcombine.low %v3623, %v3639
      %v3648 = vcombine.high %v3623, %v3639
      %v3650 = vunpack.c.l.s4 1934713408
      %v3651 = vunpack.c.0.s8 %v3650
      %v3652 = vlaneseq
      %v3653 = vshrl.u32 %v3652, 7
      %v3654 = vsub.s32 %v3651, %v3653
      %v3655 = vrot.slane %v3647, %v3654
      %v3657 = vunpack.c.l.s4 1934713408
      %v3658 = vunpack.c.0.s8 %v3657
      %v3659 = vlaneseq
      %v3660 = vshrl.u32 %v3659, 7
      %v3661 = vsub.s32 %v3658, %v3660
      %v3662 = vrot.slane %v3648, %v3661
      %v3663 = vcombine.low %v3630, %v3646
      %v3664 = vcombine.high %v3630, %v3646
      %v3666 = vunpack.c.l.s4 1934713408
      %v3667 = vunpack.c.0.s8 %v3666
      %v3668 = vlaneseq
      %v3669 = vshrl.u32 %v3668, 7
      %v3670 = vsub.s32 %v3667, %v3669
      %v3671 = vrot.slane %v3663, %v3670
      %v3673 = vunpack.c.l.s4 1934713408
      %v3674 = vunpack.c.0.s8 %v3673
      %v3675 = vlaneseq
      %v3676 = vshrl.u32 %v3675, 7
      %v3677 = vsub.s32 %v3674, %v3676
      %v3678 = vrot.slane %v3664, %v3677
      %v3679 = vcombine.high %v3655, 0.0
      %v3680 = vcombine.high %v3662, 0.0
      %v3681 = vcombine.high %v3671, 0.0
      %v3682 = vcombine.high %v3678, 0.0
      %v3683 = vcombine.low %v3591, %v3601
      %v3684 = vcombine.high %v3591, %v3601
      %v3686 = vunpack.c.l.s4 1983009808
      %v3687 = vunpack.c.0.s8 %v3686
      %v3688 = vlaneseq
      %v3689 = vshrl.u32 %v3688, 7
      %v3690 = vsub.s32 %v3687, %v3689
      %v3691 = vrot.slane %v3683, %v3690
      %v3693 = vunpack.c.l.s4 1983009808
      %v3694 = vunpack.c.0.s8 %v3693
      %v3695 = vlaneseq
      %v3696 = vshrl.u32 %v3695, 7
      %v3697 = vsub.s32 %v3694, %v3696
      %v3698 = vrot.slane %v3684, %v3697
      %v3699 = vcombine.low %v3596, %v3606
      %v3700 = vcombine.high %v3596, %v3606
      %v3702 = vunpack.c.l.s4 1983009808
      %v3703 = vunpack.c.0.s8 %v3702
      %v3704 = vlaneseq
      %v3705 = vshrl.u32 %v3704, 7
      %v3706 = vsub.s32 %v3703, %v3705
      %v3707 = vrot.slane %v3699, %v3706
      %v3709 = vunpack.c.l.s4 1983009808
      %v3710 = vunpack.c.0.s8 %v3709
      %v3711 = vlaneseq
      %v3712 = vshrl.u32 %v3711, 7
      %v3713 = vsub.s32 %v3710, %v3712
      %v3714 = vrot.slane %v3700, %v3713
      %v3715 = vcombine.low %v3691, %v3707
      %v3716 = vcombine.high %v3691, %v3707
      %v3718 = vunpack.c.l.s4 1934713408
      %v3719 = vunpack.c.0.s8 %v3718
      %v3720 = vlaneseq
      %v3721 = vshrl.u32 %v3720, 7
      %v3722 = vsub.s32 %v3719, %v3721
      %v3723 = vrot.slane %v3715, %v3722
      %v3725 = vunpack.c.l.s4 1934713408
      %v3726 = vunpack.c.0.s8 %v3725
      %v3727 = vlaneseq
      %v3728 = vshrl.u32 %v3727, 7
      %v3729 = vsub.s32 %v3726, %v3728
      %v3730 = vrot.slane %v3716, %v3729
      %v3731 = vcombine.low %v3698, %v3714
      %v3732 = vcombine.high %v3698, %v3714
      %v3734 = vunpack.c.l.s4 1934713408
      %v3735 = vunpack.c.0.s8 %v3734
      %v3736 = vlaneseq
      %v3737 = vshrl.u32 %v3736, 7
      %v3738 = vsub.s32 %v3735, %v3737
      %v3739 = vrot.slane %v3731, %v3738
      %v3741 = vunpack.c.l.s4 1934713408
      %v3742 = vunpack.c.0.s8 %v3741
      %v3743 = vlaneseq
      %v3744 = vshrl.u32 %v3743, 7
      %v3745 = vsub.s32 %v3742, %v3744
      %v3746 = vrot.slane %v3732, %v3745
      %v3747 = vcombine.high %v3723, 0.0
      %v3748 = vcombine.high %v3730, 0.0
      %v3749 = vcombine.high %v3739, 0.0
      %v3750 = vcombine.high %v3746, 0.0
      %3752 = vrot.lane.b32.xlu0 %v3679, 16
      %v3753 = vpop.permute.xlu0 %3752
      %3756 = vrot.lane.b32.xlu0 %v3662, 32
      %v3757 = vpop.permute.xlu0 %3756
      %3760 = vrot.lane.b32.xlu0 %v3680, 48
      %v3761 = vpop.permute.xlu0 %3760
      %3764 = vrot.lane.b32.xlu0 %v3671, 64
      %v3765 = vpop.permute.xlu0 %3764
      %3768 = vrot.lane.b32.xlu0 %v3681, 80
      %v3769 = vpop.permute.xlu0 %3768
      %3772 = vrot.lane.b32.xlu0 %v3678, 96
      %v3773 = vpop.permute.xlu0 %3772
      %3776 = vrot.lane.b32.xlu0 %v3682, 112
      %v3777 = vpop.permute.xlu0 %3776
      %3780 = vrot.lane.b32.xlu0 %v3747, 16
      %v3781 = vpop.permute.xlu0 %3780
      %3784 = vrot.lane.b32.xlu0 %v3730, 32
      %v3785 = vpop.permute.xlu0 %3784
      %3788 = vrot.lane.b32.xlu0 %v3748, 48
      %v3789 = vpop.permute.xlu0 %3788
      %3792 = vrot.lane.b32.xlu0 %v3739, 64
      %v3793 = vpop.permute.xlu0 %3792
      %3796 = vrot.lane.b32.xlu0 %v3749, 80
      %v3797 = vpop.permute.xlu0 %3796
      %3800 = vrot.lane.b32.xlu0 %v3746, 96
      %v3801 = vpop.permute.xlu0 %3800
      %3804 = vrot.lane.b32.xlu0 %v3750, 112
      %v3805 = vpop.permute.xlu0 %3804
      %v3807 = vsel %vm537, %v3655, %v3753
      %v3808 = vsel %vm539, %v3807, %v3757
      %v3809 = vsel %vm541, %v3808, %v3761
      %v3810 = vsel %vm543, %v3809, %v3765
      %v3811 = vsel %vm545, %v3810, %v3769
      %v3812 = vsel %vm547, %v3811, %v3773
      %v3813 = vsel %vm549, %v3812, %v3777
      %v3814 = vsel %vm537, %v3723, %v3781
      %v3815 = vsel %vm539, %v3814, %v3785
      %v3816 = vsel %vm541, %v3815, %v3789
      %v3817 = vsel %vm543, %v3816, %v3793
      %v3818 = vsel %vm545, %v3817, %v3797
      %v3819 = vsel %vm547, %v3818, %v3801
      %v3820 = vsel %vm549, %v3819, %v3805
      %3821 = vrot.lane.b32.xlu0 %v3589, 127
      %v3822 = vpop.permute.xlu0 %3821
      %3823 = vrot.lane.b32.xlu0 %v3591, 127
      %v3824 = vpop.permute.xlu0 %3823
      %3825 = vrot.lane.b32.xlu0 %v3594, 127
      %v3826 = vpop.permute.xlu0 %3825
      %3827 = vrot.lane.b32.xlu0 %v3596, 127
      %v3828 = vpop.permute.xlu0 %3827
      %3829 = vrot.lane.b32.xlu0 %v3599, 127
      %v3830 = vpop.permute.xlu0 %3829
      %3831 = vrot.lane.b32.xlu0 %v3601, 127
      %v3832 = vpop.permute.xlu0 %3831
      %3833 = vrot.lane.b32.xlu0 %v3604, 127
      %v3834 = vpop.permute.xlu0 %3833
      %3835 = vrot.lane.b32.xlu0 %v3606, 127
      %v3836 = vpop.permute.xlu0 %3835
      %v3845 = vcombine.low %v3822, %v3830
      %v3846 = vcombine.high %v3822, %v3830
      %v3848 = vunpack.c.l.s4 1983009808
      %v3849 = vunpack.c.0.s8 %v3848
      %v3850 = vlaneseq
      %v3851 = vshrl.u32 %v3850, 7
      %v3852 = vsub.s32 %v3849, %v3851
      %v3853 = vrot.slane %v3845, %v3852
      %v3855 = vunpack.c.l.s4 1983009808
      %v3856 = vunpack.c.0.s8 %v3855
      %v3857 = vlaneseq
      %v3858 = vshrl.u32 %v3857, 7
      %v3859 = vsub.s32 %v3856, %v3858
      %v3860 = vrot.slane %v3846, %v3859
      %v3861 = vcombine.low %v3826, %v3834
      %v3862 = vcombine.high %v3826, %v3834
      %v3864 = vunpack.c.l.s4 1983009808
      %v3865 = vunpack.c.0.s8 %v3864
      %v3866 = vlaneseq
      %v3867 = vshrl.u32 %v3866, 7
      %v3868 = vsub.s32 %v3865, %v3867
      %v3869 = vrot.slane %v3861, %v3868
      %v3871 = vunpack.c.l.s4 1983009808
      %v3872 = vunpack.c.0.s8 %v3871
      %v3873 = vlaneseq
      %v3874 = vshrl.u32 %v3873, 7
      %v3875 = vsub.s32 %v3872, %v3874
      %v3876 = vrot.slane %v3862, %v3875
      %v3877 = vcombine.low %v3853, %v3869
      %v3878 = vcombine.high %v3853, %v3869
      %v3880 = vunpack.c.l.s4 1934713408
      %v3881 = vunpack.c.0.s8 %v3880
      %v3882 = vlaneseq
      %v3883 = vshrl.u32 %v3882, 7
      %v3884 = vsub.s32 %v3881, %v3883
      %v3885 = vrot.slane %v3877, %v3884
      %v3887 = vunpack.c.l.s4 1934713408
      %v3888 = vunpack.c.0.s8 %v3887
      %v3889 = vlaneseq
      %v3890 = vshrl.u32 %v3889, 7
      %v3891 = vsub.s32 %v3888, %v3890
      %v3892 = vrot.slane %v3878, %v3891
      %v3893 = vcombine.low %v3860, %v3876
      %v3894 = vcombine.high %v3860, %v3876
      %v3896 = vunpack.c.l.s4 1934713408
      %v3897 = vunpack.c.0.s8 %v3896
      %v3898 = vlaneseq
      %v3899 = vshrl.u32 %v3898, 7
      %v3900 = vsub.s32 %v3897, %v3899
      %v3901 = vrot.slane %v3893, %v3900
      %v3903 = vunpack.c.l.s4 1934713408
      %v3904 = vunpack.c.0.s8 %v3903
      %v3905 = vlaneseq
      %v3906 = vshrl.u32 %v3905, 7
      %v3907 = vsub.s32 %v3904, %v3906
      %v3908 = vrot.slane %v3894, %v3907
      %v3909 = vcombine.high %v3885, 0.0
      %v3910 = vcombine.high %v3892, 0.0
      %v3911 = vcombine.high %v3901, 0.0
      %v3912 = vcombine.high %v3908, 0.0
      %v3913 = vcombine.low %v3824, %v3832
      %v3914 = vcombine.high %v3824, %v3832
      %v3916 = vunpack.c.l.s4 1983009808
      %v3917 = vunpack.c.0.s8 %v3916
      %v3918 = vlaneseq
      %v3919 = vshrl.u32 %v3918, 7
      %v3920 = vsub.s32 %v3917, %v3919
      %v3921 = vrot.slane %v3913, %v3920
      %v3923 = vunpack.c.l.s4 1983009808
      %v3924 = vunpack.c.0.s8 %v3923
      %v3925 = vlaneseq
      %v3926 = vshrl.u32 %v3925, 7
      %v3927 = vsub.s32 %v3924, %v3926
      %v3928 = vrot.slane %v3914, %v3927
      %v3929 = vcombine.low %v3828, %v3836
      %v3930 = vcombine.high %v3828, %v3836
      %v3932 = vunpack.c.l.s4 1983009808
      %v3933 = vunpack.c.0.s8 %v3932
      %v3934 = vlaneseq
      %v3935 = vshrl.u32 %v3934, 7
      %v3936 = vsub.s32 %v3933, %v3935
      %v3937 = vrot.slane %v3929, %v3936
      %v3939 = vunpack.c.l.s4 1983009808
      %v3940 = vunpack.c.0.s8 %v3939
      %v3941 = vlaneseq
      %v3942 = vshrl.u32 %v3941, 7
      %v3943 = vsub.s32 %v3940, %v3942
      %v3944 = vrot.slane %v3930, %v3943
      %v3945 = vcombine.low %v3921, %v3937
      %v3946 = vcombine.high %v3921, %v3937
      %v3948 = vunpack.c.l.s4 1934713408
      %v3949 = vunpack.c.0.s8 %v3948
      %v3950 = vlaneseq
      %v3951 = vshrl.u32 %v3950, 7
      %v3952 = vsub.s32 %v3949, %v3951
      %v3953 = vrot.slane %v3945, %v3952
      %v3955 = vunpack.c.l.s4 1934713408
      %v3956 = vunpack.c.0.s8 %v3955
      %v3957 = vlaneseq
      %v3958 = vshrl.u32 %v3957, 7
      %v3959 = vsub.s32 %v3956, %v3958
      %v3960 = vrot.slane %v3946, %v3959
      %v3961 = vcombine.low %v3928, %v3944
      %v3962 = vcombine.high %v3928, %v3944
      %v3964 = vunpack.c.l.s4 1934713408
      %v3965 = vunpack.c.0.s8 %v3964
      %v3966 = vlaneseq
      %v3967 = vshrl.u32 %v3966, 7
      %v3968 = vsub.s32 %v3965, %v3967
      %v3969 = vrot.slane %v3961, %v3968
      %v3971 = vunpack.c.l.s4 1934713408
      %v3972 = vunpack.c.0.s8 %v3971
      %v3973 = vlaneseq
      %v3974 = vshrl.u32 %v3973, 7
      %v3975 = vsub.s32 %v3972, %v3974
      %v3976 = vrot.slane %v3962, %v3975
      %v3977 = vcombine.high %v3953, 0.0
      %v3978 = vcombine.high %v3960, 0.0
      %v3979 = vcombine.high %v3969, 0.0
      %v3980 = vcombine.high %v3976, 0.0
      %3982 = vrot.lane.b32.xlu0 %v3909, 16
      %v3983 = vpop.permute.xlu0 %3982
      %3986 = vrot.lane.b32.xlu0 %v3892, 32
      %v3987 = vpop.permute.xlu0 %3986
      %3990 = vrot.lane.b32.xlu0 %v3910, 48
      %v3991 = vpop.permute.xlu0 %3990
      %3994 = vrot.lane.b32.xlu0 %v3901, 64
      %v3995 = vpop.permute.xlu0 %3994
      %3998 = vrot.lane.b32.xlu0 %v3911, 80
      %v3999 = vpop.permute.xlu0 %3998
      %4002 = vrot.lane.b32.xlu0 %v3908, 96
      %v4003 = vpop.permute.xlu0 %4002
      %4006 = vrot.lane.b32.xlu0 %v3912, 112
      %v4007 = vpop.permute.xlu0 %4006
      %4010 = vrot.lane.b32.xlu0 %v3977, 16
      %v4011 = vpop.permute.xlu0 %4010
      %4014 = vrot.lane.b32.xlu0 %v3960, 32
      %v4015 = vpop.permute.xlu0 %4014
      %4018 = vrot.lane.b32.xlu0 %v3978, 48
      %v4019 = vpop.permute.xlu0 %4018
      %4022 = vrot.lane.b32.xlu0 %v3969, 64
      %v4023 = vpop.permute.xlu0 %4022
      %4026 = vrot.lane.b32.xlu0 %v3979, 80
      %v4027 = vpop.permute.xlu0 %4026
      %4030 = vrot.lane.b32.xlu0 %v3976, 96
      %v4031 = vpop.permute.xlu0 %4030
      %4034 = vrot.lane.b32.xlu0 %v3980, 112
      %v4035 = vpop.permute.xlu0 %4034
      %v4037 = vsel %vm537, %v3885, %v3983
      %v4038 = vsel %vm539, %v4037, %v3987
      %v4039 = vsel %vm541, %v4038, %v3991
      %v4040 = vsel %vm543, %v4039, %v3995
      %v4041 = vsel %vm545, %v4040, %v3999
      %v4042 = vsel %vm547, %v4041, %v4003
      %v4043 = vsel %vm549, %v4042, %v4007
      %v4044 = vsel %vm537, %v3953, %v4011
      %v4045 = vsel %vm539, %v4044, %v4015
      %v4046 = vsel %vm541, %v4045, %v4019
      %v4047 = vsel %vm543, %v4046, %v4023
      %v4048 = vsel %vm545, %v4047, %v4027
      %v4049 = vsel %vm547, %v4048, %v4031
      %v4050 = vsel %vm549, %v4049, %v4035
      %4051 = vrot.lane.b32.xlu0 %v3589, 126
      %v4052 = vpop.permute.xlu0 %4051
      %4053 = vrot.lane.b32.xlu0 %v3591, 126
      %v4054 = vpop.permute.xlu0 %4053
      %4055 = vrot.lane.b32.xlu0 %v3594, 126
      %v4056 = vpop.permute.xlu0 %4055
      %4057 = vrot.lane.b32.xlu0 %v3596, 126
      %v4058 = vpop.permute.xlu0 %4057
      %4059 = vrot.lane.b32.xlu0 %v3599, 126
      %v4060 = vpop.permute.xlu0 %4059
      %4061 = vrot.lane.b32.xlu0 %v3601, 126
      %v4062 = vpop.permute.xlu0 %4061
      %4063 = vrot.lane.b32.xlu0 %v3604, 126
      %v4064 = vpop.permute.xlu0 %4063
      %4065 = vrot.lane.b32.xlu0 %v3606, 126
      %v4066 = vpop.permute.xlu0 %4065
      %v4075 = vcombine.low %v4052, %v4060
      %v4076 = vcombine.high %v4052, %v4060
      %v4078 = vunpack.c.l.s4 1983009808
      %v4079 = vunpack.c.0.s8 %v4078
      %v4080 = vlaneseq
      %v4081 = vshrl.u32 %v4080, 7
      %v4082 = vsub.s32 %v4079, %v4081
      %v4083 = vrot.slane %v4075, %v4082
      %v4085 = vunpack.c.l.s4 1983009808
      %v4086 = vunpack.c.0.s8 %v4085
      %v4087 = vlaneseq
      %v4088 = vshrl.u32 %v4087, 7
      %v4089 = vsub.s32 %v4086, %v4088
      %v4090 = vrot.slane %v4076, %v4089
      %v4091 = vcombine.low %v4056, %v4064
      %v4092 = vcombine.high %v4056, %v4064
      %v4094 = vunpack.c.l.s4 1983009808
      %v4095 = vunpack.c.0.s8 %v4094
      %v4096 = vlaneseq
      %v4097 = vshrl.u32 %v4096, 7
      %v4098 = vsub.s32 %v4095, %v4097
      %v4099 = vrot.slane %v4091, %v4098
      %v4101 = vunpack.c.l.s4 1983009808
      %v4102 = vunpack.c.0.s8 %v4101
      %v4103 = vlaneseq
      %v4104 = vshrl.u32 %v4103, 7
      %v4105 = vsub.s32 %v4102, %v4104
      %v4106 = vrot.slane %v4092, %v4105
      %v4107 = vcombine.low %v4083, %v4099
      %v4108 = vcombine.high %v4083, %v4099
      %v4110 = vunpack.c.l.s4 1934713408
      %v4111 = vunpack.c.0.s8 %v4110
      %v4112 = vlaneseq
      %v4113 = vshrl.u32 %v4112, 7
      %v4114 = vsub.s32 %v4111, %v4113
      %v4115 = vrot.slane %v4107, %v4114
      %v4117 = vunpack.c.l.s4 1934713408
      %v4118 = vunpack.c.0.s8 %v4117
      %v4119 = vlaneseq
      %v4120 = vshrl.u32 %v4119, 7
      %v4121 = vsub.s32 %v4118, %v4120
      %v4122 = vrot.slane %v4108, %v4121
      %v4123 = vcombine.low %v4090, %v4106
      %v4124 = vcombine.high %v4090, %v4106
      %v4126 = vunpack.c.l.s4 1934713408
      %v4127 = vunpack.c.0.s8 %v4126
      %v4128 = vlaneseq
      %v4129 = vshrl.u32 %v4128, 7
      %v4130 = vsub.s32 %v4127, %v4129
      %v4131 = vrot.slane %v4123, %v4130
      %v4133 = vunpack.c.l.s4 1934713408
      %v4134 = vunpack.c.0.s8 %v4133
      %v4135 = vlaneseq
      %v4136 = vshrl.u32 %v4135, 7
      %v4137 = vsub.s32 %v4134, %v4136
      %v4138 = vrot.slane %v4124, %v4137
      %v4139 = vcombine.high %v4115, 0.0
      %v4140 = vcombine.high %v4122, 0.0
      %v4141 = vcombine.high %v4131, 0.0
      %v4142 = vcombine.high %v4138, 0.0
      %v4143 = vcombine.low %v4054, %v4062
      %v4144 = vcombine.high %v4054, %v4062
      %v4146 = vunpack.c.l.s4 1983009808
      %v4147 = vunpack.c.0.s8 %v4146
      %v4148 = vlaneseq
      %v4149 = vshrl.u32 %v4148, 7
      %v4150 = vsub.s32 %v4147, %v4149
      %v4151 = vrot.slane %v4143, %v4150
      %v4153 = vunpack.c.l.s4 1983009808
      %v4154 = vunpack.c.0.s8 %v4153
      %v4155 = vlaneseq
      %v4156 = vshrl.u32 %v4155, 7
      %v4157 = vsub.s32 %v4154, %v4156
      %v4158 = vrot.slane %v4144, %v4157
      %v4159 = vcombine.low %v4058, %v4066
      %v4160 = vcombine.high %v4058, %v4066
      %v4162 = vunpack.c.l.s4 1983009808
      %v4163 = vunpack.c.0.s8 %v4162
      %v4164 = vlaneseq
      %v4165 = vshrl.u32 %v4164, 7
      %v4166 = vsub.s32 %v4163, %v4165
      %v4167 = vrot.slane %v4159, %v4166
      %v4169 = vunpack.c.l.s4 1983009808
      %v4170 = vunpack.c.0.s8 %v4169
      %v4171 = vlaneseq
      %v4172 = vshrl.u32 %v4171, 7
      %v4173 = vsub.s32 %v4170, %v4172
      %v4174 = vrot.slane %v4160, %v4173
      %v4175 = vcombine.low %v4151, %v4167
      %v4176 = vcombine.high %v4151, %v4167
      %v4178 = vunpack.c.l.s4 1934713408
      %v4179 = vunpack.c.0.s8 %v4178
      %v4180 = vlaneseq
      %v4181 = vshrl.u32 %v4180, 7
      %v4182 = vsub.s32 %v4179, %v4181
      %v4183 = vrot.slane %v4175, %v4182
      %v4185 = vunpack.c.l.s4 1934713408
      %v4186 = vunpack.c.0.s8 %v4185
      %v4187 = vlaneseq
      %v4188 = vshrl.u32 %v4187, 7
      %v4189 = vsub.s32 %v4186, %v4188
      %v4190 = vrot.slane %v4176, %v4189
      %v4191 = vcombine.low %v4158, %v4174
      %v4192 = vcombine.high %v4158, %v4174
      %v4194 = vunpack.c.l.s4 1934713408
      %v4195 = vunpack.c.0.s8 %v4194
      %v4196 = vlaneseq
      %v4197 = vshrl.u32 %v4196, 7
      %v4198 = vsub.s32 %v4195, %v4197
      %v4199 = vrot.slane %v4191, %v4198
      %v4201 = vunpack.c.l.s4 1934713408
      %v4202 = vunpack.c.0.s8 %v4201
      %v4203 = vlaneseq
      %v4204 = vshrl.u32 %v4203, 7
      %v4205 = vsub.s32 %v4202, %v4204
      %v4206 = vrot.slane %v4192, %v4205
      %v4207 = vcombine.high %v4183, 0.0
      %v4208 = vcombine.high %v4190, 0.0
      %v4209 = vcombine.high %v4199, 0.0
      %v4210 = vcombine.high %v4206, 0.0
      %4212 = vrot.lane.b32.xlu0 %v4139, 16
      %v4213 = vpop.permute.xlu0 %4212
      %4216 = vrot.lane.b32.xlu0 %v4122, 32
      %v4217 = vpop.permute.xlu0 %4216
      %4220 = vrot.lane.b32.xlu0 %v4140, 48
      %v4221 = vpop.permute.xlu0 %4220
      %4224 = vrot.lane.b32.xlu0 %v4131, 64
      %v4225 = vpop.permute.xlu0 %4224
      %4228 = vrot.lane.b32.xlu0 %v4141, 80
      %v4229 = vpop.permute.xlu0 %4228
      %4232 = vrot.lane.b32.xlu0 %v4138, 96
      %v4233 = vpop.permute.xlu0 %4232
      %4236 = vrot.lane.b32.xlu0 %v4142, 112
      %v4237 = vpop.permute.xlu0 %4236
      %4240 = vrot.lane.b32.xlu0 %v4207, 16
      %v4241 = vpop.permute.xlu0 %4240
      %4244 = vrot.lane.b32.xlu0 %v4190, 32
      %v4245 = vpop.permute.xlu0 %4244
      %4248 = vrot.lane.b32.xlu0 %v4208, 48
      %v4249 = vpop.permute.xlu0 %4248
      %4252 = vrot.lane.b32.xlu0 %v4199, 64
      %v4253 = vpop.permute.xlu0 %4252
      %4256 = vrot.lane.b32.xlu0 %v4209, 80
      %v4257 = vpop.permute.xlu0 %4256
      %4260 = vrot.lane.b32.xlu0 %v4206, 96
      %v4261 = vpop.permute.xlu0 %4260
      %4264 = vrot.lane.b32.xlu0 %v4210, 112
      %v4265 = vpop.permute.xlu0 %4264
      %v4267 = vsel %vm537, %v4115, %v4213
      %v4268 = vsel %vm539, %v4267, %v4217
      %v4269 = vsel %vm541, %v4268, %v4221
      %v4270 = vsel %vm543, %v4269, %v4225
      %v4271 = vsel %vm545, %v4270, %v4229
      %v4272 = vsel %vm547, %v4271, %v4233
      %v4273 = vsel %vm549, %v4272, %v4237
      %v4274 = vsel %vm537, %v4183, %v4241
      %v4275 = vsel %vm539, %v4274, %v4245
      %v4276 = vsel %vm541, %v4275, %v4249
      %v4277 = vsel %vm543, %v4276, %v4253
      %v4278 = vsel %vm545, %v4277, %v4257
      %v4279 = vsel %vm547, %v4278, %v4261
      %v4280 = vsel %vm549, %v4279, %v4265
      %v4281 = vrot.slane %v2897, 2
      %v4282 = vrot.slane %v2898, 2
      %v4283 = vsel %vm1725, %v4281, %v4282
      %v4284 = vrot.slane %v2899, 2
      %v4285 = vsel %vm1725, %v4282, %v4284
      %v4286 = vrot.slane %v2900, 2
      %v4287 = vrot.slane %v2901, 2
      %v4288 = vsel %vm1725, %v4286, %v4287
      %v4289 = vrot.slane %v2902, 2
      %v4290 = vsel %vm1725, %v4287, %v4289
      %v4291 = vrot.slane %v2903, 2
      %v4292 = vrot.slane %v2904, 2
      %v4293 = vsel %vm1725, %v4291, %v4292
      %v4294 = vrot.slane %v2905, 2
      %v4295 = vsel %vm1725, %v4292, %v4294
      %v4296 = vrot.slane %v2906, 2
      %v4297 = vrot.slane %v2907, 2
      %v4298 = vsel %vm1725, %v4296, %v4297
      %v4299 = vrot.slane %v2908, 2
      %v4300 = vsel %vm1725, %v4297, %v4299
      %v4309 = vcombine.low %v4283, %v4293
      %v4310 = vcombine.high %v4283, %v4293
      %v4312 = vunpack.c.l.s4 1983009808
      %v4313 = vunpack.c.0.s8 %v4312
      %v4314 = vlaneseq
      %v4315 = vshrl.u32 %v4314, 7
      %v4316 = vsub.s32 %v4313, %v4315
      %v4317 = vrot.slane %v4309, %v4316
      %v4319 = vunpack.c.l.s4 1983009808
      %v4320 = vunpack.c.0.s8 %v4319
      %v4321 = vlaneseq
      %v4322 = vshrl.u32 %v4321, 7
      %v4323 = vsub.s32 %v4320, %v4322
      %v4324 = vrot.slane %v4310, %v4323
      %v4325 = vcombine.low %v4288, %v4298
      %v4326 = vcombine.high %v4288, %v4298
      %v4328 = vunpack.c.l.s4 1983009808
      %v4329 = vunpack.c.0.s8 %v4328
      %v4330 = vlaneseq
      %v4331 = vshrl.u32 %v4330, 7
      %v4332 = vsub.s32 %v4329, %v4331
      %v4333 = vrot.slane %v4325, %v4332
      %v4335 = vunpack.c.l.s4 1983009808
      %v4336 = vunpack.c.0.s8 %v4335
      %v4337 = vlaneseq
      %v4338 = vshrl.u32 %v4337, 7
      %v4339 = vsub.s32 %v4336, %v4338
      %v4340 = vrot.slane %v4326, %v4339
      %v4341 = vcombine.low %v4317, %v4333
      %v4342 = vcombine.high %v4317, %v4333
      %v4344 = vunpack.c.l.s4 1934713408
      %v4345 = vunpack.c.0.s8 %v4344
      %v4346 = vlaneseq
      %v4347 = vshrl.u32 %v4346, 7
      %v4348 = vsub.s32 %v4345, %v4347
      %v4349 = vrot.slane %v4341, %v4348
      %v4351 = vunpack.c.l.s4 1934713408
      %v4352 = vunpack.c.0.s8 %v4351
      %v4353 = vlaneseq
      %v4354 = vshrl.u32 %v4353, 7
      %v4355 = vsub.s32 %v4352, %v4354
      %v4356 = vrot.slane %v4342, %v4355
      %v4357 = vcombine.low %v4324, %v4340
      %v4358 = vcombine.high %v4324, %v4340
      %v4360 = vunpack.c.l.s4 1934713408
      %v4361 = vunpack.c.0.s8 %v4360
      %v4362 = vlaneseq
      %v4363 = vshrl.u32 %v4362, 7
      %v4364 = vsub.s32 %v4361, %v4363
      %v4365 = vrot.slane %v4357, %v4364
      %v4367 = vunpack.c.l.s4 1934713408
      %v4368 = vunpack.c.0.s8 %v4367
      %v4369 = vlaneseq
      %v4370 = vshrl.u32 %v4369, 7
      %v4371 = vsub.s32 %v4368, %v4370
      %v4372 = vrot.slane %v4358, %v4371
      %v4373 = vcombine.high %v4349, 0.0
      %v4374 = vcombine.high %v4356, 0.0
      %v4375 = vcombine.high %v4365, 0.0
      %v4376 = vcombine.high %v4372, 0.0
      %v4377 = vcombine.low %v4285, %v4295
      %v4378 = vcombine.high %v4285, %v4295
      %v4380 = vunpack.c.l.s4 1983009808
      %v4381 = vunpack.c.0.s8 %v4380
      %v4382 = vlaneseq
      %v4383 = vshrl.u32 %v4382, 7
      %v4384 = vsub.s32 %v4381, %v4383
      %v4385 = vrot.slane %v4377, %v4384
      %v4387 = vunpack.c.l.s4 1983009808
      %v4388 = vunpack.c.0.s8 %v4387
      %v4389 = vlaneseq
      %v4390 = vshrl.u32 %v4389, 7
      %v4391 = vsub.s32 %v4388, %v4390
      %v4392 = vrot.slane %v4378, %v4391
      %v4393 = vcombine.low %v4290, %v4300
      %v4394 = vcombine.high %v4290, %v4300
      %v4396 = vunpack.c.l.s4 1983009808
      %v4397 = vunpack.c.0.s8 %v4396
      %v4398 = vlaneseq
      %v4399 = vshrl.u32 %v4398, 7
      %v4400 = vsub.s32 %v4397, %v4399
      %v4401 = vrot.slane %v4393, %v4400
      %v4403 = vunpack.c.l.s4 1983009808
      %v4404 = vunpack.c.0.s8 %v4403
      %v4405 = vlaneseq
      %v4406 = vshrl.u32 %v4405, 7
      %v4407 = vsub.s32 %v4404, %v4406
      %v4408 = vrot.slane %v4394, %v4407
      %v4409 = vcombine.low %v4385, %v4401
      %v4410 = vcombine.high %v4385, %v4401
      %v4412 = vunpack.c.l.s4 1934713408
      %v4413 = vunpack.c.0.s8 %v4412
      %v4414 = vlaneseq
      %v4415 = vshrl.u32 %v4414, 7
      %v4416 = vsub.s32 %v4413, %v4415
      %v4417 = vrot.slane %v4409, %v4416
      %v4419 = vunpack.c.l.s4 1934713408
      %v4420 = vunpack.c.0.s8 %v4419
      %v4421 = vlaneseq
      %v4422 = vshrl.u32 %v4421, 7
      %v4423 = vsub.s32 %v4420, %v4422
      %v4424 = vrot.slane %v4410, %v4423
      %v4425 = vcombine.low %v4392, %v4408
      %v4426 = vcombine.high %v4392, %v4408
      %v4428 = vunpack.c.l.s4 1934713408
      %v4429 = vunpack.c.0.s8 %v4428
      %v4430 = vlaneseq
      %v4431 = vshrl.u32 %v4430, 7
      %v4432 = vsub.s32 %v4429, %v4431
      %v4433 = vrot.slane %v4425, %v4432
      %v4435 = vunpack.c.l.s4 1934713408
      %v4436 = vunpack.c.0.s8 %v4435
      %v4437 = vlaneseq
      %v4438 = vshrl.u32 %v4437, 7
      %v4439 = vsub.s32 %v4436, %v4438
      %v4440 = vrot.slane %v4426, %v4439
      %v4441 = vcombine.high %v4417, 0.0
      %v4442 = vcombine.high %v4424, 0.0
      %v4443 = vcombine.high %v4433, 0.0
      %v4444 = vcombine.high %v4440, 0.0
      %4446 = vrot.lane.b32.xlu0 %v4373, 16
      %v4447 = vpop.permute.xlu0 %4446
      %4450 = vrot.lane.b32.xlu0 %v4356, 32
      %v4451 = vpop.permute.xlu0 %4450
      %4454 = vrot.lane.b32.xlu0 %v4374, 48
      %v4455 = vpop.permute.xlu0 %4454
      %4458 = vrot.lane.b32.xlu0 %v4365, 64
      %v4459 = vpop.permute.xlu0 %4458
      %4462 = vrot.lane.b32.xlu0 %v4375, 80
      %v4463 = vpop.permute.xlu0 %4462
      %4466 = vrot.lane.b32.xlu0 %v4372, 96
      %v4467 = vpop.permute.xlu0 %4466
      %4470 = vrot.lane.b32.xlu0 %v4376, 112
      %v4471 = vpop.permute.xlu0 %4470
      %4474 = vrot.lane.b32.xlu0 %v4441, 16
      %v4475 = vpop.permute.xlu0 %4474
      %4478 = vrot.lane.b32.xlu0 %v4424, 32
      %v4479 = vpop.permute.xlu0 %4478
      %4482 = vrot.lane.b32.xlu0 %v4442, 48
      %v4483 = vpop.permute.xlu0 %4482
      %4486 = vrot.lane.b32.xlu0 %v4433, 64
      %v4487 = vpop.permute.xlu0 %4486
      %4490 = vrot.lane.b32.xlu0 %v4443, 80
      %v4491 = vpop.permute.xlu0 %4490
      %4494 = vrot.lane.b32.xlu0 %v4440, 96
      %v4495 = vpop.permute.xlu0 %4494
      %4498 = vrot.lane.b32.xlu0 %v4444, 112
      %v4499 = vpop.permute.xlu0 %4498
      %v4501 = vsel %vm537, %v4349, %v4447
      %v4502 = vsel %vm539, %v4501, %v4451
      %v4503 = vsel %vm541, %v4502, %v4455
      %v4504 = vsel %vm543, %v4503, %v4459
      %v4505 = vsel %vm545, %v4504, %v4463
      %v4506 = vsel %vm547, %v4505, %v4467
      %v4507 = vsel %vm549, %v4506, %v4471
      %v4508 = vsel %vm537, %v4417, %v4475
      %v4509 = vsel %vm539, %v4508, %v4479
      %v4510 = vsel %vm541, %v4509, %v4483
      %v4511 = vsel %vm543, %v4510, %v4487
      %v4512 = vsel %vm545, %v4511, %v4491
      %v4513 = vsel %vm547, %v4512, %v4495
      %v4514 = vsel %vm549, %v4513, %v4499
      %4515 = vrot.lane.b32.xlu0 %v4283, 127
      %v4516 = vpop.permute.xlu0 %4515
      %4517 = vrot.lane.b32.xlu0 %v4285, 127
      %v4518 = vpop.permute.xlu0 %4517
      %4519 = vrot.lane.b32.xlu0 %v4288, 127
      %v4520 = vpop.permute.xlu0 %4519
      %4521 = vrot.lane.b32.xlu0 %v4290, 127
      %v4522 = vpop.permute.xlu0 %4521
      %4523 = vrot.lane.b32.xlu0 %v4293, 127
      %v4524 = vpop.permute.xlu0 %4523
      %4525 = vrot.lane.b32.xlu0 %v4295, 127
      %v4526 = vpop.permute.xlu0 %4525
      %4527 = vrot.lane.b32.xlu0 %v4298, 127
      %v4528 = vpop.permute.xlu0 %4527
      %4529 = vrot.lane.b32.xlu0 %v4300, 127
      %v4530 = vpop.permute.xlu0 %4529
      %v4539 = vcombine.low %v4516, %v4524
      %v4540 = vcombine.high %v4516, %v4524
      %v4542 = vunpack.c.l.s4 1983009808
      %v4543 = vunpack.c.0.s8 %v4542
      %v4544 = vlaneseq
      %v4545 = vshrl.u32 %v4544, 7
      %v4546 = vsub.s32 %v4543, %v4545
      %v4547 = vrot.slane %v4539, %v4546
      %v4549 = vunpack.c.l.s4 1983009808
      %v4550 = vunpack.c.0.s8 %v4549
      %v4551 = vlaneseq
      %v4552 = vshrl.u32 %v4551, 7
      %v4553 = vsub.s32 %v4550, %v4552
      %v4554 = vrot.slane %v4540, %v4553
      %v4555 = vcombine.low %v4520, %v4528
      %v4556 = vcombine.high %v4520, %v4528
      %v4558 = vunpack.c.l.s4 1983009808
      %v4559 = vunpack.c.0.s8 %v4558
      %v4560 = vlaneseq
      %v4561 = vshrl.u32 %v4560, 7
      %v4562 = vsub.s32 %v4559, %v4561
      %v4563 = vrot.slane %v4555, %v4562
      %v4565 = vunpack.c.l.s4 1983009808
      %v4566 = vunpack.c.0.s8 %v4565
      %v4567 = vlaneseq
      %v4568 = vshrl.u32 %v4567, 7
      %v4569 = vsub.s32 %v4566, %v4568
      %v4570 = vrot.slane %v4556, %v4569
      %v4571 = vcombine.low %v4547, %v4563
      %v4572 = vcombine.high %v4547, %v4563
      %v4574 = vunpack.c.l.s4 1934713408
      %v4575 = vunpack.c.0.s8 %v4574
      %v4576 = vlaneseq
      %v4577 = vshrl.u32 %v4576, 7
      %v4578 = vsub.s32 %v4575, %v4577
      %v4579 = vrot.slane %v4571, %v4578
      %v4581 = vunpack.c.l.s4 1934713408
      %v4582 = vunpack.c.0.s8 %v4581
      %v4583 = vlaneseq
      %v4584 = vshrl.u32 %v4583, 7
      %v4585 = vsub.s32 %v4582, %v4584
      %v4586 = vrot.slane %v4572, %v4585
      %v4587 = vcombine.low %v4554, %v4570
      %v4588 = vcombine.high %v4554, %v4570
      %v4590 = vunpack.c.l.s4 1934713408
      %v4591 = vunpack.c.0.s8 %v4590
      %v4592 = vlaneseq
      %v4593 = vshrl.u32 %v4592, 7
      %v4594 = vsub.s32 %v4591, %v4593
      %v4595 = vrot.slane %v4587, %v4594
      %v4597 = vunpack.c.l.s4 1934713408
      %v4598 = vunpack.c.0.s8 %v4597
      %v4599 = vlaneseq
      %v4600 = vshrl.u32 %v4599, 7
      %v4601 = vsub.s32 %v4598, %v4600
      %v4602 = vrot.slane %v4588, %v4601
      %v4603 = vcombine.high %v4579, 0.0
      %v4604 = vcombine.high %v4586, 0.0
      %v4605 = vcombine.high %v4595, 0.0
      %v4606 = vcombine.high %v4602, 0.0
      %v4607 = vcombine.low %v4518, %v4526
      %v4608 = vcombine.high %v4518, %v4526
      %v4610 = vunpack.c.l.s4 1983009808
      %v4611 = vunpack.c.0.s8 %v4610
      %v4612 = vlaneseq
      %v4613 = vshrl.u32 %v4612, 7
      %v4614 = vsub.s32 %v4611, %v4613
      %v4615 = vrot.slane %v4607, %v4614
      %v4617 = vunpack.c.l.s4 1983009808
      %v4618 = vunpack.c.0.s8 %v4617
      %v4619 = vlaneseq
      %v4620 = vshrl.u32 %v4619, 7
      %v4621 = vsub.s32 %v4618, %v4620
      %v4622 = vrot.slane %v4608, %v4621
      %v4623 = vcombine.low %v4522, %v4530
      %v4624 = vcombine.high %v4522, %v4530
      %v4626 = vunpack.c.l.s4 1983009808
      %v4627 = vunpack.c.0.s8 %v4626
      %v4628 = vlaneseq
      %v4629 = vshrl.u32 %v4628, 7
      %v4630 = vsub.s32 %v4627, %v4629
      %v4631 = vrot.slane %v4623, %v4630
      %v4633 = vunpack.c.l.s4 1983009808
      %v4634 = vunpack.c.0.s8 %v4633
      %v4635 = vlaneseq
      %v4636 = vshrl.u32 %v4635, 7
      %v4637 = vsub.s32 %v4634, %v4636
      %v4638 = vrot.slane %v4624, %v4637
      %v4639 = vcombine.low %v4615, %v4631
      %v4640 = vcombine.high %v4615, %v4631
      %v4642 = vunpack.c.l.s4 1934713408
      %v4643 = vunpack.c.0.s8 %v4642
      %v4644 = vlaneseq
      %v4645 = vshrl.u32 %v4644, 7
      %v4646 = vsub.s32 %v4643, %v4645
      %v4647 = vrot.slane %v4639, %v4646
      %v4649 = vunpack.c.l.s4 1934713408
      %v4650 = vunpack.c.0.s8 %v4649
      %v4651 = vlaneseq
      %v4652 = vshrl.u32 %v4651, 7
      %v4653 = vsub.s32 %v4650, %v4652
      %v4654 = vrot.slane %v4640, %v4653
      %v4655 = vcombine.low %v4622, %v4638
      %v4656 = vcombine.high %v4622, %v4638
      %v4658 = vunpack.c.l.s4 1934713408
      %v4659 = vunpack.c.0.s8 %v4658
      %v4660 = vlaneseq
      %v4661 = vshrl.u32 %v4660, 7
      %v4662 = vsub.s32 %v4659, %v4661
      %v4663 = vrot.slane %v4655, %v4662
      %v4665 = vunpack.c.l.s4 1934713408
      %v4666 = vunpack.c.0.s8 %v4665
      %v4667 = vlaneseq
      %v4668 = vshrl.u32 %v4667, 7
      %v4669 = vsub.s32 %v4666, %v4668
      %v4670 = vrot.slane %v4656, %v4669
      %v4671 = vcombine.high %v4647, 0.0
      %v4672 = vcombine.high %v4654, 0.0
      %v4673 = vcombine.high %v4663, 0.0
      %v4674 = vcombine.high %v4670, 0.0
      %4676 = vrot.lane.b32.xlu0 %v4603, 16
      %v4677 = vpop.permute.xlu0 %4676
      %4680 = vrot.lane.b32.xlu0 %v4586, 32
      %v4681 = vpop.permute.xlu0 %4680
      %4684 = vrot.lane.b32.xlu0 %v4604, 48
      %v4685 = vpop.permute.xlu0 %4684
      %4688 = vrot.lane.b32.xlu0 %v4595, 64
      %v4689 = vpop.permute.xlu0 %4688
      %4692 = vrot.lane.b32.xlu0 %v4605, 80
      %v4693 = vpop.permute.xlu0 %4692
      %4696 = vrot.lane.b32.xlu0 %v4602, 96
      %v4697 = vpop.permute.xlu0 %4696
      %4700 = vrot.lane.b32.xlu0 %v4606, 112
      %v4701 = vpop.permute.xlu0 %4700
      %4704 = vrot.lane.b32.xlu0 %v4671, 16
      %v4705 = vpop.permute.xlu0 %4704
      %4708 = vrot.lane.b32.xlu0 %v4654, 32
      %v4709 = vpop.permute.xlu0 %4708
      %4712 = vrot.lane.b32.xlu0 %v4672, 48
      %v4713 = vpop.permute.xlu0 %4712
      %4716 = vrot.lane.b32.xlu0 %v4663, 64
      %v4717 = vpop.permute.xlu0 %4716
      %4720 = vrot.lane.b32.xlu0 %v4673, 80
      %v4721 = vpop.permute.xlu0 %4720
      %4724 = vrot.lane.b32.xlu0 %v4670, 96
      %v4725 = vpop.permute.xlu0 %4724
      %4728 = vrot.lane.b32.xlu0 %v4674, 112
      %v4729 = vpop.permute.xlu0 %4728
      %v4731 = vsel %vm537, %v4579, %v4677
      %v4732 = vsel %vm539, %v4731, %v4681
      %v4733 = vsel %vm541, %v4732, %v4685
      %v4734 = vsel %vm543, %v4733, %v4689
      %v4735 = vsel %vm545, %v4734, %v4693
      %v4736 = vsel %vm547, %v4735, %v4697
      %v4737 = vsel %vm549, %v4736, %v4701
      %v4738 = vsel %vm537, %v4647, %v4705
      %v4739 = vsel %vm539, %v4738, %v4709
      %v4740 = vsel %vm541, %v4739, %v4713
      %v4741 = vsel %vm543, %v4740, %v4717
      %v4742 = vsel %vm545, %v4741, %v4721
      %v4743 = vsel %vm547, %v4742, %v4725
      %v4744 = vsel %vm549, %v4743, %v4729
      %4745 = vrot.lane.b32.xlu0 %v4283, 126
      %v4746 = vpop.permute.xlu0 %4745
      %4747 = vrot.lane.b32.xlu0 %v4285, 126
      %v4748 = vpop.permute.xlu0 %4747
      %4749 = vrot.lane.b32.xlu0 %v4288, 126
      %v4750 = vpop.permute.xlu0 %4749
      %4751 = vrot.lane.b32.xlu0 %v4290, 126
      %v4752 = vpop.permute.xlu0 %4751
      %4753 = vrot.lane.b32.xlu0 %v4293, 126
      %v4754 = vpop.permute.xlu0 %4753
      %4755 = vrot.lane.b32.xlu0 %v4295, 126
      %v4756 = vpop.permute.xlu0 %4755
      %4757 = vrot.lane.b32.xlu0 %v4298, 126
      %v4758 = vpop.permute.xlu0 %4757
      %4759 = vrot.lane.b32.xlu0 %v4300, 126
      %v4760 = vpop.permute.xlu0 %4759
      %v4769 = vcombine.low %v4746, %v4754
      %v4770 = vcombine.high %v4746, %v4754
      %v4772 = vunpack.c.l.s4 1983009808
      %v4773 = vunpack.c.0.s8 %v4772
      %v4774 = vlaneseq
      %v4775 = vshrl.u32 %v4774, 7
      %v4776 = vsub.s32 %v4773, %v4775
      %v4777 = vrot.slane %v4769, %v4776
      %v4779 = vunpack.c.l.s4 1983009808
      %v4780 = vunpack.c.0.s8 %v4779
      %v4781 = vlaneseq
      %v4782 = vshrl.u32 %v4781, 7
      %v4783 = vsub.s32 %v4780, %v4782
      %v4784 = vrot.slane %v4770, %v4783
      %v4785 = vcombine.low %v4750, %v4758
      %v4786 = vcombine.high %v4750, %v4758
      %v4788 = vunpack.c.l.s4 1983009808
      %v4789 = vunpack.c.0.s8 %v4788
      %v4790 = vlaneseq
      %v4791 = vshrl.u32 %v4790, 7
      %v4792 = vsub.s32 %v4789, %v4791
      %v4793 = vrot.slane %v4785, %v4792
      %v4795 = vunpack.c.l.s4 1983009808
      %v4796 = vunpack.c.0.s8 %v4795
      %v4797 = vlaneseq
      %v4798 = vshrl.u32 %v4797, 7
      %v4799 = vsub.s32 %v4796, %v4798
      %v4800 = vrot.slane %v4786, %v4799
      %v4801 = vcombine.low %v4777, %v4793
      %v4802 = vcombine.high %v4777, %v4793
      %v4804 = vunpack.c.l.s4 1934713408
      %v4805 = vunpack.c.0.s8 %v4804
      %v4806 = vlaneseq
      %v4807 = vshrl.u32 %v4806, 7
      %v4808 = vsub.s32 %v4805, %v4807
      %v4809 = vrot.slane %v4801, %v4808
      %v4811 = vunpack.c.l.s4 1934713408
      %v4812 = vunpack.c.0.s8 %v4811
      %v4813 = vlaneseq
      %v4814 = vshrl.u32 %v4813, 7
      %v4815 = vsub.s32 %v4812, %v4814
      %v4816 = vrot.slane %v4802, %v4815
      %v4817 = vcombine.low %v4784, %v4800
      %v4818 = vcombine.high %v4784, %v4800
      %v4820 = vunpack.c.l.s4 1934713408
      %v4821 = vunpack.c.0.s8 %v4820
      %v4822 = vlaneseq
      %v4823 = vshrl.u32 %v4822, 7
      %v4824 = vsub.s32 %v4821, %v4823
      %v4825 = vrot.slane %v4817, %v4824
      %v4827 = vunpack.c.l.s4 1934713408
      %v4828 = vunpack.c.0.s8 %v4827
      %v4829 = vlaneseq
      %v4830 = vshrl.u32 %v4829, 7
      %v4831 = vsub.s32 %v4828, %v4830
      %v4832 = vrot.slane %v4818, %v4831
      %v4833 = vcombine.high %v4809, 0.0
      %v4834 = vcombine.high %v4816, 0.0
      %v4835 = vcombine.high %v4825, 0.0
      %v4836 = vcombine.high %v4832, 0.0
      %v4837 = vcombine.low %v4748, %v4756
      %v4838 = vcombine.high %v4748, %v4756
      %v4840 = vunpack.c.l.s4 1983009808
      %v4841 = vunpack.c.0.s8 %v4840
      %v4842 = vlaneseq
      %v4843 = vshrl.u32 %v4842, 7
      %v4844 = vsub.s32 %v4841, %v4843
      %v4845 = vrot.slane %v4837, %v4844
      %v4847 = vunpack.c.l.s4 1983009808
      %v4848 = vunpack.c.0.s8 %v4847
      %v4849 = vlaneseq
      %v4850 = vshrl.u32 %v4849, 7
      %v4851 = vsub.s32 %v4848, %v4850
      %v4852 = vrot.slane %v4838, %v4851
      %v4853 = vcombine.low %v4752, %v4760
      %v4854 = vcombine.high %v4752, %v4760
      %v4856 = vunpack.c.l.s4 1983009808
      %v4857 = vunpack.c.0.s8 %v4856
      %v4858 = vlaneseq
      %v4859 = vshrl.u32 %v4858, 7
      %v4860 = vsub.s32 %v4857, %v4859
      %v4861 = vrot.slane %v4853, %v4860
      %v4863 = vunpack.c.l.s4 1983009808
      %v4864 = vunpack.c.0.s8 %v4863
      %v4865 = vlaneseq
      %v4866 = vshrl.u32 %v4865, 7
      %v4867 = vsub.s32 %v4864, %v4866
      %v4868 = vrot.slane %v4854, %v4867
      %v4869 = vcombine.low %v4845, %v4861
      %v4870 = vcombine.high %v4845, %v4861
      %v4872 = vunpack.c.l.s4 1934713408
      %v4873 = vunpack.c.0.s8 %v4872
      %v4874 = vlaneseq
      %v4875 = vshrl.u32 %v4874, 7
      %v4876 = vsub.s32 %v4873, %v4875
      %v4877 = vrot.slane %v4869, %v4876
      %v4879 = vunpack.c.l.s4 1934713408
      %v4880 = vunpack.c.0.s8 %v4879
      %v4881 = vlaneseq
      %v4882 = vshrl.u32 %v4881, 7
      %v4883 = vsub.s32 %v4880, %v4882
      %v4884 = vrot.slane %v4870, %v4883
      %v4885 = vcombine.low %v4852, %v4868
      %v4886 = vcombine.high %v4852, %v4868
      %v4888 = vunpack.c.l.s4 1934713408
      %v4889 = vunpack.c.0.s8 %v4888
      %v4890 = vlaneseq
      %v4891 = vshrl.u32 %v4890, 7
      %v4892 = vsub.s32 %v4889, %v4891
      %v4893 = vrot.slane %v4885, %v4892
      %v4895 = vunpack.c.l.s4 1934713408
      %v4896 = vunpack.c.0.s8 %v4895
      %v4897 = vlaneseq
      %v4898 = vshrl.u32 %v4897, 7
      %v4899 = vsub.s32 %v4896, %v4898
      %v4900 = vrot.slane %v4886, %v4899
      %v4901 = vcombine.high %v4877, 0.0
      %v4902 = vcombine.high %v4884, 0.0
      %v4903 = vcombine.high %v4893, 0.0
      %v4904 = vcombine.high %v4900, 0.0
      %4906 = vrot.lane.b32.xlu0 %v4833, 16
      %v4907 = vpop.permute.xlu0 %4906
      %4910 = vrot.lane.b32.xlu0 %v4816, 32
      %v4911 = vpop.permute.xlu0 %4910
      %4914 = vrot.lane.b32.xlu0 %v4834, 48
      %v4915 = vpop.permute.xlu0 %4914
      %4918 = vrot.lane.b32.xlu0 %v4825, 64
      %v4919 = vpop.permute.xlu0 %4918
      %4922 = vrot.lane.b32.xlu0 %v4835, 80
      %v4923 = vpop.permute.xlu0 %4922
      %4926 = vrot.lane.b32.xlu0 %v4832, 96
      %v4927 = vpop.permute.xlu0 %4926
      %4930 = vrot.lane.b32.xlu0 %v4836, 112
      %v4931 = vpop.permute.xlu0 %4930
      %4934 = vrot.lane.b32.xlu0 %v4901, 16
      %v4935 = vpop.permute.xlu0 %4934
      %4938 = vrot.lane.b32.xlu0 %v4884, 32
      %v4939 = vpop.permute.xlu0 %4938
      %4942 = vrot.lane.b32.xlu0 %v4902, 48
      %v4943 = vpop.permute.xlu0 %4942
      %4946 = vrot.lane.b32.xlu0 %v4893, 64
      %v4947 = vpop.permute.xlu0 %4946
      %4950 = vrot.lane.b32.xlu0 %v4903, 80
      %v4951 = vpop.permute.xlu0 %4950
      %4954 = vrot.lane.b32.xlu0 %v4900, 96
      %v4955 = vpop.permute.xlu0 %4954
      %4958 = vrot.lane.b32.xlu0 %v4904, 112
      %v4959 = vpop.permute.xlu0 %4958
      %v4961 = vsel %vm537, %v4809, %v4907
      %v4962 = vsel %vm539, %v4961, %v4911
      %v4963 = vsel %vm541, %v4962, %v4915
      %v4964 = vsel %vm543, %v4963, %v4919
      %v4965 = vsel %vm545, %v4964, %v4923
      %v4966 = vsel %vm547, %v4965, %v4927
      %v4967 = vsel %vm549, %v4966, %v4931
      %v4968 = vsel %vm537, %v4877, %v4935
      %v4969 = vsel %vm539, %v4968, %v4939
      %v4970 = vsel %vm541, %v4969, %v4943
      %v4971 = vsel %vm543, %v4970, %v4947
      %v4972 = vsel %vm545, %v4971, %v4951
      %v4973 = vsel %vm547, %v4972, %v4955
      %v4974 = vsel %vm549, %v4973, %v4959
      %v4977 = vrot.slane %v3345, 4
      %v4978 = vrot.slane %v3352, 4
      %v4983 = vrot.slane %v3813, 4
      %v4984 = vrot.slane %v3820, 4
      %v4989 = vrot.slane %v4273, 4
      %v4990 = vrot.slane %v4280, 4
      %v4995 = vrot.slane %v4737, 4
      %v4996 = vrot.slane %v4744, 4
      %v4999 = vsel %vm2444, %v3107, %v4977
      %v5000 = vsel %vm2444, %v3114, %v4978
      %v5001 = vsel %vm2444, %v3575, %v4983
      %v5002 = vsel %vm2444, %v3582, %v4984
      %v5003 = vsel %vm2444, %v4043, %v4989
      %v5004 = vsel %vm2444, %v4050, %v4990
      %v5005 = vsel %vm2444, %v4507, %v4995
      %v5006 = vsel %vm2444, %v4514, %v4996
      %v5007 = vld [vmem:[%s5] sm:$0xff]
      %v5008 = vld [vmem:[%s6] sm:$0xff]
      %5010 = vset.pattern.permute.xlu0 0
      %5011 = vperm.xlu0 %5010, %v5008
      %v5012 = vpop.permute.xlu0 %5011
      %v5015 = vsel %vm2460, %v5007, 0
      %v5018 = vsel %vm2444, %v4967, 0
      %v5021 = vsel %vm2444, %v4974, 0
      %5023 = vmatprep.subr.mxu0 %v5000
      %5024 = vmatpush1.msra.mxu0 %v4999
      %5025 = vmatprep.subr.mxu0 %v5002
      %5026 = vmatpush1.msra.mxu0 %v5001
      %5027 = vmatprep.subr.mxu0 %v5004
      %5028 = vmatpush1.msra.mxu0 %v5003
      %5029 = vmatprep.subr.mxu0 %v5006
      %5030 = vmatpush1.msra.mxu0 %v5005
      %5031 = vmatprep.subr.mxu0 %v5021
      %5032 = vmatpush1.msra.mxu0 %v5018
      %5033 = vmatprep.subr.mxu0 0.0
      %5034 = vmatpush1.msra.mxu0 0.0
      %5035 = vmatprep.subr.mxu0 0.0
      %5036 = vmatpush1.msra.mxu0 0.0
      %5037 = vmatprep.subr.mxu0 0.0
      %5038 = vmatpush1.msra.mxu0 0.0
      %5039 = vmatprep.subr.mxu0 0.0
      %5040 = vmatpush1.msra.mxu0 0.0
      %5041 = vmatprep.subr.mxu0 0.0
      %5042 = vmatpush1.msra.mxu0 0.0
      %5043 = vmatprep.subr.mxu0 0.0
      %5044 = vmatpush1.msra.mxu0 0.0
      %5045 = vmatprep.subr.mxu0 0.0
      %5046 = vmatpush1.msra.mxu0 0.0
      %5047 = vmatprep.subr.mxu0 0.0
      %5048 = vmatpush1.msra.mxu0 0.0
      %5049 = vmatprep.subr.mxu0 0.0
      %5050 = vmatpush1.msra.mxu0 0.0
      %5051 = vmatprep.subr.mxu0 0.0
      %5052 = vmatpush1.msra.mxu0 0.0
      %5053 = vmatprep.subr.mxu0 0.0
      %5054 = vmatpush1.msra.mxu0 0.0
      %5055 = vmatprep.subr.mxu0 0.0
      %5056 = vmatpush1.msra.mxu0 0.0
      %5057 = vmatprep.subr.mxu0 0.0
      %5058 = vmatpush1.msra.mxu0 0.0
      %5059 = vmatprep.subr.mxu0 0.0
      %5060 = vmatpush1.msra.mxu0 0.0
      %5061 = vmatprep.subr.mxu0 0.0
      %5062 = vmatpush1.msra.mxu0 0.0
      %5063 = vmatprep.subr.mxu0 0.0
      %5064 = vmatpush1.msra.mxu0 0.0
      %5065 = vmatprep.subr.mxu0 0.0
      %5066 = vmatpush1.msra.mxu0 0.0
      %5067 = vmatprep.subr.mxu0 0.0
      %5068 = vmatpush1.msra.mxu0 0.0
      %5069 = vmatprep.subr.mxu0 0.0
      %5070 = vmatpush1.msra.mxu0 0.0
      %5071 = vmatprep.subr.mxu0 0.0
      %5072 = vmatpush1.msra.mxu0 0.0
      %5073 = vmatprep.subr.mxu0 0.0
      %5074 = vmatpush1.msra.mxu0 0.0
      %5075 = vmatprep.subr.mxu0 0.0
      %5076 = vmatpush1.msra.mxu0 0.0
      %5077 = vmatprep.subr.mxu0 0.0
      %5078 = vmatpush1.msra.mxu0 0.0
      %5079 = vmatprep.subr.mxu0 0.0
      %5080 = vmatpush1.msra.mxu0 0.0
      %5081 = vmatprep.subr.mxu0 0.0
      %5082 = vmatpush1.msra.mxu0 0.0
      %5083 = vmatprep.subr.mxu0 0.0
      %5084 = vmatpush1.msra.mxu0 0.0
      %5085 = vmatprep.subr.mxu0 0.0
      %5086 = vmatpush1.msra.mxu0 0.0
      %5087 = vmatprep.mubr.f32.mxu0 0.0
      %5088 = vmatmul.mubr.f32.gmra.mrb[0].mxu0 %v5015
      %v5089 = vpop.f32.mrb[0].mxu0
      %v5090 = vadd.f32 %v5012, %v5089
      %v5091 = vpop.f32.mrb[0].mxu0
      %v5092 = vadd.f32 %v5012, %v5091
      %5093 = vdwg.mxu0
      %v5094 = vld [vmem:[%s7] sm:$0xff]
      %v5095 = vld [vmem:[%s8] sm:$0xff]
      %v5096 = vsel %vm2444, %v5090, 0.0
      %v5097 = vsel %vm2444, %v5092, 0.0
      %v5098 = vadd.f32 %v5096, %v5097
      %5099 = vadd.xlane.f32.xlu0 %v5098
      %v5100 = vpop.xlane.xlu0 %5099
      %v5101 = vrot.slane %v5100, 4
      %v5102 = vadd.f32 %v5100, %v5101
      %v5103 = vrot.slane %v5102, 2
      %v5104 = vadd.f32 %v5102, %v5103
      %v5105 = vrot.slane %v5104, 1
      %v5106 = vadd.f32 %v5104, %v5105
      %s5107 = vtos %v5106
      %v5108 = vrcp.pop 1024.0
      %s5109 = vtos %v5108
      %s5110 = smul.f32 %s5107, %s5109
      %v5111 = vstv %s5110
      %v5112 = vsub.f32 %v5090, %v5111
      %v5113 = vsub.f32 %v5092, %v5111
      %v5114 = vmul.f32 %v5112, %v5112
      %v5115 = vmul.f32 %v5113, %v5113
      %v5116 = vsel %vm2444, %v5114, 0.0
      %v5117 = vsel %vm2444, %v5115, 0.0
      %v5118 = vadd.f32 %v5116, %v5117
      %5119 = vadd.xlane.f32.xlu0 %v5118
      %v5120 = vpop.xlane.xlu0 %5119
      %v5121 = vrot.slane %v5120, 4
      %v5122 = vadd.f32 %v5120, %v5121
      %v5123 = vrot.slane %v5122, 2
      %v5124 = vadd.f32 %v5122, %v5123
      %v5125 = vrot.slane %v5124, 1
      %v5126 = vadd.f32 %v5124, %v5125
      %s5127 = vtos %v5126
      %v5128 = vrcp.pop 1024.0
      %s5129 = vtos %v5128
      %s5130 = smul.f32 %s5127, %s5129
      %s5131 = sadd.f32 %s5130, 1e-05
      %v5132 = vstv %s5131
      %v5133 = vrsqrt.pop %v5132
      %s5134 = vtos %v5133
      %v5135 = vstv %s5134
      %v5136 = vmul.f32 %v5112, %v5135
      %v5137 = vmul.f32 %v5113, %v5135
      %5139 = vset.pattern.permute.xlu0 0
      %5140 = vperm.xlu0 %5139, %v5094
      %v5141 = vpop.permute.xlu0 %5140
      %v5143 = vmul.f32 %v5136, %v5141
      %v5144 = vmul.f32 %v5137, %v5141
      %5146 = vset.pattern.permute.xlu0 0
      %5147 = vperm.xlu0 %5146, %v5095
      %v5148 = vpop.permute.xlu0 %5147
      %v5150 = vadd.f32 %v5143, %v5148
      %v5151 = vadd.f32 %v5144, %v5148
      %v5154 = vrot.slane %v5090, 4
      %v5155 = vrot.slane %v5092, 4
      %v5158 = vsel %vm2444, %v5154, 0.0
      %v5159 = vsel %vm2444, %v5155, 0.0
      %v5160 = vadd.f32 %v5158, %v5159
      %5161 = vadd.xlane.f32.xlu0 %v5160
      %v5162 = vpop.xlane.xlu0 %5161
      %v5163 = vrot.slane %v5162, 4
      %v5164 = vadd.f32 %v5162, %v5163
      %v5165 = vrot.slane %v5164, 2
      %v5166 = vadd.f32 %v5164, %v5165
      %v5167 = vrot.slane %v5166, 1
      %v5168 = vadd.f32 %v5166, %v5167
      %s5169 = vtos %v5168
      %v5170 = vrcp.pop 1024.0
      %s5171 = vtos %v5170
      %s5172 = smul.f32 %s5169, %s5171
      %v5173 = vstv %s5172
      %v5174 = vsub.f32 %v5090, %v5173
      %v5175 = vsub.f32 %v5092, %v5173
      %v5176 = vmul.f32 %v5174, %v5174
      %v5177 = vmul.f32 %v5175, %v5175
      %v5180 = vrot.slane %v5176, 4
      %v5181 = vrot.slane %v5177, 4
      %v5184 = vsel %vm2444, %v5180, 0.0
      %v5185 = vsel %vm2444, %v5181, 0.0
      %v5186 = vadd.f32 %v5184, %v5185
      %5187 = vadd.xlane.f32.xlu0 %v5186
      %v5188 = vpop.xlane.xlu0 %5187
      %v5189 = vrot.slane %v5188, 4
      %v5190 = vadd.f32 %v5188, %v5189
      %v5191 = vrot.slane %v5190, 2
      %v5192 = vadd.f32 %v5190, %v5191
      %v5193 = vrot.slane %v5192, 1
      %v5194 = vadd.f32 %v5192, %v5193
      %s5195 = vtos %v5194
      %v5196 = vrcp.pop 1024.0
      %s5197 = vtos %v5196
      %s5198 = smul.f32 %s5195, %s5197
      %s5199 = sadd.f32 %s5198, 1e-05
      %v5200 = vstv %s5199
      %v5201 = vrsqrt.pop %v5200
      %s5202 = vtos %v5201
      %v5203 = vstv %s5202
      %v5204 = vmul.f32 %v5174, %v5203
      %v5205 = vmul.f32 %v5175, %v5203
      %v5206 = vmul.f32 %v5204, %v5141
      %v5207 = vmul.f32 %v5205, %v5141
      %v5208 = vadd.f32 %v5206, %v5148
      %v5209 = vadd.f32 %v5207, %v5148
      %v5210 = vsel %vm2444, %v5150, %v5208
      %v5211 = vsel %vm2444, %v5151, %v5209
      %v5212 = vmax.f32 %v5210, 0.0
      %v5213 = vmax.f32 %v5211, 0.0
      %5214 = vst [vmem:[%s332] sm:$0xff] %v5212
      %5215 = vst [vmem:[%s332 + $0x8] sm:$0xff] %v5213
      %p5216 = scmp.lt.s32.totalorder %s20, 1
      %s5217 = scalar_select %p5216, %s20, 1
      %s5218 = smul.addr %s5217, 2
      %s5219 = smul.addr %s5218, 8
      %s5220 = scalar_lea.vmem %s9, %s5219
      // Predicated region
      $region57: #{double_conv_block_2d.1} parent=55 // pred_check
        %p5221 = pneg %p232
      $region58: #{double_conv_block_2d.1} parent=55 // pred_check_branch
        %5223 = sbr.rel (%p5221) target = $region60
      $region59: #{double_conv_block_2d.1} parent=55 // pred_region
        _
      $region60: #{double_conv_block_2d.1} parent=55 // pred_fallthru
        _
    $region56: #{double_conv_block_2d.1} parent=5 // pred_fallthru
      _
    %p5224 = scmp.le.s32.totalorder 2, %s15
    // Predicated region
    $region61: #{double_conv_block_2d.1} parent=5 // pred_check
      %p5225 = pneg %p5224
    $region62: #{double_conv_block_2d.1} parent=5 // pred_check_branch
      %5227 = sbr.rel (%p5225) target = $region64
    $region63: #{double_conv_block_2d.1} parent=5 // pred_region
      %s5228 = ssub.s32 %s15, 2
      // Predicated region
      $region65: #{double_conv_block_2d.1} parent=63 // pred_check
        %p5229 = pneg %p238
      $region66: #{double_conv_block_2d.1} parent=63 // pred_check_branch
        %5231 = sbr.rel (%p5229) target = $region68
      $region67: #{double_conv_block_2d.1} parent=63 // pred_region
        %p5232 = scmp.lt.s32.totalorder %s21, 1
        %s5233 = scalar_select %p5232, %s21, 1
        %s5234 = smul.addr %s5233, 2
        %s5235 = smul.addr %s5234, 8
        %s5236 = scalar_lea.vmem %s9, %s5235
      $region68: #{double_conv_block_2d.1} parent=63 // pred_fallthru
        _
    $region64: #{double_conv_block_2d.1} parent=5 // pred_fallthru
      _
  $region6: #{double_conv_block_2d.1} parent=0 // loop_footer
    %s19 = sadd.s32 1, %s15
  $region7: #{double_conv_block_2d.1} parent=0 // loop_footer_branch
    %14 = sbr.rel target = $region3
  $region8: #{double_conv_block_2d.1} parent=0 // loop_exit
    _

</llo_original>
